<compile_context>
chip_gen: v7x
topology: tpu7x:2x2x1
jax: 0.10.0
libtpu: 0.0.40
codegen_flags: <defaults>
</compile_context>

<pallas_src>
import math

import jax
import jax.numpy as jnp
from jax import lax
from jax.experimental import pallas as pl
from jax.experimental.pallas import tpu as pltpu


_STATIC_ROWTILE_MAX = 64   # static unroll of the conv row-tile loop up to this many tiles


# -----------------------------------------------------------------------------
# Pallas kernel: Bt batch elements per grid step, whole (Bt, L, Wp) slab in VMEM.
# -----------------------------------------------------------------------------
def hyena_kernel(x_ref, wi_ref, bi_ref, wsf_ref, bsf_ref, k_ref, d_ref,
                 wo_ref, bo_ref, o_ref, upad_ref, vpad_ref, x0_ref, yg_ref):
    Bt, L, Wp = x_ref.shape
    RT = vpad_ref.shape[1] - L          # conv row-tile size (= zero-pad rows)
    PAD = upad_ref.shape[1] - L         # short-filter pad rows (8)

    # Zero only the pad rows that are actually read: 2 rows for the short
    # filter, RT rows for the conv.  Re-done every grid step (cheap, and safe
    # under megacore sharding — no program_id == 0 guard).
    upad_ref[:, PAD - 2:PAD, :] = jnp.zeros((Bt, 2, Wp), jnp.float32)
    vpad_ref[:, 0:RT, :] = jnp.zeros((Bt, RT, Wp), jnp.float32)

    x2 = x_ref[...].reshape(Bt * L, Wp)                      # bf16 MXU operand

    # ---- in_proj (per W-wide gate block) + depthwise short filter ----------
    # Each gate block is computed independently so no (Bt, L, 3W) slab is ever
    # materialized and every intermediate keeps a lane-dense last dim of Wp.
    def gate(g):
        ug = (jnp.dot(x2, wi_ref[g], preferred_element_type=jnp.float32)
              + bi_ref[g]).reshape(Bt, L, Wp)                # f32
        # short_filter: out[l] = w0*u[l-2] + w1*u[l-1] + w2*u[l] + b
        # shifted views come from one reused zero-padded scratch (no concat).
        upad_ref[:, PAD:PAD + L, :] = ug
        taps = wsf_ref[g]                                    # (3, Wp)
        um2 = upad_ref[:, PAD - 2:PAD - 2 + L, :]
        um1 = upad_ref[:, PAD - 1:PAD - 1 + L, :]
        return taps[0] * um2 + taps[1] * um1 + taps[2] * ug + bsf_ref[g]

    x0_ref[...] = gate(0)                                    # gate applied after conv
    x1 = gate(1)
    v = gate(2) * x1                                         # first gating
    vpad_ref[:, RT:RT + L, :] = v

    # ---- long implicit-filter causal conv + D skip (== fft_conv) -----------
    # y[l, c] = sum_{s=0..l} k[s, c] * v[l-s, c], computed per RT-row output
    # tile so the accumulator lives in vregs across the whole shift loop
    # (one store per tile instead of one per tap); k is loaded in aligned
    # RT-row blocks and row-extracted statically inside the 8-wide inner body.
    dvec = d_ref[0]                                          # (Wp,)
    n_tiles = L // RT

    def conv_tile(row0, nblocks):
        def s_block(sb, acc):
            s0 = pl.multiple_of(sb * RT, RT)
            kblk = k_ref[pl.ds(s0, RT), :]                   # (RT, Wp), aligned
            for t in range(RT):                              # static 8-wide body
                vb = vpad_ref[:, pl.ds(RT + row0 - s0 - t, RT), :]
                acc = acc + kblk[t] * vb
            return acc

        acc = lax.fori_loop(0, nblocks, s_block,
                            jnp.zeros((Bt, RT, Wp), jnp.float32))
        vt = vpad_ref[:, pl.ds(RT + row0, RT), :]            # aligned
        x0t = x0_ref[:, pl.ds(row0, RT), :]                  # aligned
        yt = (acc + vt * dvec) * x0t                         # D skip + 2nd gating
        yg_ref[:, pl.ds(row0, RT), :] = yt.astype(jnp.bfloat16)

    if n_tiles <= _STATIC_ROWTILE_MAX:
        for r in range(n_tiles):                             # static trip counts
            conv_tile(r * RT, r + 1)
    else:
        # TODO(synk): for very long sequences, tile L on the grid (lower-
        # triangular block skipping via pl.when) instead of in-kernel loops.
        def tile_body(r, carry):
            conv_tile(pl.multiple_of(r * RT, RT), r + 1)
            return carry
        lax.fori_loop(0, n_tiles, tile_body, 0)

    # ---- out_proj on the lane-dense gated slab (MXU, bf16 x bf16 -> f32) ----
    y2 = yg_ref[...].reshape(Bt * L, Wp)
    out = jnp.dot(y2, wo_ref[...], preferred_element_type=jnp.float32) + bo_ref[...]
    o_ref[...] = out.reshape(Bt, L, Wp).astype(o_ref.dtype)


# -----------------------------------------------------------------------------
# Wrapper: per-chip tuning, lane-dense repacking, BlockSpecs / grid.
# -----------------------------------------------------------------------------
def _round_up(x, m):
    return ((x + m - 1) // m) * m


def _tpu_caps():
    """Best-effort per-chip limits: (vmem capacity bytes, target MXU rows)."""
    vmem_cap = 64 * 1024 * 1024              # v7x per-core VMEM (smallest case)
    try:
        cap = getattr(pltpu.get_tpu_info(), "vmem_capacity_bytes", None)
        if cap:
            vmem_cap = int(cap)
    except Exception:
        pass
    target_m = 512                            # v6e / v7x: 256-wide MXU -> tall M
    try:
        kind = jax.devices()[0].device_kind.lower()
        if "v5" in kind:
            target_m = 256                    # v5e: 4x128^2 MXU saturates at M=256
    except Exception:
        pass
    return vmem_cap, target_m


def _choose_block_batch(batch, seq_len, wp, vmem_cap, target_m):
    """Largest divisor of `batch` under the MXU-rows target and a VMEM bound,
    preferring an even number of grid steps (v7x has 2 TensorCores)."""
    per_b = 14 * seq_len * wp * 4                      # ~f32 slabs per batch elem
    bt_cap = max(1, min(batch,
                        max(1, target_m // max(seq_len, 1)),
                        max(1, int(0.6 * vmem_cap) // max(per_b, 1))))
    best, best_key = 1, None
    for d in range(1, batch + 1):
        if batch % d or d > bt_cap:
            continue
        steps = batch // d
        key = (steps % 2 == 0, steps >= 2, d)          # even grid, >=2 steps, big tile
        if best_key is None or key > best_key:
            best, best_key = d, key
    return best


def _vmem_bytes_estimate(bt, seq_len, wp, rt):
    """Post-refactor working set: pipelined IO, weights, scratch, temporaries."""
    slab = bt * seq_len * wp
    io = 2 * (slab * 2 + slab * 4)                               # 2x-buffered x(bf16)+out(f32)
    wts = 2 * ((3 * wp * wp + wp * wp) * 2                       # wi_g + wo (bf16)
               + (3 + 9 + 3 + 1 + 1) * wp * 4                    # biases / taps / D / bo
               + seq_len * wp * 4)                               # k
    scr = (bt * (seq_len + 8) * wp + bt * (seq_len + rt) * wp + slab) * 4 + slab * 2
    tmp = 6 * slab * 4                                           # live f32 temporaries
    return io + wts + scr + tmp


def hyena_operator_pallas(x, params, *, block_batch=None, row_tile=8):
    """x: (B, L, W) float32. params as produced by init_params()+build_filter()."""
    B, L, W = x.shape
    wi_t, bi, wsf, bsf, k_lw, d, wo_t, bo = params
    assert row_tile % 8 == 0 and L % row_tile == 0, "seq len must be a multiple of 8"
    RT = row_tile
    Wp = _round_up(W, 128)            # lane-dense width (dense vst / full VPU lanes)

    vmem_cap, target_m = _tpu_caps()
    Bt = (block_batch if block_batch is not None
          else _choose_block_batch(B, L, Wp, vmem_cap, target_m))
    assert B % Bt == 0, "block batch must divide batch"

    def padw(a, axes):
        if Wp == W:
            return a
        pads = [(0, 0)] * a.ndim
        for ax in axes:
            pads[ax] = (0, Wp - W)
        return jnp.pad(a, pads)

    # Per-gate repacking + zero-padding of the width axis to Wp.  Padded rows /
    # columns are zero, so padded channels carry exact zeros end-to-end.
    wi_g = padw(jnp.transpose(wi_t.reshape(W, 3, W), (1, 0, 2)), (1, 2)).astype(jnp.bfloat16)
    bi_g = padw(bi.reshape(3, 1, W), (2,))
    wsf_g = padw(jnp.transpose(wsf.reshape(3, 3, W), (1, 0, 2)), (2,))
    bsf_g = padw(bsf.reshape(3, 1, W), (2,))
    k_p = padw(k_lw, (1,))
    d_p = padw(d, (1,))
    wo_p = padw(wo_t, (0, 1)).astype(jnp.bfloat16)
    bo_p = padw(bo, (1,))
    x_p = padw(x, (2,)).astype(jnp.bfloat16)

    est = _vmem_bytes_estimate(Bt, L, Wp, RT)
    vmem_limit = int(min(max(int(est * 1.2), 32 * 1024 * 1024),
                         int(0.85 * vmem_cap)))

    out = pl.pallas_call(
        hyena_kernel,
        out_shape=jax.ShapeDtypeStruct((B, L, Wp), x.dtype),
        grid_spec=pltpu.PrefetchScalarGridSpec(
            num_scalar_prefetch=0,
            grid=(B // Bt,),
            in_specs=[
                pl.BlockSpec((Bt, L, Wp), lambda b: (b, 0, 0)),   # x (bf16)
                pl.BlockSpec((3, Wp, Wp), lambda b: (0, 0, 0)),   # in_proj W^T per gate (bf16)
                pl.BlockSpec((3, 1, Wp), lambda b: (0, 0, 0)),    # in_proj bias per gate
                pl.BlockSpec((3, 3, Wp), lambda b: (0, 0, 0)),    # short-filter taps per gate
                pl.BlockSpec((3, 1, Wp), lambda b: (0, 0, 0)),    # short-filter bias per gate
                pl.BlockSpec((L, Wp), lambda b: (0, 0)),          # implicit filter k
                pl.BlockSpec((1, Wp), lambda b: (0, 0)),          # filter bias D
                pl.BlockSpec((Wp, Wp), lambda b: (0, 0)),         # out_proj W^T (bf16)
                pl.BlockSpec((1, Wp), lambda b: (0, 0)),          # out_proj bias
            ],
            out_specs=pl.BlockSpec((Bt, L, Wp), lambda b: (b, 0, 0)),
            scratch_shapes=[
                pltpu.VMEM((Bt, L + 8, Wp), jnp.float32),    # short-filter pad buffer
                pltpu.VMEM((Bt, L + RT, Wp), jnp.float32),   # conv input (RT zero rows + v)
                pltpu.VMEM((Bt, L, Wp), jnp.float32),        # gate x0
                pltpu.VMEM((Bt, L, Wp), jnp.bfloat16),       # gated y (out_proj operand)
            ],
        ),
        compiler_params=pltpu.CompilerParams(
            dimension_semantics=("parallel",),
            vmem_limit_bytes=vmem_limit),
    )(x_p, wi_g, bi_g, wsf_g, bsf_g, k_p, d_p, wo_p, bo_p)

    return out[:, :, :W] if Wp != W else out


# -----------------------------------------------------------------------------
# Plain-JAX glue: deterministic parameter init + implicit filter generation
# (the HyenaFilter MLP is data-independent precompute, tiny vs. the hot path).
# -----------------------------------------------------------------------------
def init_params(key, width, filter_order=64, emb_dim=3):
    iw = 3 * width
    ks = jax.random.split(key, 14)
    u = lambda k, shape, fan_in: jax.random.uniform(
        k, shape, minval=-1.0 / math.sqrt(fan_in), maxval=1.0 / math.sqrt(fan_in),
        dtype=jnp.float32)

    wi = u(ks[0], (iw, width), width)        # in_proj weight (out, in)
    bi = u(ks[1], (iw,), width)
    wsf = u(ks[2], (iw, 3), 3)               # depthwise conv weight (C, 1, 3) squeezed
    bsf = u(ks[3], (iw,), 3)
    wo = u(ks[4], (width, width), width)     # out_proj weight
    bo = u(ks[5], (width,), width)

    # HyenaFilter implicit MLP: Linear(3,64) Sin Linear(64,64) Sin Linear(64,64) Sin Linear(64,W,no bias)
    w1 = u(ks[6], (filter_order, emb_dim), emb_dim)
    b1 = u(ks[7], (filter_order,), emb_dim)
    w2 = u(ks[8], (filter_order, filter_order), filter_order)
    b2 = u(ks[9], (filter_order,), filter_order)
    w3 = u(ks[10], (filter_order, filter_order), filter_order)
    b3 = u(ks[11], (filter_order,), filter_order)
    wf = u(ks[12], (width, filter_order), filter_order)
    d_bias = jax.random.normal(ks[13], (width,), dtype=jnp.float32)  # HyenaFilter.bias

    freq = jnp.ones((1, filter_order), dtype=jnp.float32)            # Sin freq (=1)

    # ExponentialModulation deltas
    max_decay = math.log(0.01) / 0.3
    min_decay = math.log(0.01) / 1.5
    deltas = jnp.linspace(min_decay, max_decay, width, dtype=jnp.float32)[None, None]

    main = dict(wi=wi, bi=bi, wsf=wsf, bsf=bsf, wo=wo, bo=bo)
    filt = dict(w1=w1, b1=b1, w2=w2, b2=b2, w3=w3, b3=b3, wf=wf,
                freq=freq, deltas=deltas, d_bias=d_bias)
    return main, filt


def build_filter(filt, width, max_len, seq_len, emb_dim=3):
    """HyenaFilter.filter(seq_len): returns k as (seq_len, width) and D (width,)."""
    time_emb = jnp.linspace(0.0, 1.0, max_len)[None, :, None]                 # (1, max_len, 1)
    bands = (emb_dim - 1) // 2
    t_rescaled = jnp.linspace(0.0, max_len - 1, max_len)[None, :, None]
    w = 2.0 * math.pi * t_rescaled / max_len
    f = jnp.linspace(1e-4, bands - 1, bands)[None, None]                      # (1, 1, bands)
    zc = jnp.exp(-1j * f * w)
    z = jnp.concatenate([time_emb, zc.real, zc.imag], axis=-1).astype(jnp.float32)
    z = z[:, :seq_len]                                                        # (1, L, emb_dim)
    t = time_emb[:, :seq_len].astype(jnp.float32)                             # (1, L, 1)

    freq = filt["freq"]
    h = jnp.sin(freq * (z @ filt["w1"].T + filt["b1"]))
    h = jnp.sin(freq * (h @ filt["w2"].T + filt["b2"]))
    h = jnp.sin(freq * (h @ filt["w3"].T + filt["b3"]))
    h = h @ filt["wf"].T                                                      # (1, L, width)
    decay = jnp.exp(-t * jnp.abs(filt["deltas"]))
    h = h * decay                                                             # modulation
    k_lw = h[0]                                                               # (L, width)
    return k_lw, filt["d_bias"]


def pack_kernel_params(main, k_lw, d_bias):
    return (
        main["wi"].T,               # (W, 3W)
        main["bi"][None, :],        # (1, 3W)
        main["wsf"].T,              # (3, 3W) taps-major
        main["bsf"][None, :],       # (1, 3W)
        k_lw,                       # (L, W)
        d_bias[None, :],            # (1, W)
        main["wo"].T,               # (W, W)
        main["bo"][None, :],        # (1, W)
    )


# -----------------------------------------------------------------------------
# Pure-JAX f32 reference (matches the PyTorch module, incl. the rfft/irfft conv).
# -----------------------------------------------------------------------------
def reference_forward(x, params):
    wi_t, bi, wsf, bsf, k_lw, d, wo_t, bo = params
    B, L, W = x.shape
    u = x @ wi_t + bi                                   # (B, L, 3W)
    u = jnp.transpose(u, (0, 2, 1))                     # (B, 3W, L)
    up = jnp.pad(u, ((0, 0), (0, 0), (2, 0)))
    uc = (wsf[0][None, :, None] * up[:, :, 0:L]
          + wsf[1][None, :, None] * up[:, :, 1:L + 1]
          + wsf[2][None, :, None] * up[:, :, 2:L + 2]
          + bsf[0][None, :, None])
    x0 = uc[:, 0:W]
    x1 = uc[:, W:2 * W]
    v = uc[:, 2 * W:3 * W]
    v = v * x1
    # fft_conv
    fft_size = 2 * L
    k_wl = k_lw.T                                       # (W, L)
    k_f = jnp.fft.rfft(k_wl, n=fft_size) / fft_size
    v_f = jnp.fft.rfft(v, n=fft_size)
    y = jnp.fft.irfft(v_f * k_f[None], n=fft_size, norm="forward")[..., :L]
    v = y + v * d[0][None, :, None]
    y = v * x0
    y = jnp.transpose(y, (0, 2, 1))
    return y @ wo_t + bo


if __name__ == "__main__":
    B, L, W = 16, 16, 32              # batch, seq len, width
    MAX_LEN = 16                      # max_input_len
    FILTER_ORDER = 64
    EMB_DIM = 3

    key = jax.random.PRNGKey(0)
    kx, kp = jax.random.split(key)
    x = jax.random.normal(kx, (B, L, W), dtype=jnp.float32)

    main, filt = init_params(kp, W, filter_order=FILTER_ORDER, emb_dim=EMB_DIM)
    with jax.default_matmul_precision("highest"):
        k_lw, d_bias = build_filter(filt, W, MAX_LEN, L, emb_dim=EMB_DIM)
    params = pack_kernel_params(main, k_lw, d_bias)

    y = hyena_operator_pallas(x, params)
    y = jax.block_until_ready(y)
    assert y.shape == (B, L, W) and y.dtype == jnp.float32

    with jax.default_matmul_precision("highest"):
        y_ref = reference_forward(x, params)
    err = float(jnp.max(jnp.abs(y - y_ref)))
    scale = float(jnp.max(jnp.abs(y_ref)))
    # bf16 MXU operands vs f32 reference: allow small absolute + relative slack.
    if err > 5e-2 + 5e-2 * scale:
        raise SystemExit(f"mismatch vs reference: max abs err {err} (scale {scale})")

    print("KERNEL_OK")
</pallas_src>

<mosaic_0001>
module attributes {stable_mosaic.version = 11 : i64} {
  func.func @hyena_kernel(%arg0: i32, %arg1: memref<8x16x128xbf16, #tpu.memory_space<vmem>>, %arg2: memref<3x128x128xbf16, #tpu.memory_space<vmem>>, %arg3: memref<3x1x128xf32, #tpu.memory_space<vmem>>, %arg4: memref<3x3x128xf32, #tpu.memory_space<vmem>>, %arg5: memref<3x1x128xf32, #tpu.memory_space<vmem>>, %arg6: memref<16x128xf32, #tpu.memory_space<vmem>>, %arg7: memref<1x128xf32, #tpu.memory_space<vmem>>, %arg8: memref<128x128xbf16, #tpu.memory_space<vmem>>, %arg9: memref<1x128xf32, #tpu.memory_space<vmem>>, %arg10: memref<8x16x128xf32, #tpu.memory_space<vmem>>, %arg11: memref<8x24x128xf32, #tpu.memory_space<vmem>>, %arg12: memref<8x24x128xf32, #tpu.memory_space<vmem>>, %arg13: memref<8x16x128xf32, #tpu.memory_space<vmem>>, %arg14: memref<8x16x128xbf16, #tpu.memory_space<vmem>>) attributes {dimension_semantics = [#tpu.dimension_semantics<parallel>], iteration_bounds = array<i64: 2>, scalar_prefetch = 0 : i64, scratch_operands = 4 : i64, tpu.core_type = #tpu.core_type<tc>, window_params = [{transform_indices = @transform_0, window_bounds = array<i64: 8, 16, 128>}, {pipeline_mode = #tpu.pipeline_mode<synchronous>, transform_indices = @transform_1, window_bounds = array<i64: 3, 128, 128>}, {pipeline_mode = #tpu.pipeline_mode<synchronous>, transform_indices = @transform_2, window_bounds = array<i64: 3, 1, 128>}, {pipeline_mode = #tpu.pipeline_mode<synchronous>, transform_indices = @transform_3, window_bounds = array<i64: 3, 3, 128>}, {pipeline_mode = #tpu.pipeline_mode<synchronous>, transform_indices = @transform_4, window_bounds = array<i64: 3, 1, 128>}, {pipeline_mode = #tpu.pipeline_mode<synchronous>, transform_indices = @transform_5, window_bounds = array<i64: 16, 128>}, {pipeline_mode = #tpu.pipeline_mode<synchronous>, transform_indices = @transform_6, window_bounds = array<i64: 1, 128>}, {pipeline_mode = #tpu.pipeline_mode<synchronous>, transform_indices = @transform_7, window_bounds = array<i64: 128, 128>}, {pipeline_mode = #tpu.pipeline_mode<synchronous>, transform_indices = @transform_8, window_bounds = array<i64: 1, 128>}, {transform_indices = @transform_9, window_bounds = array<i64: 8, 16, 128>}]} {
    %cst = arith.constant 0.000000e+00 : f32
    %0 = vector.broadcast %cst : f32 to vector<8x2x128xf32>
    %c0 = arith.constant 0 : index
    %c6 = arith.constant 6 : index
    %c0_0 = arith.constant 0 : index
    %1 = vector.load %arg11[%c0, %c6, %c0_0] : memref<8x24x128xf32, #tpu.memory_space<vmem>>, vector<8x2x128xf32>
    tpu.vector_store %arg11[%c0, %c6, %c0_0], %0 {strides = array<i32>} : memref<8x24x128xf32, #tpu.memory_space<vmem>>, vector<8x2x128xf32>,
    %cst_1 = arith.constant 0.000000e+00 : f32
    %2 = vector.broadcast %cst_1 : f32 to vector<8x8x128xf32>
    %c0_2 = arith.constant 0 : index
    %c0_3 = arith.constant 0 : index
    %c0_4 = arith.constant 0 : index
    %3 = vector.load %arg12[%c0_2, %c0_3, %c0_4] : memref<8x24x128xf32, #tpu.memory_space<vmem>>, vector<8x8x128xf32>
    tpu.vector_store %arg12[%c0_2, %c0_3, %c0_4], %2 {strides = array<i32>} : memref<8x24x128xf32, #tpu.memory_space<vmem>>, vector<8x8x128xf32>,
    %c0_5 = arith.constant 0 : index
    %c0_6 = arith.constant 0 : index
    %c0_7 = arith.constant 0 : index
    %4 = vector.load %arg1[%c0_5, %c0_6, %c0_7] : memref<8x16x128xbf16, #tpu.memory_space<vmem>>, vector<8x16x128xbf16>
    %5 = vector.shape_cast %4 : vector<8x16x128xbf16> to vector<128x128xbf16>
    %c0_8 = arith.constant 0 : index
    %c0_9 = arith.constant 0 : index
    %c0_10 = arith.constant 0 : index
    %6 = vector.load %arg2[%c0_8, %c0_9, %c0_10] : memref<3x128x128xbf16, #tpu.memory_space<vmem>>, vector<1x128x128xbf16>
    %7 = vector.shape_cast %6 : vector<1x128x128xbf16> to vector<128x128xbf16>
    %cst_11 = arith.constant dense<0.000000e+00> : vector<128x128xf32>
    %8 = tpu.matmul %5, %7, %cst_11 {dimension_numbers = #tpu.dot_dimension_numbers<[1], [0], [0], [1], [0, 0, 1, 1], [], []>} : vector<128x128xbf16>, vector<128x128xbf16>, vector<128x128xf32> -> vector<128x128xf32>
    %c0_12 = arith.constant 0 : index
    %c0_13 = arith.constant 0 : index
    %c0_14 = arith.constant 0 : index
    %9 = vector.load %arg3[%c0_12, %c0_13, %c0_14] : memref<3x1x128xf32, #tpu.memory_space<vmem>>, vector<1x1x128xf32>
    %10 = vector.shape_cast %9 : vector<1x1x128xf32> to vector<1x128xf32>
    %11 = vector.broadcast %10 : vector<1x128xf32> to vector<128x128xf32>
    %12 = arith.addf %8, %11 : vector<128x128xf32>
    %13 = vector.shape_cast %12 : vector<128x128xf32> to vector<8x16x128xf32>
    %c0_15 = arith.constant 0 : index
    %c8 = arith.constant 8 : index
    %c0_16 = arith.constant 0 : index
    %14 = vector.load %arg11[%c0_15, %c8, %c0_16] : memref<8x24x128xf32, #tpu.memory_space<vmem>>, vector<8x16x128xf32>
    tpu.vector_store %arg11[%c0_15, %c8, %c0_16], %13 {strides = array<i32>} : memref<8x24x128xf32, #tpu.memory_space<vmem>>, vector<8x16x128xf32>,
    %c0_17 = arith.constant 0 : index
    %c0_18 = arith.constant 0 : index
    %c0_19 = arith.constant 0 : index
    %15 = vector.load %arg4[%c0_17, %c0_18, %c0_19] : memref<3x3x128xf32, #tpu.memory_space<vmem>>, vector<1x3x128xf32>
    %16 = vector.shape_cast %15 : vector<1x3x128xf32> to vector<3x128xf32>
    %c0_20 = arith.constant 0 : index
    %c6_21 = arith.constant 6 : index
    %c0_22 = arith.constant 0 : index
    %17 = vector.load %arg11[%c0_20, %c6_21, %c0_22] : memref<8x24x128xf32, #tpu.memory_space<vmem>>, vector<8x16x128xf32>
    %c0_23 = arith.constant 0 : index
    %c7 = arith.constant 7 : index
    %c0_24 = arith.constant 0 : index
    %18 = vector.load %arg11[%c0_23, %c7, %c0_24] : memref<8x24x128xf32, #tpu.memory_space<vmem>>, vector<8x16x128xf32>
    %19 = vector.extract_strided_slice %16 {offsets = [0, 0], sizes = [1, 128], strides = [1, 1]} : vector<3x128xf32> to vector<1x128xf32>
    %20 = vector.shape_cast %19 : vector<1x128xf32> to vector<128xf32>
    %21 = vector.shape_cast %20 : vector<128xf32> to vector<1x1x128xf32>
    %22 = vector.broadcast %21 : vector<1x1x128xf32> to vector<8x16x128xf32>
    %23 = arith.mulf %22, %17 : vector<8x16x128xf32>
    %24 = vector.extract_strided_slice %16 {offsets = [1, 0], sizes = [1, 128], strides = [1, 1]} : vector<3x128xf32> to vector<1x128xf32>
    %25 = vector.shape_cast %24 : vector<1x128xf32> to vector<128xf32>
    %26 = vector.shape_cast %25 : vector<128xf32> to vector<1x1x128xf32>
    %27 = vector.broadcast %26 : vector<1x1x128xf32> to vector<8x16x128xf32>
    %28 = arith.mulf %27, %18 : vector<8x16x128xf32>
    %29 = arith.addf %23, %28 : vector<8x16x128xf32>
    %30 = vector.extract_strided_slice %16 {offsets = [2, 0], sizes = [1, 128], strides = [1, 1]} : vector<3x128xf32> to vector<1x128xf32>
    %31 = vector.shape_cast %30 : vector<1x128xf32> to vector<128xf32>
    %32 = vector.shape_cast %31 : vector<128xf32> to vector<1x1x128xf32>
    %33 = vector.broadcast %32 : vector<1x1x128xf32> to vector<8x16x128xf32>
    %34 = arith.mulf %33, %13 : vector<8x16x128xf32>
    %35 = arith.addf %29, %34 : vector<8x16x128xf32>
    %c0_25 = arith.constant 0 : index
    %c0_26 = arith.constant 0 : index
    %c0_27 = arith.constant 0 : index
    %36 = vector.load %arg5[%c0_25, %c0_26, %c0_27] : memref<3x1x128xf32, #tpu.memory_space<vmem>>, vector<1x1x128xf32>
    %37 = vector.shape_cast %36 : vector<1x1x128xf32> to vector<1x128xf32>
    %38 = vector.shape_cast %37 : vector<1x128xf32> to vector<1x1x128xf32>
    %39 = vector.broadcast %38 : vector<1x1x128xf32> to vector<8x16x128xf32>
    %40 = arith.addf %35, %39 : vector<8x16x128xf32>
    %c0_28 = arith.constant 0 : index
    %c0_29 = arith.constant 0 : index
    %c0_30 = arith.constant 0 : index
    %41 = vector.load %arg13[%c0_28, %c0_29, %c0_30] : memref<8x16x128xf32, #tpu.memory_space<vmem>>, vector<8x16x128xf32>
    tpu.vector_store %arg13[%c0_28, %c0_29, %c0_30], %40 {strides = array<i32>} : memref<8x16x128xf32, #tpu.memory_space<vmem>>, vector<8x16x128xf32>,
    %c1 = arith.constant 1 : index
    %c0_31 = arith.constant 0 : index
    %c0_32 = arith.constant 0 : index
    %42 = vector.load %arg2[%c1, %c0_31, %c0_32] : memref<3x128x128xbf16, #tpu.memory_space<vmem>>, vector<1x128x128xbf16>
    %43 = vector.shape_cast %42 : vector<1x128x128xbf16> to vector<128x128xbf16>
    %cst_33 = arith.constant dense<0.000000e+00> : vector<128x128xf32>
    %44 = tpu.matmul %5, %43, %cst_33 {dimension_numbers = #tpu.dot_dimension_numbers<[1], [0], [0], [1], [0, 0, 1, 1], [], []>} : vector<128x128xbf16>, vector<128x128xbf16>, vector<128x128xf32> -> vector<128x128xf32>
    %c1_34 = arith.constant 1 : index
    %c0_35 = arith.constant 0 : index
    %c0_36 = arith.constant 0 : index
    %45 = vector.load %arg3[%c1_34, %c0_35, %c0_36] : memref<3x1x128xf32, #tpu.memory_space<vmem>>, vector<1x1x128xf32>
    %46 = vector.shape_cast %45 : vector<1x1x128xf32> to vector<1x128xf32>
    %47 = vector.broadcast %46 : vector<1x128xf32> to vector<128x128xf32>
    %48 = arith.addf %44, %47 : vector<128x128xf32>
    %49 = vector.shape_cast %48 : vector<128x128xf32> to vector<8x16x128xf32>
    %c0_37 = arith.constant 0 : index
    %c8_38 = arith.constant 8 : index
    %c0_39 = arith.constant 0 : index
    %50 = vector.load %arg11[%c0_37, %c8_38, %c0_39] : memref<8x24x128xf32, #tpu.memory_space<vmem>>, vector<8x16x128xf32>
    tpu.vector_store %arg11[%c0_37, %c8_38, %c0_39], %49 {strides = array<i32>} : memref<8x24x128xf32, #tpu.memory_space<vmem>>, vector<8x16x128xf32>,
    %c1_40 = arith.constant 1 : index
    %c0_41 = arith.constant 0 : index
    %c0_42 = arith.constant 0 : index
    %51 = vector.load %arg4[%c1_40, %c0_41, %c0_42] : memref<3x3x128xf32, #tpu.memory_space<vmem>>, vector<1x3x128xf32>
    %52 = vector.shape_cast %51 : vector<1x3x128xf32> to vector<3x128xf32>
    %c0_43 = arith.constant 0 : index
    %c6_44 = arith.constant 6 : index
    %c0_45 = arith.constant 0 : index
    %53 = vector.load %arg11[%c0_43, %c6_44, %c0_45] : memref<8x24x128xf32, #tpu.memory_space<vmem>>, vector<8x16x128xf32>
    %c0_46 = arith.constant 0 : index
    %c7_47 = arith.constant 7 : index
    %c0_48 = arith.constant 0 : index
    %54 = vector.load %arg11[%c0_46, %c7_47, %c0_48] : memref<8x24x128xf32, #tpu.memory_space<vmem>>, vector<8x16x128xf32>
    %55 = vector.extract_strided_slice %52 {offsets = [0, 0], sizes = [1, 128], strides = [1, 1]} : vector<3x128xf32> to vector<1x128xf32>
    %56 = vector.shape_cast %55 : vector<1x128xf32> to vector<128xf32>
    %57 = vector.shape_cast %56 : vector<128xf32> to vector<1x1x128xf32>
    %58 = vector.broadcast %57 : vector<1x1x128xf32> to vector<8x16x128xf32>
    %59 = arith.mulf %58, %53 : vector<8x16x128xf32>
    %60 = vector.extract_strided_slice %52 {offsets = [1, 0], sizes = [1, 128], strides = [1, 1]} : vector<3x128xf32> to vector<1x128xf32>
    %61 = vector.shape_cast %60 : vector<1x128xf32> to vector<128xf32>
    %62 = vector.shape_cast %61 : vector<128xf32> to vector<1x1x128xf32>
    %63 = vector.broadcast %62 : vector<1x1x128xf32> to vector<8x16x128xf32>
    %64 = arith.mulf %63, %54 : vector<8x16x128xf32>
    %65 = arith.addf %59, %64 : vector<8x16x128xf32>
    %66 = vector.extract_strided_slice %52 {offsets = [2, 0], sizes = [1, 128], strides = [1, 1]} : vector<3x128xf32> to vector<1x128xf32>
    %67 = vector.shape_cast %66 : vector<1x128xf32> to vector<128xf32>
    %68 = vector.shape_cast %67 : vector<128xf32> to vector<1x1x128xf32>
    %69 = vector.broadcast %68 : vector<1x1x128xf32> to vector<8x16x128xf32>
    %70 = arith.mulf %69, %49 : vector<8x16x128xf32>
    %71 = arith.addf %65, %70 : vector<8x16x128xf32>
    %c1_49 = arith.constant 1 : index
    %c0_50 = arith.constant 0 : index
    %c0_51 = arith.constant 0 : index
    %72 = vector.load %arg5[%c1_49, %c0_50, %c0_51] : memref<3x1x128xf32, #tpu.memory_space<vmem>>, vector<1x1x128xf32>
    %73 = vector.shape_cast %72 : vector<1x1x128xf32> to vector<1x128xf32>
    %74 = vector.shape_cast %73 : vector<1x128xf32> to vector<1x1x128xf32>
    %75 = vector.broadcast %74 : vector<1x1x128xf32> to vector<8x16x128xf32>
    %76 = arith.addf %71, %75 : vector<8x16x128xf32>
    %c2 = arith.constant 2 : index
    %c0_52 = arith.constant 0 : index
    %c0_53 = arith.constant 0 : index
    %77 = vector.load %arg2[%c2, %c0_52, %c0_53] : memref<3x128x128xbf16, #tpu.memory_space<vmem>>, vector<1x128x128xbf16>
    %78 = vector.shape_cast %77 : vector<1x128x128xbf16> to vector<128x128xbf16>
    %cst_54 = arith.constant dense<0.000000e+00> : vector<128x128xf32>
    %79 = tpu.matmul %5, %78, %cst_54 {dimension_numbers = #tpu.dot_dimension_numbers<[1], [0], [0], [1], [0, 0, 1, 1], [], []>} : vector<128x128xbf16>, vector<128x128xbf16>, vector<128x128xf32> -> vector<128x128xf32>
    %c2_55 = arith.constant 2 : index
    %c0_56 = arith.constant 0 : index
    %c0_57 = arith.constant 0 : index
    %80 = vector.load %arg3[%c2_55, %c0_56, %c0_57] : memref<3x1x128xf32, #tpu.memory_space<vmem>>, vector<1x1x128xf32>
    %81 = vector.shape_cast %80 : vector<1x1x128xf32> to vector<1x128xf32>
    %82 = vector.broadcast %81 : vector<1x128xf32> to vector<128x128xf32>
    %83 = arith.addf %79, %82 : vector<128x128xf32>
    %84 = vector.shape_cast %83 : vector<128x128xf32> to vector<8x16x128xf32>
    %c0_58 = arith.constant 0 : index
    %c8_59 = arith.constant 8 : index
    %c0_60 = arith.constant 0 : index
    %85 = vector.load %arg11[%c0_58, %c8_59, %c0_60] : memref<8x24x128xf32, #tpu.memory_space<vmem>>, vector<8x16x128xf32>
    tpu.vector_store %arg11[%c0_58, %c8_59, %c0_60], %84 {strides = array<i32>} : memref<8x24x128xf32, #tpu.memory_space<vmem>>, vector<8x16x128xf32>,
    %c2_61 = arith.constant 2 : index
    %c0_62 = arith.constant 0 : index
    %c0_63 = arith.constant 0 : index
    %86 = vector.load %arg4[%c2_61, %c0_62, %c0_63] : memref<3x3x128xf32, #tpu.memory_space<vmem>>, vector<1x3x128xf32>
    %87 = vector.shape_cast %86 : vector<1x3x128xf32> to vector<3x128xf32>
    %c0_64 = arith.constant 0 : index
    %c6_65 = arith.constant 6 : index
    %c0_66 = arith.constant 0 : index
    %88 = vector.load %arg11[%c0_64, %c6_65, %c0_66] : memref<8x24x128xf32, #tpu.memory_space<vmem>>, vector<8x16x128xf32>
    %c0_67 = arith.constant 0 : index
    %c7_68 = arith.constant 7 : index
    %c0_69 = arith.constant 0 : index
    %89 = vector.load %arg11[%c0_67, %c7_68, %c0_69] : memref<8x24x128xf32, #tpu.memory_space<vmem>>, vector<8x16x128xf32>
    %90 = vector.extract_strided_slice %87 {offsets = [0, 0], sizes = [1, 128], strides = [1, 1]} : vector<3x128xf32> to vector<1x128xf32>
    %91 = vector.shape_cast %90 : vector<1x128xf32> to vector<128xf32>
    %92 = vector.shape_cast %91 : vector<128xf32> to vector<1x1x128xf32>
    %93 = vector.broadcast %92 : vector<1x1x128xf32> to vector<8x16x128xf32>
    %94 = arith.mulf %93, %88 : vector<8x16x128xf32>
    %95 = vector.extract_strided_slice %87 {offsets = [1, 0], sizes = [1, 128], strides = [1, 1]} : vector<3x128xf32> to vector<1x128xf32>
    %96 = vector.shape_cast %95 : vector<1x128xf32> to vector<128xf32>
    %97 = vector.shape_cast %96 : vector<128xf32> to vector<1x1x128xf32>
    %98 = vector.broadcast %97 : vector<1x1x128xf32> to vector<8x16x128xf32>
    %99 = arith.mulf %98, %89 : vector<8x16x128xf32>
    %100 = arith.addf %94, %99 : vector<8x16x128xf32>
    %101 = vector.extract_strided_slice %87 {offsets = [2, 0], sizes = [1, 128], strides = [1, 1]} : vector<3x128xf32> to vector<1x128xf32>
    %102 = vector.shape_cast %101 : vector<1x128xf32> to vector<128xf32>
    %103 = vector.shape_cast %102 : vector<128xf32> to vector<1x1x128xf32>
    %104 = vector.broadcast %103 : vector<1x1x128xf32> to vector<8x16x128xf32>
    %105 = arith.mulf %104, %84 : vector<8x16x128xf32>
    %106 = arith.addf %100, %105 : vector<8x16x128xf32>
    %c2_70 = arith.constant 2 : index
    %c0_71 = arith.constant 0 : index
    %c0_72 = arith.constant 0 : index
    %107 = vector.load %arg5[%c2_70, %c0_71, %c0_72] : memref<3x1x128xf32, #tpu.memory_space<vmem>>, vector<1x1x128xf32>
    %108 = vector.shape_cast %107 : vector<1x1x128xf32> to vector<1x128xf32>
    %109 = vector.shape_cast %108 : vector<1x128xf32> to vector<1x1x128xf32>
    %110 = vector.broadcast %109 : vector<1x1x128xf32> to vector<8x16x128xf32>
    %111 = arith.addf %106, %110 : vector<8x16x128xf32>
    %112 = arith.mulf %111, %76 : vector<8x16x128xf32>
    %c0_73 = arith.constant 0 : index
    %c8_74 = arith.constant 8 : index
    %c0_75 = arith.constant 0 : index
    %113 = vector.load %arg12[%c0_73, %c8_74, %c0_75] : memref<8x24x128xf32, #tpu.memory_space<vmem>>, vector<8x16x128xf32>
    tpu.vector_store %arg12[%c0_73, %c8_74, %c0_75], %112 {strides = array<i32>} : memref<8x24x128xf32, #tpu.memory_space<vmem>>, vector<8x16x128xf32>,
    %c0_76 = arith.constant 0 : index
    %c0_77 = arith.constant 0 : index
    %114 = vector.load %arg7[%c0_76, %c0_77] : memref<1x128xf32, #tpu.memory_space<vmem>>, vector<1x128xf32>
    %115 = vector.shape_cast %114 : vector<1x128xf32> to vector<128xf32>
    %cst_78 = arith.constant 0.000000e+00 : f32
    %116 = vector.broadcast %cst_78 : f32 to vector<8x8x128xf32>
    %c0_i32 = arith.constant 0 : i32
    %c8_i32 = arith.constant 8 : i32
    %117 = arith.muli %c0_i32, %c8_i32 : i32
    %118 = tpu.assume_multiple %117, 8 : i32
    %119 = arith.index_cast %118 : i32 to index
    %c0_79 = arith.constant 0 : index
    %120 = vector.load %arg6[%119, %c0_79] : memref<16x128xf32, #tpu.memory_space<vmem>>, vector<8x128xf32>
    %c8_i32_80 = arith.constant 8 : i32
    %121 = arith.subi %c8_i32_80, %118 : i32
    %c0_i32_81 = arith.constant 0 : i32
    %122 = arith.subi %121, %c0_i32_81 : i32
    %c0_82 = arith.constant 0 : index
    %123 = arith.index_cast %122 : i32 to index
    %c0_83 = arith.constant 0 : index
    %124 = vector.load %arg12[%c0_82, %123, %c0_83] : memref<8x24x128xf32, #tpu.memory_space<vmem>>, vector<8x8x128xf32>
    %125 = vector.extract_strided_slice %120 {offsets = [0, 0], sizes = [1, 128], strides = [1, 1]} : vector<8x128xf32> to vector<1x128xf32>
    %126 = vector.shape_cast %125 : vector<1x128xf32> to vector<128xf32>
    %127 = vector.shape_cast %126 : vector<128xf32> to vector<1x1x128xf32>
    %128 = vector.broadcast %127 : vector<1x1x128xf32> to vector<8x8x128xf32>
    %129 = arith.mulf %128, %124 : vector<8x8x128xf32>
    %130 = arith.addf %116, %129 : vector<8x8x128xf32>
    %c8_i32_84 = arith.constant 8 : i32
    %131 = arith.subi %c8_i32_84, %118 : i32
    %c1_i32 = arith.constant 1 : i32
    %132 = arith.subi %131, %c1_i32 : i32
    %c0_85 = arith.constant 0 : index
    %133 = arith.index_cast %132 : i32 to index
    %c0_86 = arith.constant 0 : index
    %134 = vector.load %arg12[%c0_85, %133, %c0_86] : memref<8x24x128xf32, #tpu.memory_space<vmem>>, vector<8x8x128xf32>
    %135 = vector.extract_strided_slice %120 {offsets = [1, 0], sizes = [1, 128], strides = [1, 1]} : vector<8x128xf32> to vector<1x128xf32>
    %136 = vector.shape_cast %135 : vector<1x128xf32> to vector<128xf32>
    %137 = vector.shape_cast %136 : vector<128xf32> to vector<1x1x128xf32>
    %138 = vector.broadcast %137 : vector<1x1x128xf32> to vector<8x8x128xf32>
    %139 = arith.mulf %138, %134 : vector<8x8x128xf32>
    %140 = arith.addf %130, %139 : vector<8x8x128xf32>
    %c8_i32_87 = arith.constant 8 : i32
    %141 = arith.subi %c8_i32_87, %118 : i32
    %c2_i32 = arith.constant 2 : i32
    %142 = arith.subi %141, %c2_i32 : i32
    %c0_88 = arith.constant 0 : index
    %143 = arith.index_cast %142 : i32 to index
    %c0_89 = arith.constant 0 : index
    %144 = vector.load %arg12[%c0_88, %143, %c0_89] : memref<8x24x128xf32, #tpu.memory_space<vmem>>, vector<8x8x128xf32>
    %145 = vector.extract_strided_slice %120 {offsets = [2, 0], sizes = [1, 128], strides = [1, 1]} : vector<8x128xf32> to vector<1x128xf32>
    %146 = vector.shape_cast %145 : vector<1x128xf32> to vector<128xf32>
    %147 = vector.shape_cast %146 : vector<128xf32> to vector<1x1x128xf32>
    %148 = vector.broadcast %147 : vector<1x1x128xf32> to vector<8x8x128xf32>
    %149 = arith.mulf %148, %144 : vector<8x8x128xf32>
    %150 = arith.addf %140, %149 : vector<8x8x128xf32>
    %c8_i32_90 = arith.constant 8 : i32
    %151 = arith.subi %c8_i32_90, %118 : i32
    %c3_i32 = arith.constant 3 : i32
    %152 = arith.subi %151, %c3_i32 : i32
    %c0_91 = arith.constant 0 : index
    %153 = arith.index_cast %152 : i32 to index
    %c0_92 = arith.constant 0 : index
    %154 = vector.load %arg12[%c0_91, %153, %c0_92] : memref<8x24x128xf32, #tpu.memory_space<vmem>>, vector<8x8x128xf32>
    %155 = vector.extract_strided_slice %120 {offsets = [3, 0], sizes = [1, 128], strides = [1, 1]} : vector<8x128xf32> to vector<1x128xf32>
    %156 = vector.shape_cast %155 : vector<1x128xf32> to vector<128xf32>
    %157 = vector.shape_cast %156 : vector<128xf32> to vector<1x1x128xf32>
    %158 = vector.broadcast %157 : vector<1x1x128xf32> to vector<8x8x128xf32>
    %159 = arith.mulf %158, %154 : vector<8x8x128xf32>
    %160 = arith.addf %150, %159 : vector<8x8x128xf32>
    %c8_i32_93 = arith.constant 8 : i32
    %161 = arith.subi %c8_i32_93, %118 : i32
    %c4_i32 = arith.constant 4 : i32
    %162 = arith.subi %161, %c4_i32 : i32
    %c0_94 = arith.constant 0 : index
    %163 = arith.index_cast %162 : i32 to index
    %c0_95 = arith.constant 0 : index
    %164 = vector.load %arg12[%c0_94, %163, %c0_95] : memref<8x24x128xf32, #tpu.memory_space<vmem>>, vector<8x8x128xf32>
    %165 = vector.extract_strided_slice %120 {offsets = [4, 0], sizes = [1, 128], strides = [1, 1]} : vector<8x128xf32> to vector<1x128xf32>
    %166 = vector.shape_cast %165 : vector<1x128xf32> to vector<128xf32>
    %167 = vector.shape_cast %166 : vector<128xf32> to vector<1x1x128xf32>
    %168 = vector.broadcast %167 : vector<1x1x128xf32> to vector<8x8x128xf32>
    %169 = arith.mulf %168, %164 : vector<8x8x128xf32>
    %170 = arith.addf %160, %169 : vector<8x8x128xf32>
    %c8_i32_96 = arith.constant 8 : i32
    %171 = arith.subi %c8_i32_96, %118 : i32
    %c5_i32 = arith.constant 5 : i32
    %172 = arith.subi %171, %c5_i32 : i32
    %c0_97 = arith.constant 0 : index
    %173 = arith.index_cast %172 : i32 to index
    %c0_98 = arith.constant 0 : index
    %174 = vector.load %arg12[%c0_97, %173, %c0_98] : memref<8x24x128xf32, #tpu.memory_space<vmem>>, vector<8x8x128xf32>
    %175 = vector.extract_strided_slice %120 {offsets = [5, 0], sizes = [1, 128], strides = [1, 1]} : vector<8x128xf32> to vector<1x128xf32>
    %176 = vector.shape_cast %175 : vector<1x128xf32> to vector<128xf32>
    %177 = vector.shape_cast %176 : vector<128xf32> to vector<1x1x128xf32>
    %178 = vector.broadcast %177 : vector<1x1x128xf32> to vector<8x8x128xf32>
    %179 = arith.mulf %178, %174 : vector<8x8x128xf32>
    %180 = arith.addf %170, %179 : vector<8x8x128xf32>
    %c8_i32_99 = arith.constant 8 : i32
    %181 = arith.subi %c8_i32_99, %118 : i32
    %c6_i32 = arith.constant 6 : i32
    %182 = arith.subi %181, %c6_i32 : i32
    %c0_100 = arith.constant 0 : index
    %183 = arith.index_cast %182 : i32 to index
    %c0_101 = arith.constant 0 : index
    %184 = vector.load %arg12[%c0_100, %183, %c0_101] : memref<8x24x128xf32, #tpu.memory_space<vmem>>, vector<8x8x128xf32>
    %185 = vector.extract_strided_slice %120 {offsets = [6, 0], sizes = [1, 128], strides = [1, 1]} : vector<8x128xf32> to vector<1x128xf32>
    %186 = vector.shape_cast %185 : vector<1x128xf32> to vector<128xf32>
    %187 = vector.shape_cast %186 : vector<128xf32> to vector<1x1x128xf32>
    %188 = vector.broadcast %187 : vector<1x1x128xf32> to vector<8x8x128xf32>
    %189 = arith.mulf %188, %184 : vector<8x8x128xf32>
    %190 = arith.addf %180, %189 : vector<8x8x128xf32>
    %c8_i32_102 = arith.constant 8 : i32
    %191 = arith.subi %c8_i32_102, %118 : i32
    %c7_i32 = arith.constant 7 : i32
    %192 = arith.subi %191, %c7_i32 : i32
    %c0_103 = arith.constant 0 : index
    %193 = arith.index_cast %192 : i32 to index
    %c0_104 = arith.constant 0 : index
    %194 = vector.load %arg12[%c0_103, %193, %c0_104] : memref<8x24x128xf32, #tpu.memory_space<vmem>>, vector<8x8x128xf32>
    %195 = vector.extract_strided_slice %120 {offsets = [7, 0], sizes = [1, 128], strides = [1, 1]} : vector<8x128xf32> to vector<1x128xf32>
    %196 = vector.shape_cast %195 : vector<1x128xf32> to vector<128xf32>
    %197 = vector.shape_cast %196 : vector<128xf32> to vector<1x1x128xf32>
    %198 = vector.broadcast %197 : vector<1x1x128xf32> to vector<8x8x128xf32>
    %199 = arith.mulf %198, %194 : vector<8x8x128xf32>
    %200 = arith.addf %190, %199 : vector<8x8x128xf32>
    %c1_i32_105 = arith.constant 1 : i32
    %c0_106 = arith.constant 0 : index
    %c8_107 = arith.constant 8 : index
    %c0_108 = arith.constant 0 : index
    %201 = vector.load %arg12[%c0_106, %c8_107, %c0_108] : memref<8x24x128xf32, #tpu.memory_space<vmem>>, vector<8x8x128xf32>
    %c0_109 = arith.constant 0 : index
    %c0_110 = arith.constant 0 : index
    %c0_111 = arith.constant 0 : index
    %202 = vector.load %arg13[%c0_109, %c0_110, %c0_111] : memref<8x16x128xf32, #tpu.memory_space<vmem>>, vector<8x8x128xf32>
    %203 = vector.shape_cast %115 : vector<128xf32> to vector<1x1x128xf32>
    %204 = vector.broadcast %203 : vector<1x1x128xf32> to vector<8x8x128xf32>
    %205 = arith.mulf %201, %204 : vector<8x8x128xf32>
    %206 = arith.addf %200, %205 : vector<8x8x128xf32>
    %207 = arith.mulf %206, %202 : vector<8x8x128xf32>
    %208 = arith.truncf %207 : vector<8x8x128xf32> to vector<8x8x128xbf16>
    %c0_112 = arith.constant 0 : index
    %c0_113 = arith.constant 0 : index
    %c0_114 = arith.constant 0 : index
    %209 = vector.load %arg14[%c0_112, %c0_113, %c0_114] : memref<8x16x128xbf16, #tpu.memory_space<vmem>>, vector<8x8x128xbf16>
    tpu.vector_store %arg14[%c0_112, %c0_113, %c0_114], %208 {strides = array<i32>} : memref<8x16x128xbf16, #tpu.memory_space<vmem>>, vector<8x8x128xbf16>,
    %cst_115 = arith.constant 0.000000e+00 : f32
    %210 = vector.broadcast %cst_115 : f32 to vector<8x8x128xf32>
    %c0_i32_116 = arith.constant 0 : i32
    %c2_i32_117 = arith.constant 2 : i32
    %211 = arith.addi %c0_i32_116, %c2_i32_117 : i32
    %c1_i32_118 = arith.constant 1 : i32
    %212 = scf.for %arg15 = %c0_i32_116 to %211 step %c1_i32_118 iter_args(%arg16 = %210) -> (vector<8x8x128xf32>)  : i32 {
      %c8_i32_139 = arith.constant 8 : i32
      %231 = arith.muli %arg15, %c8_i32_139 : i32
      %232 = tpu.assume_multiple %231, 8 : i32
      %233 = arith.index_cast %232 : i32 to index
      %c0_140 = arith.constant 0 : index
      %234 = vector.load %arg6[%233, %c0_140] : memref<16x128xf32, #tpu.memory_space<vmem>>, vector<8x128xf32>
      %c16_i32 = arith.constant 16 : i32
      %235 = arith.subi %c16_i32, %232 : i32
      %c0_i32_141 = arith.constant 0 : i32
      %236 = arith.subi %235, %c0_i32_141 : i32
      %c0_142 = arith.constant 0 : index
      %237 = arith.index_cast %236 : i32 to index
      %c0_143 = arith.constant 0 : index
      %238 = vector.load %arg12[%c0_142, %237, %c0_143] : memref<8x24x128xf32, #tpu.memory_space<vmem>>, vector<8x8x128xf32>
      %239 = vector.extract_strided_slice %234 {offsets = [0, 0], sizes = [1, 128], strides = [1, 1]} : vector<8x128xf32> to vector<1x128xf32>
      %240 = vector.shape_cast %239 : vector<1x128xf32> to vector<128xf32>
      %241 = vector.shape_cast %240 : vector<128xf32> to vector<1x1x128xf32>
      %242 = vector.broadcast %241 : vector<1x1x128xf32> to vector<8x8x128xf32>
      %243 = arith.mulf %242, %238 : vector<8x8x128xf32>
      %244 = arith.addf %arg16, %243 : vector<8x8x128xf32>
      %c16_i32_144 = arith.constant 16 : i32
      %245 = arith.subi %c16_i32_144, %232 : i32
      %c1_i32_145 = arith.constant 1 : i32
      %246 = arith.subi %245, %c1_i32_145 : i32
      %c0_146 = arith.constant 0 : index
      %247 = arith.index_cast %246 : i32 to index
      %c0_147 = arith.constant 0 : index
      %248 = vector.load %arg12[%c0_146, %247, %c0_147] : memref<8x24x128xf32, #tpu.memory_space<vmem>>, vector<8x8x128xf32>
      %249 = vector.extract_strided_slice %234 {offsets = [1, 0], sizes = [1, 128], strides = [1, 1]} : vector<8x128xf32> to vector<1x128xf32>
      %250 = vector.shape_cast %249 : vector<1x128xf32> to vector<128xf32>
      %251 = vector.shape_cast %250 : vector<128xf32> to vector<1x1x128xf32>
      %252 = vector.broadcast %251 : vector<1x1x128xf32> to vector<8x8x128xf32>
      %253 = arith.mulf %252, %248 : vector<8x8x128xf32>
      %254 = arith.addf %244, %253 : vector<8x8x128xf32>
      %c16_i32_148 = arith.constant 16 : i32
      %255 = arith.subi %c16_i32_148, %232 : i32
      %c2_i32_149 = arith.constant 2 : i32
      %256 = arith.subi %255, %c2_i32_149 : i32
      %c0_150 = arith.constant 0 : index
      %257 = arith.index_cast %256 : i32 to index
      %c0_151 = arith.constant 0 : index
      %258 = vector.load %arg12[%c0_150, %257, %c0_151] : memref<8x24x128xf32, #tpu.memory_space<vmem>>, vector<8x8x128xf32>
      %259 = vector.extract_strided_slice %234 {offsets = [2, 0], sizes = [1, 128], strides = [1, 1]} : vector<8x128xf32> to vector<1x128xf32>
      %260 = vector.shape_cast %259 : vector<1x128xf32> to vector<128xf32>
      %261 = vector.shape_cast %260 : vector<128xf32> to vector<1x1x128xf32>
      %262 = vector.broadcast %261 : vector<1x1x128xf32> to vector<8x8x128xf32>
      %263 = arith.mulf %262, %258 : vector<8x8x128xf32>
      %264 = arith.addf %254, %263 : vector<8x8x128xf32>
      %c16_i32_152 = arith.constant 16 : i32
      %265 = arith.subi %c16_i32_152, %232 : i32
      %c3_i32_153 = arith.constant 3 : i32
      %266 = arith.subi %265, %c3_i32_153 : i32
      %c0_154 = arith.constant 0 : index
      %267 = arith.index_cast %266 : i32 to index
      %c0_155 = arith.constant 0 : index
      %268 = vector.load %arg12[%c0_154, %267, %c0_155] : memref<8x24x128xf32, #tpu.memory_space<vmem>>, vector<8x8x128xf32>
      %269 = vector.extract_strided_slice %234 {offsets = [3, 0], sizes = [1, 128], strides = [1, 1]} : vector<8x128xf32> to vector<1x128xf32>
      %270 = vector.shape_cast %269 : vector<1x128xf32> to vector<128xf32>
      %271 = vector.shape_cast %270 : vector<128xf32> to vector<1x1x128xf32>
      %272 = vector.broadcast %271 : vector<1x1x128xf32> to vector<8x8x128xf32>
      %273 = arith.mulf %272, %268 : vector<8x8x128xf32>
      %274 = arith.addf %264, %273 : vector<8x8x128xf32>
      %c16_i32_156 = arith.constant 16 : i32
      %275 = arith.subi %c16_i32_156, %232 : i32
      %c4_i32_157 = arith.constant 4 : i32
      %276 = arith.subi %275, %c4_i32_157 : i32
      %c0_158 = arith.constant 0 : index
      %277 = arith.index_cast %276 : i32 to index
      %c0_159 = arith.constant 0 : index
      %278 = vector.load %arg12[%c0_158, %277, %c0_159] : memref<8x24x128xf32, #tpu.memory_space<vmem>>, vector<8x8x128xf32>
      %279 = vector.extract_strided_slice %234 {offsets = [4, 0], sizes = [1, 128], strides = [1, 1]} : vector<8x128xf32> to vector<1x128xf32>
      %280 = vector.shape_cast %279 : vector<1x128xf32> to vector<128xf32>
      %281 = vector.shape_cast %280 : vector<128xf32> to vector<1x1x128xf32>
      %282 = vector.broadcast %281 : vector<1x1x128xf32> to vector<8x8x128xf32>
      %283 = arith.mulf %282, %278 : vector<8x8x128xf32>
      %284 = arith.addf %274, %283 : vector<8x8x128xf32>
      %c16_i32_160 = arith.constant 16 : i32
      %285 = arith.subi %c16_i32_160, %232 : i32
      %c5_i32_161 = arith.constant 5 : i32
      %286 = arith.subi %285, %c5_i32_161 : i32
      %c0_162 = arith.constant 0 : index
      %287 = arith.index_cast %286 : i32 to index
      %c0_163 = arith.constant 0 : index
      %288 = vector.load %arg12[%c0_162, %287, %c0_163] : memref<8x24x128xf32, #tpu.memory_space<vmem>>, vector<8x8x128xf32>
      %289 = vector.extract_strided_slice %234 {offsets = [5, 0], sizes = [1, 128], strides = [1, 1]} : vector<8x128xf32> to vector<1x128xf32>
      %290 = vector.shape_cast %289 : vector<1x128xf32> to vector<128xf32>
      %291 = vector.shape_cast %290 : vector<128xf32> to vector<1x1x128xf32>
      %292 = vector.broadcast %291 : vector<1x1x128xf32> to vector<8x8x128xf32>
      %293 = arith.mulf %292, %288 : vector<8x8x128xf32>
      %294 = arith.addf %284, %293 : vector<8x8x128xf32>
      %c16_i32_164 = arith.constant 16 : i32
      %295 = arith.subi %c16_i32_164, %232 : i32
      %c6_i32_165 = arith.constant 6 : i32
      %296 = arith.subi %295, %c6_i32_165 : i32
      %c0_166 = arith.constant 0 : index
      %297 = arith.index_cast %296 : i32 to index
      %c0_167 = arith.constant 0 : index
      %298 = vector.load %arg12[%c0_166, %297, %c0_167] : memref<8x24x128xf32, #tpu.memory_space<vmem>>, vector<8x8x128xf32>
      %299 = vector.extract_strided_slice %234 {offsets = [6, 0], sizes = [1, 128], strides = [1, 1]} : vector<8x128xf32> to vector<1x128xf32>
      %300 = vector.shape_cast %299 : vector<1x128xf32> to vector<128xf32>
      %301 = vector.shape_cast %300 : vector<128xf32> to vector<1x1x128xf32>
      %302 = vector.broadcast %301 : vector<1x1x128xf32> to vector<8x8x128xf32>
      %303 = arith.mulf %302, %298 : vector<8x8x128xf32>
      %304 = arith.addf %294, %303 : vector<8x8x128xf32>
      %c16_i32_168 = arith.constant 16 : i32
      %305 = arith.subi %c16_i32_168, %232 : i32
      %c7_i32_169 = arith.constant 7 : i32
      %306 = arith.subi %305, %c7_i32_169 : i32
      %c0_170 = arith.constant 0 : index
      %307 = arith.index_cast %306 : i32 to index
      %c0_171 = arith.constant 0 : index
      %308 = vector.load %arg12[%c0_170, %307, %c0_171] : memref<8x24x128xf32, #tpu.memory_space<vmem>>, vector<8x8x128xf32>
      %309 = vector.extract_strided_slice %234 {offsets = [7, 0], sizes = [1, 128], strides = [1, 1]} : vector<8x128xf32> to vector<1x128xf32>
      %310 = vector.shape_cast %309 : vector<1x128xf32> to vector<128xf32>
      %311 = vector.shape_cast %310 : vector<128xf32> to vector<1x1x128xf32>
      %312 = vector.broadcast %311 : vector<1x1x128xf32> to vector<8x8x128xf32>
      %313 = arith.mulf %312, %308 : vector<8x8x128xf32>
      %314 = arith.addf %304, %313 : vector<8x8x128xf32>
      scf.yield %314 : vector<8x8x128xf32>
    }
    %c2_i32_119 = arith.constant 2 : i32
    %c0_120 = arith.constant 0 : index
    %c16 = arith.constant 16 : index
    %c0_121 = arith.constant 0 : index
    %213 = vector.load %arg12[%c0_120, %c16, %c0_121] : memref<8x24x128xf32, #tpu.memory_space<vmem>>, vector<8x8x128xf32>
    %c0_122 = arith.constant 0 : index
    %c8_123 = arith.constant 8 : index
    %c0_124 = arith.constant 0 : index
    %214 = vector.load %arg13[%c0_122, %c8_123, %c0_124] : memref<8x16x128xf32, #tpu.memory_space<vmem>>, vector<8x8x128xf32>
    %215 = vector.shape_cast %115 : vector<128xf32> to vector<1x1x128xf32>
    %216 = vector.broadcast %215 : vector<1x1x128xf32> to vector<8x8x128xf32>
    %217 = arith.mulf %213, %216 : vector<8x8x128xf32>
    %218 = arith.addf %212, %217 : vector<8x8x128xf32>
    %219 = arith.mulf %218, %214 : vector<8x8x128xf32>
    %220 = arith.truncf %219 : vector<8x8x128xf32> to vector<8x8x128xbf16>
    %c0_125 = arith.constant 0 : index
    %c8_126 = arith.constant 8 : index
    %c0_127 = arith.constant 0 : index
    %221 = vector.load %arg14[%c0_125, %c8_126, %c0_127] : memref<8x16x128xbf16, #tpu.memory_space<vmem>>, vector<8x8x128xbf16>
    tpu.vector_store %arg14[%c0_125, %c8_126, %c0_127], %220 {strides = array<i32>} : memref<8x16x128xbf16, #tpu.memory_space<vmem>>, vector<8x8x128xbf16>,
    %c0_128 = arith.constant 0 : index
    %c0_129 = arith.constant 0 : index
    %c0_130 = arith.constant 0 : index
    %222 = vector.load %arg14[%c0_128, %c0_129, %c0_130] : memref<8x16x128xbf16, #tpu.memory_space<vmem>>, vector<8x16x128xbf16>
    %223 = vector.shape_cast %222 : vector<8x16x128xbf16> to vector<128x128xbf16>
    %c0_131 = arith.constant 0 : index
    %c0_132 = arith.constant 0 : index
    %224 = vector.load %arg8[%c0_131, %c0_132] : memref<128x128xbf16, #tpu.memory_space<vmem>>, vector<128x128xbf16>
    %cst_133 = arith.constant dense<0.000000e+00> : vector<128x128xf32>
    %225 = tpu.matmul %223, %224, %cst_133 {dimension_numbers = #tpu.dot_dimension_numbers<[1], [0], [0], [1], [0, 0, 1, 1], [], []>} : vector<128x128xbf16>, vector<128x128xbf16>, vector<128x128xf32> -> vector<128x128xf32>
    %c0_134 = arith.constant 0 : index
    %c0_135 = arith.constant 0 : index
    %226 = vector.load %arg9[%c0_134, %c0_135] : memref<1x128xf32, #tpu.memory_space<vmem>>, vector<1x128xf32>
    %227 = vector.broadcast %226 : vector<1x128xf32> to vector<128x128xf32>
    %228 = arith.addf %225, %227 : vector<128x128xf32>
    %229 = vector.shape_cast %228 : vector<128x128xf32> to vector<8x16x128xf32>
    %c0_136 = arith.constant 0 : index
    %c0_137 = arith.constant 0 : index
    %c0_138 = arith.constant 0 : index
    %230 = vector.load %arg10[%c0_136, %c0_137, %c0_138] : memref<8x16x128xf32, #tpu.memory_space<vmem>>, vector<8x16x128xf32>
    tpu.vector_store %arg10[%c0_136, %c0_137, %c0_138], %229 {strides = array<i32>} : memref<8x16x128xf32, #tpu.memory_space<vmem>>, vector<8x16x128xf32>,
    return
  }
  func.func @transform_0(%arg0: i32) -> (i32, i32, i32) {
    %c0_i32 = arith.constant 0 : i32
    %c0_i32_0 = arith.constant 0 : i32
    %c0_i32_1 = arith.constant 0 : i32
    return %arg0, %c0_i32, %c0_i32_0 : i32, i32, i32
  }
  func.func @transform_1(%arg0: i32) -> (i32, i32, i32) {
    %c0_i32 = arith.constant 0 : i32
    %c0_i32_0 = arith.constant 0 : i32
    %c0_i32_1 = arith.constant 0 : i32
    %c0_i32_2 = arith.constant 0 : i32
    return %c0_i32, %c0_i32_0, %c0_i32_1 : i32, i32, i32
  }
  func.func @transform_2(%arg0: i32) -> (i32, i32, i32) {
    %c0_i32 = arith.constant 0 : i32
    %c0_i32_0 = arith.constant 0 : i32
    %c0_i32_1 = arith.constant 0 : i32
    %c0_i32_2 = arith.constant 0 : i32
    return %c0_i32, %c0_i32_0, %c0_i32_1 : i32, i32, i32
  }
  func.func @transform_3(%arg0: i32) -> (i32, i32, i32) {
    %c0_i32 = arith.constant 0 : i32
    %c0_i32_0 = arith.constant 0 : i32
    %c0_i32_1 = arith.constant 0 : i32
    %c0_i32_2 = arith.constant 0 : i32
    return %c0_i32, %c0_i32_0, %c0_i32_1 : i32, i32, i32
  }
  func.func @transform_4(%arg0: i32) -> (i32, i32, i32) {
    %c0_i32 = arith.constant 0 : i32
    %c0_i32_0 = arith.constant 0 : i32
    %c0_i32_1 = arith.constant 0 : i32
    %c0_i32_2 = arith.constant 0 : i32
    return %c0_i32, %c0_i32_0, %c0_i32_1 : i32, i32, i32
  }
  func.func @transform_5(%arg0: i32) -> (i32, i32) {
    %c0_i32 = arith.constant 0 : i32
    %c0_i32_0 = arith.constant 0 : i32
    %c0_i32_1 = arith.constant 0 : i32
    return %c0_i32, %c0_i32_0 : i32, i32
  }
  func.func @transform_6(%arg0: i32) -> (i32, i32) {
    %c0_i32 = arith.constant 0 : i32
    %c0_i32_0 = arith.constant 0 : i32
    %c0_i32_1 = arith.constant 0 : i32
    return %c0_i32, %c0_i32_0 : i32, i32
  }
  func.func @transform_7(%arg0: i32) -> (i32, i32) {
    %c0_i32 = arith.constant 0 : i32
    %c0_i32_0 = arith.constant 0 : i32
    %c0_i32_1 = arith.constant 0 : i32
    return %c0_i32, %c0_i32_0 : i32, i32
  }
  func.func @transform_8(%arg0: i32) -> (i32, i32) {
    %c0_i32 = arith.constant 0 : i32
    %c0_i32_0 = arith.constant 0 : i32
    %c0_i32_1 = arith.constant 0 : i32
    return %c0_i32, %c0_i32_0 : i32, i32
  }
  func.func @transform_9(%arg0: i32) -> (i32, i32, i32) {
    %c0_i32 = arith.constant 0 : i32
    %c0_i32_0 = arith.constant 0 : i32
    %c0_i32_1 = arith.constant 0 : i32
    return %arg0, %c0_i32, %c0_i32_0 : i32, i32, i32
  }
}

</mosaic_0001>

<llo_original>
// kernel: tpu_custom_call.1
$region0: #{tpu_custom_call.1}
  #allocation0 [shape = 'u32[]', space=smem, size = 0x4, offset = 0x4, fixed_abs, tag = 'smem constant byte address 0x4 - core index']
  #allocation1 [shape = 'u32[144,128]{1,0:T(1,128)}', space=vmem, size = 0x12000, scoped, tag = 'internal scratch']
  #allocation2 [shape = 'f32[8,24,128]{2,1,0:T(8,128)}', space=vmem, size = 0x18000, scoped, tag = 'scratch operand']
  #allocation3 [shape = 'f32[8,24,128]{2,1,0:T(8,128)}', space=vmem, size = 0x18000, scoped, tag = 'scratch operand']
  #allocation4 [shape = 'f32[8,16,128]{2,1,0:T(8,128)}', space=vmem, size = 0x10000, scoped, tag = 'scratch operand']
  #allocation5 [shape = 'bf16[8,16,128]{2,1,0:T(16,128)(2,1)}', space=vmem, size = 0x8000, scoped, tag = 'scratch operand']
  %s0 = inlined_call_operand.hbm [shape: bf16[16,16,128], index: 0, kind: input, shape index: {}]
  %s1 = inlined_call_operand.hbm [shape: bf16[3,128,128], index: 1, kind: input, shape index: {}]
  %s2 = inlined_call_operand.hbm [shape: f32[3,1,128], index: 2, kind: input, shape index: {}]
  %s3 = inlined_call_operand.hbm [shape: f32[3,3,128], index: 3, kind: input, shape index: {}]
  %s4 = inlined_call_operand.hbm [shape: f32[3,1,128], index: 4, kind: input, shape index: {}]
  %s5 = inlined_call_operand.vmem [shape: f32[16,128], index: 5, kind: input, shape index: {}]
  %s6 = inlined_call_operand.vmem [shape: f32[1,128], index: 6, kind: input, shape index: {}]
  %s7 = inlined_call_operand.hbm [shape: bf16[128,128], index: 7, kind: input, shape index: {}]
  %s8 = inlined_call_operand.vmem [shape: f32[1,128], index: 8, kind: input, shape index: {}]
  %s9 = inlined_call_operand.hbm [shape: f32[16,16,128], index: 9, kind: output, shape index: {}]
  %s10 = sld [smem:[#allocation0]]
  $region100: #{tpu_custom_call.1} parent=0
    _
  %s12 = ssub.s32 1, %s10
  %s13 = scalar_select 0, %s12, %s10
  $region1: #{tpu_custom_call.1} parent=0
    #allocation6 [shape = 'u8[65536]{0}', space=vmem, size = 0x10000, scoped, tag = 'input window, operand 0']
    #allocation7 [shape = 's32[2]{0}', space=sflag, size = 0x8, scoped, tag = 'scoped memory for tpu_custom_call.1']
    #allocation8 [shape = 's32[2]{0}', space=sflag, size = 0x8, scoped, tag = 'scoped memory for tpu_custom_call.1']
    #allocation9 [shape = 'u8[98304]{0}', space=vmem, size = 0x18000, scoped, tag = 'input window, operand 1, single buffered']
    #allocation10 [shape = 's32[1]{0}', space=sflag, size = 0x4, scoped, tag = 'scoped memory for tpu_custom_call.1']
    #allocation11 [shape = 'u8[1536]{0}', space=vmem, size = 0x800, scoped, tag = 'input window, operand 2, single buffered']
    #allocation12 [shape = 'u8[6144]{0}', space=vmem, size = 0x1800, scoped, tag = 'input window, operand 3, single buffered']
    #allocation13 [shape = 's32[1]{0}', space=sflag, size = 0x4, scoped, tag = 'scoped memory for tpu_custom_call.1']
    #allocation14 [shape = 'u8[1536]{0}', space=vmem, size = 0x800, scoped, tag = 'input window, operand 4, single buffered']
    #allocation15 [shape = 'u8[32768]{0}', space=vmem, size = 0x8000, scoped, tag = 'input window, operand 7, single buffered']
    #allocation16 [shape = 's32[1]{0}', space=sflag, size = 0x4, scoped, tag = 'scoped memory for tpu_custom_call.1']
    #allocation17 [shape = 'u8[131072]{0}', space=vmem, size = 0x20000, scoped, tag = 'output window, operand 0']
    %14 = vsyncpa [#allocation7], 0
    %s15 = scalar_lea.sflag [#allocation7], 1
    %16 = vsyncpa %s15, 0
    %17 = vsyncpa [#allocation10], 0
    %18 = vsyncpa [#allocation13], 0
    %19 = vsyncpa [#allocation16], 0
    %20 = vsyncpa [#allocation8], 0
    %s21 = scalar_lea.sflag [#allocation8], 1
    %22 = vsyncpa %s21, 0
    loop: start=0, step=1, limit=4
    $region2: #{tpu_custom_call.1} parent=1 // loop_pre_header
      _
    $region3: #{tpu_custom_call.1} parent=1 // loop_header
      %s24 = sphi 0, %s28
      %p25 = scmp.ge.s32.totalorder %s24, 4
      %s34 = sphi 0, %s36
      %s37 = sphi 0, %s34
      %s38 = sphi 0, %s37
      %s54 = sphi 0, %s38
      %s58 = sphi 0, %s58
      %s60 = sphi 0, %s58
      %s61 = sphi 0, %s60
      %s75 = sphi 0, %s61
      %s79 = sphi 0, %s79
      %s81 = sphi 0, %s79
      %s82 = sphi 0, %s81
      %s96 = sphi 0, %s82
      %s100 = sphi 0, %s100
      %s102 = sphi 0, %s100
      %s103 = sphi 0, %s102
      %s117 = sphi 0, %s103
      %s121 = sphi 0, %s121
      %s123 = sphi 0, %s121
      %s124 = sphi 0, %s123
      %s138 = sphi 0, %s124
      %s142 = sphi 0, %s142
      %s144 = sphi 0, %s142
      %s145 = sphi 0, %s144
      %s159 = sphi 0, %s145
      %s163 = sphi 0, %s163
      %s165 = sphi 0, %s163
      %s166 = sphi 0, %s165
      %s180 = sphi 0, %s166
      %s184 = sphi 0, %s184
      %s186 = sphi 0, %s184
      %s187 = sphi 0, %s186
      %s201 = sphi 0, %s187
      %s205 = sphi 0, %s205
      %s207 = sphi 0, %s205
      %s208 = sphi 0, %s207
      %s222 = sphi 0, %s208
      %s228 = sphi 0, %s230
      %s231 = sphi 0, %s228
      %s232 = sphi 0, %s231
      %s248 = sphi 0, %s232
    $region4: #{tpu_custom_call.1} parent=1 // loop_header_branch
      %27 = sbr.rel (%p25) target = $region8
    $region5: #{tpu_custom_call.1} parent=1 // loop_body
      %s29 = ssub.s32 %s24, 1
      %s30 = ssub.s32 %s24, 2
      %s31 = sadd.s32 %s24, 1
      %s32 = ssub.s32 %s24, %s31
      %p33 = scmp.eq.s32.totalorder %s32, 0
      %s35 = sadd.s32 %s34, 1
      %s36 = scalar_select %p33, %s34, %s35
      %p39 = pneg %p33
      %p40 = scmp.eq.s32.totalorder %s24, 1
      %p41 = por %p39, %p40
      %p42 = scmp.ne.s32.totalorder %s34, %s37
      %p43 = scmp.eq.s32.totalorder %s24, 0
      %p44 = por %p42, %p43
      %p45 = scmp.ne.s32.totalorder %s34, %s37
      %p46 = scmp.eq.s32.totalorder %s29, 1
      %p47 = por %p45, %p46
      %p48 = scmp.ne.s32.totalorder %s37, %s38
      %p49 = scmp.eq.s32.totalorder %s29, 0
      %p50 = por %p48, %p49
      %p51 = scmp.ne.s32.totalorder %s37, %s38
      %p52 = scmp.eq.s32.totalorder %s30, 1
      %p53 = por %p51, %p52
      %p55 = scmp.ne.s32.totalorder %s38, %s54
      %p56 = scmp.eq.s32.totalorder %s30, 0
      %p57 = por %p55, %p56
      %s59 = sadd.s32 %s58, 1
      %p62 = scmp.eq.s32.totalorder %s24, 1
      %p63 = scmp.ne.s32.totalorder %s58, %s60
      %p64 = scmp.eq.s32.totalorder %s24, 0
      %p65 = por %p63, %p64
      %p66 = scmp.ne.s32.totalorder %s58, %s60
      %p67 = scmp.eq.s32.totalorder %s29, 1
      %p68 = por %p66, %p67
      %p69 = scmp.ne.s32.totalorder %s60, %s61
      %p70 = scmp.eq.s32.totalorder %s29, 0
      %p71 = por %p69, %p70
      %p72 = scmp.ne.s32.totalorder %s60, %s61
      %p73 = scmp.eq.s32.totalorder %s30, 1
      %p74 = por %p72, %p73
      %p76 = scmp.ne.s32.totalorder %s61, %s75
      %p77 = scmp.eq.s32.totalorder %s30, 0
      %p78 = por %p76, %p77
      %s80 = sadd.s32 %s79, 1
      %p83 = scmp.eq.s32.totalorder %s24, 1
      %p84 = scmp.ne.s32.totalorder %s79, %s81
      %p85 = scmp.eq.s32.totalorder %s24, 0
      %p86 = por %p84, %p85
      %p87 = scmp.ne.s32.totalorder %s79, %s81
      %p88 = scmp.eq.s32.totalorder %s29, 1
      %p89 = por %p87, %p88
      %p90 = scmp.ne.s32.totalorder %s81, %s82
      %p91 = scmp.eq.s32.totalorder %s29, 0
      %p92 = por %p90, %p91
      %p93 = scmp.ne.s32.totalorder %s81, %s82
      %p94 = scmp.eq.s32.totalorder %s30, 1
      %p95 = por %p93, %p94
      %p97 = scmp.ne.s32.totalorder %s82, %s96
      %p98 = scmp.eq.s32.totalorder %s30, 0
      %p99 = por %p97, %p98
      %s101 = sadd.s32 %s100, 1
      %p104 = scmp.eq.s32.totalorder %s24, 1
      %p105 = scmp.ne.s32.totalorder %s100, %s102
      %p106 = scmp.eq.s32.totalorder %s24, 0
      %p107 = por %p105, %p106
      %p108 = scmp.ne.s32.totalorder %s100, %s102
      %p109 = scmp.eq.s32.totalorder %s29, 1
      %p110 = por %p108, %p109
      %p111 = scmp.ne.s32.totalorder %s102, %s103
      %p112 = scmp.eq.s32.totalorder %s29, 0
      %p113 = por %p111, %p112
      %p114 = scmp.ne.s32.totalorder %s102, %s103
      %p115 = scmp.eq.s32.totalorder %s30, 1
      %p116 = por %p114, %p115
      %p118 = scmp.ne.s32.totalorder %s103, %s117
      %p119 = scmp.eq.s32.totalorder %s30, 0
      %p120 = por %p118, %p119
      %s122 = sadd.s32 %s121, 1
      %p125 = scmp.eq.s32.totalorder %s24, 1
      %p126 = scmp.ne.s32.totalorder %s121, %s123
      %p127 = scmp.eq.s32.totalorder %s24, 0
      %p128 = por %p126, %p127
      %p129 = scmp.ne.s32.totalorder %s121, %s123
      %p130 = scmp.eq.s32.totalorder %s29, 1
      %p131 = por %p129, %p130
      %p132 = scmp.ne.s32.totalorder %s123, %s124
      %p133 = scmp.eq.s32.totalorder %s29, 0
      %p134 = por %p132, %p133
      %p135 = scmp.ne.s32.totalorder %s123, %s124
      %p136 = scmp.eq.s32.totalorder %s30, 1
      %p137 = por %p135, %p136
      %p139 = scmp.ne.s32.totalorder %s124, %s138
      %p140 = scmp.eq.s32.totalorder %s30, 0
      %p141 = por %p139, %p140
      %s143 = sadd.s32 %s142, 1
      %p146 = scmp.eq.s32.totalorder %s24, 1
      %p147 = scmp.ne.s32.totalorder %s142, %s144
      %p148 = scmp.eq.s32.totalorder %s24, 0
      %p149 = por %p147, %p148
      %p150 = scmp.ne.s32.totalorder %s142, %s144
      %p151 = scmp.eq.s32.totalorder %s29, 1
      %p152 = por %p150, %p151
      %p153 = scmp.ne.s32.totalorder %s144, %s145
      %p154 = scmp.eq.s32.totalorder %s29, 0
      %p155 = por %p153, %p154
      %p156 = scmp.ne.s32.totalorder %s144, %s145
      %p157 = scmp.eq.s32.totalorder %s30, 1
      %p158 = por %p156, %p157
      %p160 = scmp.ne.s32.totalorder %s145, %s159
      %p161 = scmp.eq.s32.totalorder %s30, 0
      %p162 = por %p160, %p161
      %s164 = sadd.s32 %s163, 1
      %p167 = scmp.eq.s32.totalorder %s24, 1
      %p168 = scmp.ne.s32.totalorder %s163, %s165
      %p169 = scmp.eq.s32.totalorder %s24, 0
      %p170 = por %p168, %p169
      %p171 = scmp.ne.s32.totalorder %s163, %s165
      %p172 = scmp.eq.s32.totalorder %s29, 1
      %p173 = por %p171, %p172
      %p174 = scmp.ne.s32.totalorder %s165, %s166
      %p175 = scmp.eq.s32.totalorder %s29, 0
      %p176 = por %p174, %p175
      %p177 = scmp.ne.s32.totalorder %s165, %s166
      %p178 = scmp.eq.s32.totalorder %s30, 1
      %p179 = por %p177, %p178
      %p181 = scmp.ne.s32.totalorder %s166, %s180
      %p182 = scmp.eq.s32.totalorder %s30, 0
      %p183 = por %p181, %p182
      %s185 = sadd.s32 %s184, 1
      %p188 = scmp.eq.s32.totalorder %s24, 1
      %p189 = scmp.ne.s32.totalorder %s184, %s186
      %p190 = scmp.eq.s32.totalorder %s24, 0
      %p191 = por %p189, %p190
      %p192 = scmp.ne.s32.totalorder %s184, %s186
      %p193 = scmp.eq.s32.totalorder %s29, 1
      %p194 = por %p192, %p193
      %p195 = scmp.ne.s32.totalorder %s186, %s187
      %p196 = scmp.eq.s32.totalorder %s29, 0
      %p197 = por %p195, %p196
      %p198 = scmp.ne.s32.totalorder %s186, %s187
      %p199 = scmp.eq.s32.totalorder %s30, 1
      %p200 = por %p198, %p199
      %p202 = scmp.ne.s32.totalorder %s187, %s201
      %p203 = scmp.eq.s32.totalorder %s30, 0
      %p204 = por %p202, %p203
      %s206 = sadd.s32 %s205, 1
      %p209 = scmp.eq.s32.totalorder %s24, 1
      %p210 = scmp.ne.s32.totalorder %s205, %s207
      %p211 = scmp.eq.s32.totalorder %s24, 0
      %p212 = por %p210, %p211
      %p213 = scmp.ne.s32.totalorder %s205, %s207
      %p214 = scmp.eq.s32.totalorder %s29, 1
      %p215 = por %p213, %p214
      %p216 = scmp.ne.s32.totalorder %s207, %s208
      %p217 = scmp.eq.s32.totalorder %s29, 0
      %p218 = por %p216, %p217
      %p219 = scmp.ne.s32.totalorder %s207, %s208
      %p220 = scmp.eq.s32.totalorder %s30, 1
      %p221 = por %p219, %p220
      %p223 = scmp.ne.s32.totalorder %s208, %s222
      %p224 = scmp.eq.s32.totalorder %s30, 0
      %p225 = por %p223, %p224
      %s226 = ssub.s32 %s24, %s31
      %p227 = scmp.eq.s32.totalorder %s226, 0
      %s229 = sadd.s32 %s228, 1
      %s230 = scalar_select %p227, %s228, %s229
      %p233 = pneg %p227
      %p234 = scmp.eq.s32.totalorder %s24, 1
      %p235 = por %p233, %p234
      %p236 = scmp.ne.s32.totalorder %s228, %s231
      %p237 = scmp.eq.s32.totalorder %s24, 0
      %p238 = por %p236, %p237
      %p239 = scmp.ne.s32.totalorder %s228, %s231
      %p240 = scmp.eq.s32.totalorder %s29, 1
      %p241 = por %p239, %p240
      %p242 = scmp.ne.s32.totalorder %s231, %s232
      %p243 = scmp.eq.s32.totalorder %s29, 0
      %p244 = por %p242, %p243
      %p245 = scmp.ne.s32.totalorder %s231, %s232
      %p246 = scmp.eq.s32.totalorder %s30, 1
      %p247 = por %p245, %p246
      %p249 = scmp.ne.s32.totalorder %s232, %s248
      %p250 = scmp.eq.s32.totalorder %s30, 0
      %p251 = por %p249, %p250
      %p252 = scmp.le.s32.totalorder 1, %s24
      %p253 = scmp.lt.s32.totalorder %s24, 3
      %p254 = pnand %p252, %p253
      %p255 = pneg %p254
      // Predicated region
      $region9: #{tpu_custom_call.1} parent=5 // pred_check
        _
      $region10: #{tpu_custom_call.1} parent=5 // pred_check_branch
        %257 = sbr.rel (%p254) target = $region12
      $region11: #{tpu_custom_call.1} parent=5 // pred_region
        %s258 = ssub.s32 %s24, 1
        // Predicated region
        $region13: #{tpu_custom_call.1} parent=11 // pred_check
          %p259 = pneg %p71
        $region14: #{tpu_custom_call.1} parent=11 // pred_check_branch
          %261 = sbr.rel (%p259) target = $region16
        $region15: #{tpu_custom_call.1} parent=11 // pred_region
          %s263 = ssub.s32 3072, 3072
          %264 = vsyncadd [#allocation10], %s263
          %s265 = sshll.u32 [#allocation9], 4
          %s266 = int_to_ptr.vmem [resolvable:$true] %s265
          %271 = dma.hbm_to_vmem [thread:$0]  %s1, 3072, %s266, [#allocation10], 64, 64, 4
        $region16: #{tpu_custom_call.1} parent=11 // pred_fallthru
          _
        // Predicated region
        $region17: #{tpu_custom_call.1} parent=11 // pred_check
          %p272 = pneg %p92
        $region18: #{tpu_custom_call.1} parent=11 // pred_check_branch
          %274 = sbr.rel (%p272) target = $region20
        $region19: #{tpu_custom_call.1} parent=11 // pred_region
          %s276 = ssub.s32 48, 48
          %277 = vsyncadd [#allocation10], %s276
          %s278 = sshll.u32 [#allocation11], 4
          %s279 = int_to_ptr.vmem [resolvable:$true] %s278
          %284 = dma.hbm_to_vmem [thread:$0]  %s2, 48, %s279, [#allocation10], 16, 16, 1
        $region20: #{tpu_custom_call.1} parent=11 // pred_fallthru
          _
        // Predicated region
        $region21: #{tpu_custom_call.1} parent=11 // pred_check
          %p285 = pneg %p113
        $region22: #{tpu_custom_call.1} parent=11 // pred_check_branch
          %287 = sbr.rel (%p285) target = $region24
        $region23: #{tpu_custom_call.1} parent=11 // pred_region
          %s289 = ssub.s32 192, 192
          %290 = vsyncadd [#allocation13], %s289
          %s291 = sshll.u32 [#allocation12], 4
          %s292 = int_to_ptr.vmem [resolvable:$true] %s291
          %297 = dma.hbm_to_vmem [thread:$0]  %s3, 192, %s292, [#allocation13], 64, 64, 4
        $region24: #{tpu_custom_call.1} parent=11 // pred_fallthru
          _
        // Predicated region
        $region25: #{tpu_custom_call.1} parent=11 // pred_check
          %p298 = pneg %p134
        $region26: #{tpu_custom_call.1} parent=11 // pred_check_branch
          %300 = sbr.rel (%p298) target = $region28
        $region27: #{tpu_custom_call.1} parent=11 // pred_region
          %s302 = ssub.s32 48, 48
          %303 = vsyncadd [#allocation13], %s302
          %s304 = sshll.u32 [#allocation14], 4
          %s305 = int_to_ptr.vmem [resolvable:$true] %s304
          %310 = dma.hbm_to_vmem [thread:$0]  %s4, 48, %s305, [#allocation13], 16, 16, 1
        $region28: #{tpu_custom_call.1} parent=11 // pred_fallthru
          _
        // Predicated region
        $region29: #{tpu_custom_call.1} parent=11 // pred_check
          %p311 = pneg %p155
        $region30: #{tpu_custom_call.1} parent=11 // pred_check_branch
          %313 = sbr.rel (%p311) target = $region32
        $region31: #{tpu_custom_call.1} parent=11 // pred_region
          _
        $region32: #{tpu_custom_call.1} parent=11 // pred_fallthru
          _
        // Predicated region
        $region33: #{tpu_custom_call.1} parent=11 // pred_check
          %p314 = pneg %p176
        $region34: #{tpu_custom_call.1} parent=11 // pred_check_branch
          %316 = sbr.rel (%p314) target = $region36
        $region35: #{tpu_custom_call.1} parent=11 // pred_region
          _
        $region36: #{tpu_custom_call.1} parent=11 // pred_fallthru
          _
        // Predicated region
        $region37: #{tpu_custom_call.1} parent=11 // pred_check
          %p317 = pneg %p197
        $region38: #{tpu_custom_call.1} parent=11 // pred_check_branch
          %319 = sbr.rel (%p317) target = $region40
        $region39: #{tpu_custom_call.1} parent=11 // pred_region
          %s321 = ssub.s32 1024, 1024
          %322 = vsyncadd [#allocation16], %s321
          %s323 = sshll.u32 [#allocation15], 4
          %s324 = int_to_ptr.vmem [resolvable:$true] %s323
          %329 = dma.hbm_to_vmem [thread:$0]  %s7, 1024, %s324, [#allocation16], 64, 64, 4
        $region40: #{tpu_custom_call.1} parent=11 // pred_fallthru
          _
        // Predicated region
        $region41: #{tpu_custom_call.1} parent=11 // pred_check
          %p330 = pneg %p218
        $region42: #{tpu_custom_call.1} parent=11 // pred_check_branch
          %332 = sbr.rel (%p330) target = $region44
        $region43: #{tpu_custom_call.1} parent=11 // pred_region
          _
        $region44: #{tpu_custom_call.1} parent=11 // pred_fallthru
          _
      $region12: #{tpu_custom_call.1} parent=5 // pred_fallthru
        _
      %p333 = scmp.lt.s32.totalorder %s24, 2
      // Predicated region
      $region45: #{tpu_custom_call.1} parent=5 // pred_check
        %p334 = pneg %p333
      $region46: #{tpu_custom_call.1} parent=5 // pred_check_branch
        %336 = sbr.rel (%p334) target = $region48
      $region47: #{tpu_custom_call.1} parent=5 // pred_region
        // Predicated region
        $region49: #{tpu_custom_call.1} parent=47 // pred_check
          %p337 = pneg %p44
        $region50: #{tpu_custom_call.1} parent=47 // pred_check_branch
          %339 = sbr.rel (%p337) target = $region52
        $region51: #{tpu_custom_call.1} parent=47 // pred_region
          %s340 = sand.u32 %s34, 1
          %s341 = scalar_lea.sflag [#allocation7], %s340
          %s342 = sand.u32 %s34, 1
          %s343 = smul.addr %s342, 64
          %s344 = scalar_lea.vmem [#allocation6], %s343
          %s345 = smul.u32 8, %s24
          %s347 = ssub.s32 1024, 1024
          %348 = vsyncadd %s341, %s347
          %s349 = smul.addr %s345, 2
          %s350 = smul.addr %s349, 64
          %s351 = scalar_lea.hbm %s0, %s350
          %s352 = sshll.u32 %s344, 4
          %s353 = int_to_ptr.vmem [resolvable:$true] %s352
          %358 = dma.hbm_to_vmem [thread:$0]  %s351, 1024, %s353, %s341, 64, 64, 4
        $region52: #{tpu_custom_call.1} parent=47 // pred_fallthru
          _
      $region48: #{tpu_custom_call.1} parent=5 // pred_fallthru
        _
      %p359 = scmp.le.s32.totalorder 1, %s24
      %p360 = scmp.lt.s32.totalorder %s24, 3
      %p361 = pnand %p359, %p360
      %p362 = pneg %p361
      // Predicated region
      $region53: #{tpu_custom_call.1} parent=5 // pred_check
        _
      $region54: #{tpu_custom_call.1} parent=5 // pred_check_branch
        %364 = sbr.rel (%p361) target = $region56
      $region55: #{tpu_custom_call.1} parent=5 // pred_region
        %s365 = ssub.s32 %s24, 1
        %s366 = sand.u32 %s37, 1
        %s367 = scalar_lea.sflag [#allocation7], %s366
        %s368 = sand.u32 %s37, 1
        %s369 = smul.addr %s368, 64
        %s370 = scalar_lea.vmem [#allocation6], %s369
        // Predicated region
        $region57: #{tpu_custom_call.1} parent=55 // pred_check
          %p371 = pneg %p50
        $region58: #{tpu_custom_call.1} parent=55 // pred_check_branch
          %373 = sbr.rel (%p371) target = $region60
        $region59: #{tpu_custom_call.1} parent=55 // pred_region
          %374 = dma.done %s367, 1024
        $region60: #{tpu_custom_call.1} parent=55 // pred_fallthru
          _
        // Predicated region
        $region61: #{tpu_custom_call.1} parent=55 // pred_check
          %p375 = pneg %p71
        $region62: #{tpu_custom_call.1} parent=55 // pred_check_branch
          %377 = sbr.rel (%p375) target = $region64
        $region63: #{tpu_custom_call.1} parent=55 // pred_region
          %378 = dma.done [#allocation10], 3072
        $region64: #{tpu_custom_call.1} parent=55 // pred_fallthru
          _
        // Predicated region
        $region65: #{tpu_custom_call.1} parent=55 // pred_check
          %p379 = pneg %p92
        $region66: #{tpu_custom_call.1} parent=55 // pred_check_branch
          %381 = sbr.rel (%p379) target = $region68
        $region67: #{tpu_custom_call.1} parent=55 // pred_region
          %382 = dma.done [#allocation10], 48
        $region68: #{tpu_custom_call.1} parent=55 // pred_fallthru
          _
        // Predicated region
        $region69: #{tpu_custom_call.1} parent=55 // pred_check
          %p383 = pneg %p113
        $region70: #{tpu_custom_call.1} parent=55 // pred_check_branch
          %385 = sbr.rel (%p383) target = $region72
        $region71: #{tpu_custom_call.1} parent=55 // pred_region
          %386 = dma.done [#allocation13], 192
        $region72: #{tpu_custom_call.1} parent=55 // pred_fallthru
          _
        // Predicated region
        $region73: #{tpu_custom_call.1} parent=55 // pred_check
          %p387 = pneg %p134
        $region74: #{tpu_custom_call.1} parent=55 // pred_check_branch
          %389 = sbr.rel (%p387) target = $region76
        $region75: #{tpu_custom_call.1} parent=55 // pred_region
          %390 = dma.done [#allocation13], 48
        $region76: #{tpu_custom_call.1} parent=55 // pred_fallthru
          _
        // Predicated region
        $region77: #{tpu_custom_call.1} parent=55 // pred_check
          %p391 = pneg %p197
        $region78: #{tpu_custom_call.1} parent=55 // pred_check_branch
          %393 = sbr.rel (%p391) target = $region80
        $region79: #{tpu_custom_call.1} parent=55 // pred_region
          %394 = dma.done [#allocation16], 1024
        $region80: #{tpu_custom_call.1} parent=55 // pred_fallthru
          _
        %s395 = sand.u32 %s37, 1
        %s396 = scalar_lea.sflag [#allocation7], %s395
        %s397 = sand.u32 %s37, 1
        %s398 = smul.addr %s397, 64
        %s399 = scalar_lea.vmem [#allocation6], %s398
        %p400 = pneg %p50
        %p401 = pneg %p47
        %p402 = pneg %p71
        %p403 = pneg %p68
        %p404 = pneg %p92
        %p405 = pneg %p89
        %p406 = pneg %p113
        %p407 = pneg %p110
        %p408 = pneg %p134
        %p409 = pneg %p131
        %p410 = pneg %p155
        %p411 = pneg %p152
        %p412 = pneg %p176
        %p413 = pneg %p173
        %p414 = pneg %p197
        %p415 = pneg %p194
        %p416 = pneg %p218
        %p417 = pneg %p215
        %p418 = pneg %p244
        %p419 = pneg %p241
        %s420 = sand.u32 %s231, 1
        %s421 = scalar_lea.sflag [#allocation8], %s420
        %s422 = sand.u32 %s231, 1
        %s423 = smul.addr %s422, 128
        %s424 = scalar_lea.vmem [#allocation17], %s423
        %s425 = smul.u32 8, %s29
        %s426 = smul.u32 8, %s29
        %428 = vst [vmem:[#allocation2 + $0x6] sm:$0x3] 0.0
        %429 = vst [vmem:[#allocation2 + $0x1e] sm:$0x3] 0.0
        %430 = vst [vmem:[#allocation2 + $0x36] sm:$0x3] 0.0
        %431 = vst [vmem:[#allocation2 + $0x4e] sm:$0x3] 0.0
        %432 = vst [vmem:[#allocation2 + $0x66] sm:$0x3] 0.0
        %433 = vst [vmem:[#allocation2 + $0x7e] sm:$0x3] 0.0
        %434 = vst [vmem:[#allocation2 + $0x96] sm:$0x3] 0.0
        %435 = vst [vmem:[#allocation2 + $0xae] sm:$0x3] 0.0
        %436 = vst [vmem:[#allocation3] sm:$0xff] 0.0
        %437 = vst [vmem:[#allocation3 + $0x18] sm:$0xff] 0.0
        %438 = vst [vmem:[#allocation3 + $0x30] sm:$0xff] 0.0
        %439 = vst [vmem:[#allocation3 + $0x48] sm:$0xff] 0.0
        %440 = vst [vmem:[#allocation3 + $0x60] sm:$0xff] 0.0
        %441 = vst [vmem:[#allocation3 + $0x78] sm:$0xff] 0.0
        %442 = vst [vmem:[#allocation3 + $0x90] sm:$0xff] 0.0
        %443 = vst [vmem:[#allocation3 + $0xa8] sm:$0xff] 0.0
        %v444 = vld [vmem:[%s370] sm:$0xf]
        %v445 = vld [vmem:[%s370 + $0x4] sm:$0xf]
        %v446 = vld [vmem:[%s370 + $0x8] sm:$0xf]
        %v447 = vld [vmem:[%s370 + $0xc] sm:$0xf]
        %v448 = vld [vmem:[%s370 + $0x10] sm:$0xf]
        %v449 = vld [vmem:[%s370 + $0x14] sm:$0xf]
        %v450 = vld [vmem:[%s370 + $0x18] sm:$0xf]
        %v451 = vld [vmem:[%s370 + $0x1c] sm:$0xf]
        %v452 = vld [vmem:[%s370 + $0x20] sm:$0xf]
        %v453 = vld [vmem:[%s370 + $0x24] sm:$0xf]
        %v454 = vld [vmem:[%s370 + $0x28] sm:$0xf]
        %v455 = vld [vmem:[%s370 + $0x2c] sm:$0xf]
        %v456 = vld [vmem:[%s370 + $0x30] sm:$0xf]
        %v457 = vld [vmem:[%s370 + $0x34] sm:$0xf]
        %v458 = vld [vmem:[%s370 + $0x38] sm:$0xf]
        %v459 = vld [vmem:[%s370 + $0x3c] sm:$0xf]
        %v460 = vld [vmem:[#allocation9] sm:$0xf]
        %v461 = vld [vmem:[#allocation9 + $0x4] sm:$0xf]
        %v462 = vld [vmem:[#allocation9 + $0x8] sm:$0xf]
        %v463 = vld [vmem:[#allocation9 + $0xc] sm:$0xf]
        %v464 = vld [vmem:[#allocation9 + $0x10] sm:$0xf]
        %v465 = vld [vmem:[#allocation9 + $0x14] sm:$0xf]
        %v466 = vld [vmem:[#allocation9 + $0x18] sm:$0xf]
        %v467 = vld [vmem:[#allocation9 + $0x1c] sm:$0xf]
        %v468 = vld [vmem:[#allocation9 + $0x20] sm:$0xf]
        %v469 = vld [vmem:[#allocation9 + $0x24] sm:$0xf]
        %v470 = vld [vmem:[#allocation9 + $0x28] sm:$0xf]
        %v471 = vld [vmem:[#allocation9 + $0x2c] sm:$0xf]
        %v472 = vld [vmem:[#allocation9 + $0x30] sm:$0xf]
        %v473 = vld [vmem:[#allocation9 + $0x34] sm:$0xf]
        %v474 = vld [vmem:[#allocation9 + $0x38] sm:$0xf]
        %v475 = vld [vmem:[#allocation9 + $0x3c] sm:$0xf]
        %v476 = vld [vmem:[#allocation11] sm:$0x1]
        %v478 = vlaneseq
        %v479 = vshrl.u32 %v478, 7
        %v480 = vsub.s32 0, %v479
        %v481 = vrot.slane %v476, %v480
        %v499 = vunpack.c.l.b16 %v444
        %v500 = vunpack.c.l.b16 %v445
        %v501 = vunpack.c.l.b16 %v446
        %v502 = vunpack.c.l.b16 %v447
        %v503 = vunpack.c.l.b16 %v448
        %v504 = vunpack.c.l.b16 %v449
        %v505 = vunpack.c.l.b16 %v450
        %v506 = vunpack.c.l.b16 %v451
        %v507 = vunpack.c.l.b16 %v452
        %v508 = vunpack.c.l.b16 %v453
        %v509 = vunpack.c.l.b16 %v454
        %v510 = vunpack.c.l.b16 %v455
        %v511 = vunpack.c.l.b16 %v456
        %v512 = vunpack.c.l.b16 %v457
        %v513 = vunpack.c.l.b16 %v458
        %v514 = vunpack.c.l.b16 %v459
        %v515 = vpack.c.b16 %v500, %v499
        %v516 = vpack.c.b16 %v502, %v501
        %v517 = vpack.c.b16 %v504, %v503
        %v518 = vpack.c.b16 %v506, %v505
        %v519 = vpack.c.b16 %v508, %v507
        %v520 = vpack.c.b16 %v510, %v509
        %v521 = vpack.c.b16 %v512, %v511
        %v522 = vpack.c.b16 %v514, %v513
        %v547 = vunpack.c.l.b16 %v460
        %v548 = vunpack.c.l.b16 %v461
        %v549 = vunpack.c.l.b16 %v462
        %v550 = vunpack.c.l.b16 %v463
        %v551 = vunpack.c.l.b16 %v464
        %v552 = vunpack.c.l.b16 %v465
        %v553 = vunpack.c.l.b16 %v466
        %v554 = vunpack.c.l.b16 %v467
        %v555 = vunpack.c.l.b16 %v468
        %v556 = vunpack.c.l.b16 %v469
        %v557 = vunpack.c.l.b16 %v470
        %v558 = vunpack.c.l.b16 %v471
        %v559 = vunpack.c.l.b16 %v472
        %v560 = vunpack.c.l.b16 %v473
        %v561 = vunpack.c.l.b16 %v474
        %v562 = vunpack.c.l.b16 %v475
        %v563 = vpack.c.b16 %v548, %v547
        %v564 = vpack.c.b16 %v550, %v549
        %v565 = vpack.c.b16 %v552, %v551
        %v566 = vpack.c.b16 %v554, %v553
        %v567 = vpack.c.b16 %v556, %v555
        %v568 = vpack.c.b16 %v558, %v557
        %v569 = vpack.c.b16 %v560, %v559
        %v570 = vpack.c.b16 %v562, %v561
        %579 = vmatprep.subr.bf16.mxu0 0
        %580 = vmatpush1.bf16.msra.mxu0 %v563
        %581 = vmatprep.subr.bf16.mxu0 0
        %582 = vmatpush1.bf16.msra.mxu0 %v564
        %583 = vmatprep.subr.bf16.mxu0 0
        %584 = vmatpush1.bf16.msra.mxu0 %v565
        %585 = vmatprep.subr.bf16.mxu0 0
        %586 = vmatpush1.bf16.msra.mxu0 %v566
        %587 = vmatprep.subr.bf16.mxu0 0
        %588 = vmatpush1.bf16.msra.mxu0 %v567
        %589 = vmatprep.subr.bf16.mxu0 0
        %590 = vmatpush1.bf16.msra.mxu0 %v568
        %591 = vmatprep.subr.bf16.mxu0 0
        %592 = vmatpush1.bf16.msra.mxu0 %v569
        %593 = vmatprep.subr.bf16.mxu0 0
        %594 = vmatpush1.bf16.msra.mxu0 %v570
        %595 = vmatprep.subr.bf16.mxu0 0
        %596 = vmatpush1.bf16.msra.mxu0 0
        %597 = vmatprep.subr.bf16.mxu0 0
        %598 = vmatpush1.bf16.msra.mxu0 0
        %599 = vmatprep.subr.bf16.mxu0 0
        %600 = vmatpush1.bf16.msra.mxu0 0
        %601 = vmatprep.subr.bf16.mxu0 0
        %602 = vmatpush1.bf16.msra.mxu0 0
        %603 = vmatprep.subr.bf16.mxu0 0
        %604 = vmatpush1.bf16.msra.mxu0 0
        %605 = vmatprep.subr.bf16.mxu0 0
        %606 = vmatpush1.bf16.msra.mxu0 0
        %607 = vmatprep.subr.bf16.mxu0 0
        %608 = vmatpush1.bf16.msra.mxu0 0
        %609 = vmatprep.subr.bf16.mxu0 0
        %610 = vmatpush1.bf16.msra.mxu0 0
        %611 = vmatprep.mubr.bf16.mxu0 0
        %612 = vmatmul.mubr.bf16.gmra.mrb[0].mxu0 %v515
        %v613 = vpop.f32.mrb[0].mxu0
        %v614 = vadd.f32 %v481, %v613
        %v615 = vpop.f32.mrb[0].mxu0
        %v616 = vpop.f32.mrb[0].mxu0
        %v617 = vadd.f32 %v481, %v616
        %v618 = vpop.f32.mrb[0].mxu0
        %619 = vmatprep.mubr.bf16.mxu0 0
        %620 = vmatmul.mubr.bf16.gmra.mrb[0].mxu0 %v516
        %v621 = vpop.f32.mrb[0].mxu0
        %v622 = vadd.f32 %v481, %v621
        %v623 = vpop.f32.mrb[0].mxu0
        %v624 = vpop.f32.mrb[0].mxu0
        %v625 = vadd.f32 %v481, %v624
        %v626 = vpop.f32.mrb[0].mxu0
        %627 = vmatprep.mubr.bf16.mxu0 0
        %628 = vmatmul.mubr.bf16.gmra.mrb[0].mxu0 %v517
        %v629 = vpop.f32.mrb[0].mxu0
        %v630 = vadd.f32 %v481, %v629
        %v631 = vpop.f32.mrb[0].mxu0
        %v632 = vpop.f32.mrb[0].mxu0
        %v633 = vadd.f32 %v481, %v632
        %v634 = vpop.f32.mrb[0].mxu0
        %635 = vmatprep.mubr.bf16.mxu0 0
        %636 = vmatmul.mubr.bf16.gmra.mrb[0].mxu0 %v518
        %v637 = vpop.f32.mrb[0].mxu0
        %v638 = vadd.f32 %v481, %v637
        %v639 = vpop.f32.mrb[0].mxu0
        %v640 = vpop.f32.mrb[0].mxu0
        %v641 = vadd.f32 %v481, %v640
        %v642 = vpop.f32.mrb[0].mxu0
        %643 = vmatprep.mubr.bf16.mxu0 0
        %644 = vmatmul.mubr.bf16.gmra.mrb[0].mxu0 %v519
        %v645 = vpop.f32.mrb[0].mxu0
        %v646 = vadd.f32 %v481, %v645
        %v647 = vpop.f32.mrb[0].mxu0
        %v648 = vpop.f32.mrb[0].mxu0
        %v649 = vadd.f32 %v481, %v648
        %v650 = vpop.f32.mrb[0].mxu0
        %651 = vmatprep.mubr.bf16.mxu0 0
        %652 = vmatmul.mubr.bf16.gmra.mrb[0].mxu0 %v520
        %v653 = vpop.f32.mrb[0].mxu0
        %v654 = vadd.f32 %v481, %v653
        %v655 = vpop.f32.mrb[0].mxu0
        %v656 = vpop.f32.mrb[0].mxu0
        %v657 = vadd.f32 %v481, %v656
        %v658 = vpop.f32.mrb[0].mxu0
        %659 = vmatprep.mubr.bf16.mxu0 0
        %660 = vmatmul.mubr.bf16.gmra.mrb[0].mxu0 %v521
        %v661 = vpop.f32.mrb[0].mxu0
        %v662 = vadd.f32 %v481, %v661
        %v663 = vpop.f32.mrb[0].mxu0
        %v664 = vpop.f32.mrb[0].mxu0
        %v665 = vadd.f32 %v481, %v664
        %v666 = vpop.f32.mrb[0].mxu0
        %667 = vmatprep.mubr.bf16.mxu0 0
        %668 = vmatmul.mubr.bf16.gmra.mrb[0].mxu0 %v522
        %v669 = vpop.f32.mrb[0].mxu0
        %v670 = vadd.f32 %v481, %v669
        %v671 = vpop.f32.mrb[0].mxu0
        %v672 = vpop.f32.mrb[0].mxu0
        %v673 = vadd.f32 %v481, %v672
        %v674 = vpop.f32.mrb[0].mxu0
        %675 = vdwg.mxu0
        %676 = vst [vmem:[#allocation2 + $0x8] sm:$0xff] %v614
        %677 = vst [vmem:[#allocation2 + $0x10] sm:$0xff] %v617
        %678 = vst [vmem:[#allocation2 + $0x20] sm:$0xff] %v622
        %679 = vst [vmem:[#allocation2 + $0x28] sm:$0xff] %v625
        %680 = vst [vmem:[#allocation2 + $0x38] sm:$0xff] %v630
        %681 = vst [vmem:[#allocation2 + $0x40] sm:$0xff] %v633
        %682 = vst [vmem:[#allocation2 + $0x50] sm:$0xff] %v638
        %683 = vst [vmem:[#allocation2 + $0x58] sm:$0xff] %v641
        %684 = vst [vmem:[#allocation2 + $0x68] sm:$0xff] %v646
        %685 = vst [vmem:[#allocation2 + $0x70] sm:$0xff] %v649
        %686 = vst [vmem:[#allocation2 + $0x80] sm:$0xff] %v654
        %687 = vst [vmem:[#allocation2 + $0x88] sm:$0xff] %v657
        %688 = vst [vmem:[#allocation2 + $0x98] sm:$0xff] %v662
        %689 = vst [vmem:[#allocation2 + $0xa0] sm:$0xff] %v665
        %690 = vst [vmem:[#allocation2 + $0xb0] sm:$0xff] %v670
        %691 = vst [vmem:[#allocation2 + $0xb8] sm:$0xff] %v673
        %v692 = vld [vmem:[#allocation12] sm:$0x7]
        %v693 = vld [vmem:[#allocation2 + $0x6] sm:$0xff]
        %v694 = vld [vmem:[#allocation2 + $0xe] sm:$0xff]
        %v695 = vld [vmem:[#allocation2 + $0x1e] sm:$0xff]
        %v696 = vld [vmem:[#allocation2 + $0x26] sm:$0xff]
        %v697 = vld [vmem:[#allocation2 + $0x36] sm:$0xff]
        %v698 = vld [vmem:[#allocation2 + $0x3e] sm:$0xff]
        %v699 = vld [vmem:[#allocation2 + $0x4e] sm:$0xff]
        %v700 = vld [vmem:[#allocation2 + $0x56] sm:$0xff]
        %v701 = vld [vmem:[#allocation2 + $0x66] sm:$0xff]
        %v702 = vld [vmem:[#allocation2 + $0x6e] sm:$0xff]
        %v703 = vld [vmem:[#allocation2 + $0x7e] sm:$0xff]
        %v704 = vld [vmem:[#allocation2 + $0x86] sm:$0xff]
        %v705 = vld [vmem:[#allocation2 + $0x96] sm:$0xff]
        %v706 = vld [vmem:[#allocation2 + $0x9e] sm:$0xff]
        %v707 = vld [vmem:[#allocation2 + $0xae] sm:$0xff]
        %v708 = vld [vmem:[#allocation2 + $0xb6] sm:$0xff]
        %v709 = vld [vmem:[#allocation2 + $0x7] sm:$0xff]
        %v710 = vld [vmem:[#allocation2 + $0xf] sm:$0xff]
        %v711 = vld [vmem:[#allocation2 + $0x1f] sm:$0xff]
        %v712 = vld [vmem:[#allocation2 + $0x27] sm:$0xff]
        %v713 = vld [vmem:[#allocation2 + $0x37] sm:$0xff]
        %v714 = vld [vmem:[#allocation2 + $0x3f] sm:$0xff]
        %v715 = vld [vmem:[#allocation2 + $0x4f] sm:$0xff]
        %v716 = vld [vmem:[#allocation2 + $0x57] sm:$0xff]
        %v717 = vld [vmem:[#allocation2 + $0x67] sm:$0xff]
        %v718 = vld [vmem:[#allocation2 + $0x6f] sm:$0xff]
        %v719 = vld [vmem:[#allocation2 + $0x7f] sm:$0xff]
        %v720 = vld [vmem:[#allocation2 + $0x87] sm:$0xff]
        %v721 = vld [vmem:[#allocation2 + $0x97] sm:$0xff]
        %v722 = vld [vmem:[#allocation2 + $0x9f] sm:$0xff]
        %v723 = vld [vmem:[#allocation2 + $0xaf] sm:$0xff]
        %v724 = vld [vmem:[#allocation2 + $0xb7] sm:$0xff]
        %v725 = vlaneseq
        %v726 = vshrl.u32 %v725, 7
        %v727 = vsub.s32 0, %v726
        %v728 = vrot.slane %v692, %v727
        %v729 = vmul.f32 %v728, %v693
        %v730 = vmul.f32 %v728, %v694
        %v731 = vmul.f32 %v728, %v695
        %v732 = vmul.f32 %v728, %v696
        %v733 = vmul.f32 %v728, %v697
        %v734 = vmul.f32 %v728, %v698
        %v735 = vmul.f32 %v728, %v699
        %v736 = vmul.f32 %v728, %v700
        %v737 = vmul.f32 %v728, %v701
        %v738 = vmul.f32 %v728, %v702
        %v739 = vmul.f32 %v728, %v703
        %v740 = vmul.f32 %v728, %v704
        %v741 = vmul.f32 %v728, %v705
        %v742 = vmul.f32 %v728, %v706
        %v743 = vmul.f32 %v728, %v707
        %v744 = vmul.f32 %v728, %v708
        %v745 = vlaneseq
        %v746 = vshrl.u32 %v745, 7
        %v747 = vsub.s32 1, %v746
        %v748 = vrot.slane %v692, %v747
        %v749 = vmul.f32 %v748, %v709
        %v750 = vmul.f32 %v748, %v710
        %v751 = vmul.f32 %v748, %v711
        %v752 = vmul.f32 %v748, %v712
        %v753 = vmul.f32 %v748, %v713
        %v754 = vmul.f32 %v748, %v714
        %v755 = vmul.f32 %v748, %v715
        %v756 = vmul.f32 %v748, %v716
        %v757 = vmul.f32 %v748, %v717
        %v758 = vmul.f32 %v748, %v718
        %v759 = vmul.f32 %v748, %v719
        %v760 = vmul.f32 %v748, %v720
        %v761 = vmul.f32 %v748, %v721
        %v762 = vmul.f32 %v748, %v722
        %v763 = vmul.f32 %v748, %v723
        %v764 = vmul.f32 %v748, %v724
        %v765 = vadd.f32 %v729, %v749
        %v766 = vadd.f32 %v730, %v750
        %v767 = vadd.f32 %v731, %v751
        %v768 = vadd.f32 %v732, %v752
        %v769 = vadd.f32 %v733, %v753
        %v770 = vadd.f32 %v734, %v754
        %v771 = vadd.f32 %v735, %v755
        %v772 = vadd.f32 %v736, %v756
        %v773 = vadd.f32 %v737, %v757
        %v774 = vadd.f32 %v738, %v758
        %v775 = vadd.f32 %v739, %v759
        %v776 = vadd.f32 %v740, %v760
        %v777 = vadd.f32 %v741, %v761
        %v778 = vadd.f32 %v742, %v762
        %v779 = vadd.f32 %v743, %v763
        %v780 = vadd.f32 %v744, %v764
        %v781 = vlaneseq
        %v782 = vshrl.u32 %v781, 7
        %v783 = vsub.s32 2, %v782
        %v784 = vrot.slane %v692, %v783
        %v785 = vmul.f32 %v784, %v614
        %v786 = vmul.f32 %v784, %v617
        %v787 = vmul.f32 %v784, %v622
        %v788 = vmul.f32 %v784, %v625
        %v789 = vmul.f32 %v784, %v630
        %v790 = vmul.f32 %v784, %v633
        %v791 = vmul.f32 %v784, %v638
        %v792 = vmul.f32 %v784, %v641
        %v793 = vmul.f32 %v784, %v646
        %v794 = vmul.f32 %v784, %v649
        %v795 = vmul.f32 %v784, %v654
        %v796 = vmul.f32 %v784, %v657
        %v797 = vmul.f32 %v784, %v662
        %v798 = vmul.f32 %v784, %v665
        %v799 = vmul.f32 %v784, %v670
        %v800 = vmul.f32 %v784, %v673
        %v801 = vadd.f32 %v765, %v785
        %v802 = vadd.f32 %v766, %v786
        %v803 = vadd.f32 %v767, %v787
        %v804 = vadd.f32 %v768, %v788
        %v805 = vadd.f32 %v769, %v789
        %v806 = vadd.f32 %v770, %v790
        %v807 = vadd.f32 %v771, %v791
        %v808 = vadd.f32 %v772, %v792
        %v809 = vadd.f32 %v773, %v793
        %v810 = vadd.f32 %v774, %v794
        %v811 = vadd.f32 %v775, %v795
        %v812 = vadd.f32 %v776, %v796
        %v813 = vadd.f32 %v777, %v797
        %v814 = vadd.f32 %v778, %v798
        %v815 = vadd.f32 %v779, %v799
        %v816 = vadd.f32 %v780, %v800
        %v817 = vld [vmem:[#allocation14] sm:$0x1]
        %v819 = vlaneseq
        %v820 = vshrl.u32 %v819, 7
        %v821 = vsub.s32 0, %v820
        %v822 = vrot.slane %v817, %v821
        %v824 = vadd.f32 %v801, %v822
        %v825 = vadd.f32 %v802, %v822
        %v826 = vadd.f32 %v803, %v822
        %v827 = vadd.f32 %v804, %v822
        %v828 = vadd.f32 %v805, %v822
        %v829 = vadd.f32 %v806, %v822
        %v830 = vadd.f32 %v807, %v822
        %v831 = vadd.f32 %v808, %v822
        %v832 = vadd.f32 %v809, %v822
        %v833 = vadd.f32 %v810, %v822
        %v834 = vadd.f32 %v811, %v822
        %v835 = vadd.f32 %v812, %v822
        %v836 = vadd.f32 %v813, %v822
        %v837 = vadd.f32 %v814, %v822
        %v838 = vadd.f32 %v815, %v822
        %v839 = vadd.f32 %v816, %v822
        %840 = vst [vmem:[#allocation4] sm:$0xff] %v824
        %841 = vst [vmem:[#allocation4 + $0x8] sm:$0xff] %v825
        %842 = vst [vmem:[#allocation4 + $0x10] sm:$0xff] %v826
        %843 = vst [vmem:[#allocation4 + $0x18] sm:$0xff] %v827
        %844 = vst [vmem:[#allocation4 + $0x20] sm:$0xff] %v828
        %845 = vst [vmem:[#allocation4 + $0x28] sm:$0xff] %v829
        %846 = vst [vmem:[#allocation4 + $0x30] sm:$0xff] %v830
        %847 = vst [vmem:[#allocation4 + $0x38] sm:$0xff] %v831
        %848 = vst [vmem:[#allocation4 + $0x40] sm:$0xff] %v832
        %849 = vst [vmem:[#allocation4 + $0x48] sm:$0xff] %v833
        %850 = vst [vmem:[#allocation4 + $0x50] sm:$0xff] %v834
        %851 = vst [vmem:[#allocation4 + $0x58] sm:$0xff] %v835
        %852 = vst [vmem:[#allocation4 + $0x60] sm:$0xff] %v836
        %853 = vst [vmem:[#allocation4 + $0x68] sm:$0xff] %v837
        %854 = vst [vmem:[#allocation4 + $0x70] sm:$0xff] %v838
        %855 = vst [vmem:[#allocation4 + $0x78] sm:$0xff] %v839
        %s856 = scalar_lea.vmem [#allocation9], 64
        %v857 = vld [vmem:[%s856] sm:$0xf]
        %v858 = vld [vmem:[%s856 + $0x4] sm:$0xf]
        %v859 = vld [vmem:[%s856 + $0x8] sm:$0xf]
        %v860 = vld [vmem:[%s856 + $0xc] sm:$0xf]
        %v861 = vld [vmem:[%s856 + $0x10] sm:$0xf]
        %v862 = vld [vmem:[%s856 + $0x14] sm:$0xf]
        %v863 = vld [vmem:[%s856 + $0x18] sm:$0xf]
        %v864 = vld [vmem:[%s856 + $0x1c] sm:$0xf]
        %v865 = vld [vmem:[%s856 + $0x20] sm:$0xf]
        %v866 = vld [vmem:[%s856 + $0x24] sm:$0xf]
        %v867 = vld [vmem:[%s856 + $0x28] sm:$0xf]
        %v868 = vld [vmem:[%s856 + $0x2c] sm:$0xf]
        %v869 = vld [vmem:[%s856 + $0x30] sm:$0xf]
        %v870 = vld [vmem:[%s856 + $0x34] sm:$0xf]
        %v871 = vld [vmem:[%s856 + $0x38] sm:$0xf]
        %v872 = vld [vmem:[%s856 + $0x3c] sm:$0xf]
        %s873 = scalar_lea.vmem [#allocation11], 1
        %v874 = vld [vmem:[%s873] sm:$0x1]
        %v876 = vlaneseq
        %v877 = vshrl.u32 %v876, 7
        %v878 = vsub.s32 0, %v877
        %v879 = vrot.slane %v874, %v878
        %v897 = vunpack.c.l.b16 %v857
        %v898 = vunpack.c.l.b16 %v858
        %v899 = vunpack.c.l.b16 %v859
        %v900 = vunpack.c.l.b16 %v860
        %v901 = vunpack.c.l.b16 %v861
        %v902 = vunpack.c.l.b16 %v862
        %v903 = vunpack.c.l.b16 %v863
        %v904 = vunpack.c.l.b16 %v864
        %v905 = vunpack.c.l.b16 %v865
        %v906 = vunpack.c.l.b16 %v866
        %v907 = vunpack.c.l.b16 %v867
        %v908 = vunpack.c.l.b16 %v868
        %v909 = vunpack.c.l.b16 %v869
        %v910 = vunpack.c.l.b16 %v870
        %v911 = vunpack.c.l.b16 %v871
        %v912 = vunpack.c.l.b16 %v872
        %v913 = vpack.c.b16 %v898, %v897
        %v914 = vpack.c.b16 %v900, %v899
        %v915 = vpack.c.b16 %v902, %v901
        %v916 = vpack.c.b16 %v904, %v903
        %v917 = vpack.c.b16 %v906, %v905
        %v918 = vpack.c.b16 %v908, %v907
        %v919 = vpack.c.b16 %v910, %v909
        %v920 = vpack.c.b16 %v912, %v911
        %929 = vmatprep.subr.bf16.mxu0 0
        %930 = vmatpush1.bf16.msra.mxu0 %v913
        %931 = vmatprep.subr.bf16.mxu0 0
        %932 = vmatpush1.bf16.msra.mxu0 %v914
        %933 = vmatprep.subr.bf16.mxu0 0
        %934 = vmatpush1.bf16.msra.mxu0 %v915
        %935 = vmatprep.subr.bf16.mxu0 0
        %936 = vmatpush1.bf16.msra.mxu0 %v916
        %937 = vmatprep.subr.bf16.mxu0 0
        %938 = vmatpush1.bf16.msra.mxu0 %v917
        %939 = vmatprep.subr.bf16.mxu0 0
        %940 = vmatpush1.bf16.msra.mxu0 %v918
        %941 = vmatprep.subr.bf16.mxu0 0
        %942 = vmatpush1.bf16.msra.mxu0 %v919
        %943 = vmatprep.subr.bf16.mxu0 0
        %944 = vmatpush1.bf16.msra.mxu0 %v920
        %945 = vmatprep.subr.bf16.mxu0 0
        %946 = vmatpush1.bf16.msra.mxu0 0
        %947 = vmatprep.subr.bf16.mxu0 0
        %948 = vmatpush1.bf16.msra.mxu0 0
        %949 = vmatprep.subr.bf16.mxu0 0
        %950 = vmatpush1.bf16.msra.mxu0 0
        %951 = vmatprep.subr.bf16.mxu0 0
        %952 = vmatpush1.bf16.msra.mxu0 0
        %953 = vmatprep.subr.bf16.mxu0 0
        %954 = vmatpush1.bf16.msra.mxu0 0
        %955 = vmatprep.subr.bf16.mxu0 0
        %956 = vmatpush1.bf16.msra.mxu0 0
        %957 = vmatprep.subr.bf16.mxu0 0
        %958 = vmatpush1.bf16.msra.mxu0 0
        %959 = vmatprep.subr.bf16.mxu0 0
        %960 = vmatpush1.bf16.msra.mxu0 0
        %961 = vmatprep.mubr.bf16.mxu0 0
        %962 = vmatmul.mubr.bf16.gmra.mrb[0].mxu0 %v515
        %v963 = vpop.f32.mrb[0].mxu0
        %v964 = vadd.f32 %v879, %v963
        %v965 = vpop.f32.mrb[0].mxu0
        %v966 = vpop.f32.mrb[0].mxu0
        %v967 = vadd.f32 %v879, %v966
        %v968 = vpop.f32.mrb[0].mxu0
        %969 = vmatprep.mubr.bf16.mxu0 0
        %970 = vmatmul.mubr.bf16.gmra.mrb[0].mxu0 %v516
        %v971 = vpop.f32.mrb[0].mxu0
        %v972 = vadd.f32 %v879, %v971
        %v973 = vpop.f32.mrb[0].mxu0
        %v974 = vpop.f32.mrb[0].mxu0
        %v975 = vadd.f32 %v879, %v974
        %v976 = vpop.f32.mrb[0].mxu0
        %977 = vmatprep.mubr.bf16.mxu0 0
        %978 = vmatmul.mubr.bf16.gmra.mrb[0].mxu0 %v517
        %v979 = vpop.f32.mrb[0].mxu0
        %v980 = vadd.f32 %v879, %v979
        %v981 = vpop.f32.mrb[0].mxu0
        %v982 = vpop.f32.mrb[0].mxu0
        %v983 = vadd.f32 %v879, %v982
        %v984 = vpop.f32.mrb[0].mxu0
        %985 = vmatprep.mubr.bf16.mxu0 0
        %986 = vmatmul.mubr.bf16.gmra.mrb[0].mxu0 %v518
        %v987 = vpop.f32.mrb[0].mxu0
        %v988 = vadd.f32 %v879, %v987
        %v989 = vpop.f32.mrb[0].mxu0
        %v990 = vpop.f32.mrb[0].mxu0
        %v991 = vadd.f32 %v879, %v990
        %v992 = vpop.f32.mrb[0].mxu0
        %993 = vmatprep.mubr.bf16.mxu0 0
        %994 = vmatmul.mubr.bf16.gmra.mrb[0].mxu0 %v519
        %v995 = vpop.f32.mrb[0].mxu0
        %v996 = vadd.f32 %v879, %v995
        %v997 = vpop.f32.mrb[0].mxu0
        %v998 = vpop.f32.mrb[0].mxu0
        %v999 = vadd.f32 %v879, %v998
        %v1000 = vpop.f32.mrb[0].mxu0
        %1001 = vmatprep.mubr.bf16.mxu0 0
        %1002 = vmatmul.mubr.bf16.gmra.mrb[0].mxu0 %v520
        %v1003 = vpop.f32.mrb[0].mxu0
        %v1004 = vadd.f32 %v879, %v1003
        %v1005 = vpop.f32.mrb[0].mxu0
        %v1006 = vpop.f32.mrb[0].mxu0
        %v1007 = vadd.f32 %v879, %v1006
        %v1008 = vpop.f32.mrb[0].mxu0
        %1009 = vmatprep.mubr.bf16.mxu0 0
        %1010 = vmatmul.mubr.bf16.gmra.mrb[0].mxu0 %v521
        %v1011 = vpop.f32.mrb[0].mxu0
        %v1012 = vadd.f32 %v879, %v1011
        %v1013 = vpop.f32.mrb[0].mxu0
        %v1014 = vpop.f32.mrb[0].mxu0
        %v1015 = vadd.f32 %v879, %v1014
        %v1016 = vpop.f32.mrb[0].mxu0
        %1017 = vmatprep.mubr.bf16.mxu0 0
        %1018 = vmatmul.mubr.bf16.gmra.mrb[0].mxu0 %v522
        %v1019 = vpop.f32.mrb[0].mxu0
        %v1020 = vadd.f32 %v879, %v1019
        %v1021 = vpop.f32.mrb[0].mxu0
        %v1022 = vpop.f32.mrb[0].mxu0
        %v1023 = vadd.f32 %v879, %v1022
        %v1024 = vpop.f32.mrb[0].mxu0
        %1025 = vdwg.mxu0
        %1026 = vst [vmem:[#allocation2 + $0x8] sm:$0xff] %v964
        %1027 = vst [vmem:[#allocation2 + $0x10] sm:$0xff] %v967
        %1028 = vst [vmem:[#allocation2 + $0x20] sm:$0xff] %v972
        %1029 = vst [vmem:[#allocation2 + $0x28] sm:$0xff] %v975
        %1030 = vst [vmem:[#allocation2 + $0x38] sm:$0xff] %v980
        %1031 = vst [vmem:[#allocation2 + $0x40] sm:$0xff] %v983
        %1032 = vst [vmem:[#allocation2 + $0x50] sm:$0xff] %v988
        %1033 = vst [vmem:[#allocation2 + $0x58] sm:$0xff] %v991
        %1034 = vst [vmem:[#allocation2 + $0x68] sm:$0xff] %v996
        %1035 = vst [vmem:[#allocation2 + $0x70] sm:$0xff] %v999
        %1036 = vst [vmem:[#allocation2 + $0x80] sm:$0xff] %v1004
        %1037 = vst [vmem:[#allocation2 + $0x88] sm:$0xff] %v1007
        %1038 = vst [vmem:[#allocation2 + $0x98] sm:$0xff] %v1012
        %1039 = vst [vmem:[#allocation2 + $0xa0] sm:$0xff] %v1015
        %1040 = vst [vmem:[#allocation2 + $0xb0] sm:$0xff] %v1020
        %1041 = vst [vmem:[#allocation2 + $0xb8] sm:$0xff] %v1023
        %s1042 = scalar_lea.vmem [#allocation12], 4
        %v1043 = vld [vmem:[%s1042] sm:$0x7]
        %v1044 = vld [vmem:[#allocation2 + $0x6] sm:$0xff]
        %v1045 = vld [vmem:[#allocation2 + $0xe] sm:$0xff]
        %v1046 = vld [vmem:[#allocation2 + $0x1e] sm:$0xff]
        %v1047 = vld [vmem:[#allocation2 + $0x26] sm:$0xff]
        %v1048 = vld [vmem:[#allocation2 + $0x36] sm:$0xff]
        %v1049 = vld [vmem:[#allocation2 + $0x3e] sm:$0xff]
        %v1050 = vld [vmem:[#allocation2 + $0x4e] sm:$0xff]
        %v1051 = vld [vmem:[#allocation2 + $0x56] sm:$0xff]
        %v1052 = vld [vmem:[#allocation2 + $0x66] sm:$0xff]
        %v1053 = vld [vmem:[#allocation2 + $0x6e] sm:$0xff]
        %v1054 = vld [vmem:[#allocation2 + $0x7e] sm:$0xff]
        %v1055 = vld [vmem:[#allocation2 + $0x86] sm:$0xff]
        %v1056 = vld [vmem:[#allocation2 + $0x96] sm:$0xff]
        %v1057 = vld [vmem:[#allocation2 + $0x9e] sm:$0xff]
        %v1058 = vld [vmem:[#allocation2 + $0xae] sm:$0xff]
        %v1059 = vld [vmem:[#allocation2 + $0xb6] sm:$0xff]
        %v1060 = vld [vmem:[#allocation2 + $0x7] sm:$0xff]
        %v1061 = vld [vmem:[#allocation2 + $0xf] sm:$0xff]
        %v1062 = vld [vmem:[#allocation2 + $0x1f] sm:$0xff]
        %v1063 = vld [vmem:[#allocation2 + $0x27] sm:$0xff]
        %v1064 = vld [vmem:[#allocation2 + $0x37] sm:$0xff]
        %v1065 = vld [vmem:[#allocation2 + $0x3f] sm:$0xff]
        %v1066 = vld [vmem:[#allocation2 + $0x4f] sm:$0xff]
        %v1067 = vld [vmem:[#allocation2 + $0x57] sm:$0xff]
        %v1068 = vld [vmem:[#allocation2 + $0x67] sm:$0xff]
        %v1069 = vld [vmem:[#allocation2 + $0x6f] sm:$0xff]
        %v1070 = vld [vmem:[#allocation2 + $0x7f] sm:$0xff]
        %v1071 = vld [vmem:[#allocation2 + $0x87] sm:$0xff]
        %v1072 = vld [vmem:[#allocation2 + $0x97] sm:$0xff]
        %v1073 = vld [vmem:[#allocation2 + $0x9f] sm:$0xff]
        %v1074 = vld [vmem:[#allocation2 + $0xaf] sm:$0xff]
        %v1075 = vld [vmem:[#allocation2 + $0xb7] sm:$0xff]
        %v1076 = vlaneseq
        %v1077 = vshrl.u32 %v1076, 7
        %v1078 = vsub.s32 0, %v1077
        %v1079 = vrot.slane %v1043, %v1078
        %v1080 = vmul.f32 %v1079, %v1044
        %v1081 = vmul.f32 %v1079, %v1045
        %v1082 = vmul.f32 %v1079, %v1046
        %v1083 = vmul.f32 %v1079, %v1047
        %v1084 = vmul.f32 %v1079, %v1048
        %v1085 = vmul.f32 %v1079, %v1049
        %v1086 = vmul.f32 %v1079, %v1050
        %v1087 = vmul.f32 %v1079, %v1051
        %v1088 = vmul.f32 %v1079, %v1052
        %v1089 = vmul.f32 %v1079, %v1053
        %v1090 = vmul.f32 %v1079, %v1054
        %v1091 = vmul.f32 %v1079, %v1055
        %v1092 = vmul.f32 %v1079, %v1056
        %v1093 = vmul.f32 %v1079, %v1057
        %v1094 = vmul.f32 %v1079, %v1058
        %v1095 = vmul.f32 %v1079, %v1059
        %v1096 = vlaneseq
        %v1097 = vshrl.u32 %v1096, 7
        %v1098 = vsub.s32 1, %v1097
        %v1099 = vrot.slane %v1043, %v1098
        %v1100 = vmul.f32 %v1099, %v1060
        %v1101 = vmul.f32 %v1099, %v1061
        %v1102 = vmul.f32 %v1099, %v1062
        %v1103 = vmul.f32 %v1099, %v1063
        %v1104 = vmul.f32 %v1099, %v1064
        %v1105 = vmul.f32 %v1099, %v1065
        %v1106 = vmul.f32 %v1099, %v1066
        %v1107 = vmul.f32 %v1099, %v1067
        %v1108 = vmul.f32 %v1099, %v1068
        %v1109 = vmul.f32 %v1099, %v1069
        %v1110 = vmul.f32 %v1099, %v1070
        %v1111 = vmul.f32 %v1099, %v1071
        %v1112 = vmul.f32 %v1099, %v1072
        %v1113 = vmul.f32 %v1099, %v1073
        %v1114 = vmul.f32 %v1099, %v1074
        %v1115 = vmul.f32 %v1099, %v1075
        %v1116 = vadd.f32 %v1080, %v1100
        %v1117 = vadd.f32 %v1081, %v1101
        %v1118 = vadd.f32 %v1082, %v1102
        %v1119 = vadd.f32 %v1083, %v1103
        %v1120 = vadd.f32 %v1084, %v1104
        %v1121 = vadd.f32 %v1085, %v1105
        %v1122 = vadd.f32 %v1086, %v1106
        %v1123 = vadd.f32 %v1087, %v1107
        %v1124 = vadd.f32 %v1088, %v1108
        %v1125 = vadd.f32 %v1089, %v1109
        %v1126 = vadd.f32 %v1090, %v1110
        %v1127 = vadd.f32 %v1091, %v1111
        %v1128 = vadd.f32 %v1092, %v1112
        %v1129 = vadd.f32 %v1093, %v1113
        %v1130 = vadd.f32 %v1094, %v1114
        %v1131 = vadd.f32 %v1095, %v1115
        %v1132 = vlaneseq
        %v1133 = vshrl.u32 %v1132, 7
        %v1134 = vsub.s32 2, %v1133
        %v1135 = vrot.slane %v1043, %v1134
        %v1136 = vmul.f32 %v1135, %v964
        %v1137 = vmul.f32 %v1135, %v967
        %v1138 = vmul.f32 %v1135, %v972
        %v1139 = vmul.f32 %v1135, %v975
        %v1140 = vmul.f32 %v1135, %v980
        %v1141 = vmul.f32 %v1135, %v983
        %v1142 = vmul.f32 %v1135, %v988
        %v1143 = vmul.f32 %v1135, %v991
        %v1144 = vmul.f32 %v1135, %v996
        %v1145 = vmul.f32 %v1135, %v999
        %v1146 = vmul.f32 %v1135, %v1004
        %v1147 = vmul.f32 %v1135, %v1007
        %v1148 = vmul.f32 %v1135, %v1012
        %v1149 = vmul.f32 %v1135, %v1015
        %v1150 = vmul.f32 %v1135, %v1020
        %v1151 = vmul.f32 %v1135, %v1023
        %v1152 = vadd.f32 %v1116, %v1136
        %v1153 = vadd.f32 %v1117, %v1137
        %v1154 = vadd.f32 %v1118, %v1138
        %v1155 = vadd.f32 %v1119, %v1139
        %v1156 = vadd.f32 %v1120, %v1140
        %v1157 = vadd.f32 %v1121, %v1141
        %v1158 = vadd.f32 %v1122, %v1142
        %v1159 = vadd.f32 %v1123, %v1143
        %v1160 = vadd.f32 %v1124, %v1144
        %v1161 = vadd.f32 %v1125, %v1145
        %v1162 = vadd.f32 %v1126, %v1146
        %v1163 = vadd.f32 %v1127, %v1147
        %v1164 = vadd.f32 %v1128, %v1148
        %v1165 = vadd.f32 %v1129, %v1149
        %v1166 = vadd.f32 %v1130, %v1150
        %v1167 = vadd.f32 %v1131, %v1151
        %s1168 = scalar_lea.vmem [#allocation14], 1
        %v1169 = vld [vmem:[%s1168] sm:$0x1]
        %v1171 = vlaneseq
        %v1172 = vshrl.u32 %v1171, 7
        %v1173 = vsub.s32 0, %v1172
        %v1174 = vrot.slane %v1169, %v1173
        %v1176 = vadd.f32 %v1152, %v1174
        %v1177 = vadd.f32 %v1153, %v1174
        %v1178 = vadd.f32 %v1154, %v1174
        %v1179 = vadd.f32 %v1155, %v1174
        %v1180 = vadd.f32 %v1156, %v1174
        %v1181 = vadd.f32 %v1157, %v1174
        %v1182 = vadd.f32 %v1158, %v1174
        %v1183 = vadd.f32 %v1159, %v1174
        %v1184 = vadd.f32 %v1160, %v1174
        %v1185 = vadd.f32 %v1161, %v1174
        %v1186 = vadd.f32 %v1162, %v1174
        %v1187 = vadd.f32 %v1163, %v1174
        %v1188 = vadd.f32 %v1164, %v1174
        %v1189 = vadd.f32 %v1165, %v1174
        %v1190 = vadd.f32 %v1166, %v1174
        %v1191 = vadd.f32 %v1167, %v1174
        %s1192 = scalar_lea.vmem [#allocation9], 128
        %v1193 = vld [vmem:[%s1192] sm:$0xf]
        %v1194 = vld [vmem:[%s1192 + $0x4] sm:$0xf]
        %v1195 = vld [vmem:[%s1192 + $0x8] sm:$0xf]
        %v1196 = vld [vmem:[%s1192 + $0xc] sm:$0xf]
        %v1197 = vld [vmem:[%s1192 + $0x10] sm:$0xf]
        %v1198 = vld [vmem:[%s1192 + $0x14] sm:$0xf]
        %v1199 = vld [vmem:[%s1192 + $0x18] sm:$0xf]
        %v1200 = vld [vmem:[%s1192 + $0x1c] sm:$0xf]
        %v1201 = vld [vmem:[%s1192 + $0x20] sm:$0xf]
        %v1202 = vld [vmem:[%s1192 + $0x24] sm:$0xf]
        %v1203 = vld [vmem:[%s1192 + $0x28] sm:$0xf]
        %v1204 = vld [vmem:[%s1192 + $0x2c] sm:$0xf]
        %v1205 = vld [vmem:[%s1192 + $0x30] sm:$0xf]
        %v1206 = vld [vmem:[%s1192 + $0x34] sm:$0xf]
        %v1207 = vld [vmem:[%s1192 + $0x38] sm:$0xf]
        %v1208 = vld [vmem:[%s1192 + $0x3c] sm:$0xf]
        %s1209 = scalar_lea.vmem [#allocation11], 2
        %v1210 = vld [vmem:[%s1209] sm:$0x1]
        %v1212 = vlaneseq
        %v1213 = vshrl.u32 %v1212, 7
        %v1214 = vsub.s32 0, %v1213
        %v1215 = vrot.slane %v1210, %v1214
        %v1233 = vunpack.c.l.b16 %v1193
        %v1234 = vunpack.c.l.b16 %v1194
        %v1235 = vunpack.c.l.b16 %v1195
        %v1236 = vunpack.c.l.b16 %v1196
        %v1237 = vunpack.c.l.b16 %v1197
        %v1238 = vunpack.c.l.b16 %v1198
        %v1239 = vunpack.c.l.b16 %v1199
        %v1240 = vunpack.c.l.b16 %v1200
        %v1241 = vunpack.c.l.b16 %v1201
        %v1242 = vunpack.c.l.b16 %v1202
        %v1243 = vunpack.c.l.b16 %v1203
        %v1244 = vunpack.c.l.b16 %v1204
        %v1245 = vunpack.c.l.b16 %v1205
        %v1246 = vunpack.c.l.b16 %v1206
        %v1247 = vunpack.c.l.b16 %v1207
        %v1248 = vunpack.c.l.b16 %v1208
        %v1249 = vpack.c.b16 %v1234, %v1233
        %v1250 = vpack.c.b16 %v1236, %v1235
        %v1251 = vpack.c.b16 %v1238, %v1237
        %v1252 = vpack.c.b16 %v1240, %v1239
        %v1253 = vpack.c.b16 %v1242, %v1241
        %v1254 = vpack.c.b16 %v1244, %v1243
        %v1255 = vpack.c.b16 %v1246, %v1245
        %v1256 = vpack.c.b16 %v1248, %v1247
        %1265 = vmatprep.subr.bf16.mxu0 0
        %1266 = vmatpush1.bf16.msra.mxu0 %v1249
        %1267 = vmatprep.subr.bf16.mxu0 0
        %1268 = vmatpush1.bf16.msra.mxu0 %v1250
        %1269 = vmatprep.subr.bf16.mxu0 0
        %1270 = vmatpush1.bf16.msra.mxu0 %v1251
        %1271 = vmatprep.subr.bf16.mxu0 0
        %1272 = vmatpush1.bf16.msra.mxu0 %v1252
        %1273 = vmatprep.subr.bf16.mxu0 0
        %1274 = vmatpush1.bf16.msra.mxu0 %v1253
        %1275 = vmatprep.subr.bf16.mxu0 0
        %1276 = vmatpush1.bf16.msra.mxu0 %v1254
        %1277 = vmatprep.subr.bf16.mxu0 0
        %1278 = vmatpush1.bf16.msra.mxu0 %v1255
        %1279 = vmatprep.subr.bf16.mxu0 0
        %1280 = vmatpush1.bf16.msra.mxu0 %v1256
        %1281 = vmatprep.subr.bf16.mxu0 0
        %1282 = vmatpush1.bf16.msra.mxu0 0
        %1283 = vmatprep.subr.bf16.mxu0 0
        %1284 = vmatpush1.bf16.msra.mxu0 0
        %1285 = vmatprep.subr.bf16.mxu0 0
        %1286 = vmatpush1.bf16.msra.mxu0 0
        %1287 = vmatprep.subr.bf16.mxu0 0
        %1288 = vmatpush1.bf16.msra.mxu0 0
        %1289 = vmatprep.subr.bf16.mxu0 0
        %1290 = vmatpush1.bf16.msra.mxu0 0
        %1291 = vmatprep.subr.bf16.mxu0 0
        %1292 = vmatpush1.bf16.msra.mxu0 0
        %1293 = vmatprep.subr.bf16.mxu0 0
        %1294 = vmatpush1.bf16.msra.mxu0 0
        %1295 = vmatprep.subr.bf16.mxu0 0
        %1296 = vmatpush1.bf16.msra.mxu0 0
        %1297 = vmatprep.mubr.bf16.mxu0 0
        %1298 = vmatmul.mubr.bf16.gmra.mrb[0].mxu0 %v515
        %v1299 = vpop.f32.mrb[0].mxu0
        %v1300 = vadd.f32 %v1215, %v1299
        %v1301 = vpop.f32.mrb[0].mxu0
        %v1302 = vpop.f32.mrb[0].mxu0
        %v1303 = vadd.f32 %v1215, %v1302
        %v1304 = vpop.f32.mrb[0].mxu0
        %1305 = vmatprep.mubr.bf16.mxu0 0
        %1306 = vmatmul.mubr.bf16.gmra.mrb[0].mxu0 %v516
        %v1307 = vpop.f32.mrb[0].mxu0
        %v1308 = vadd.f32 %v1215, %v1307
        %v1309 = vpop.f32.mrb[0].mxu0
        %v1310 = vpop.f32.mrb[0].mxu0
        %v1311 = vadd.f32 %v1215, %v1310
        %v1312 = vpop.f32.mrb[0].mxu0
        %1313 = vmatprep.mubr.bf16.mxu0 0
        %1314 = vmatmul.mubr.bf16.gmra.mrb[0].mxu0 %v517
        %v1315 = vpop.f32.mrb[0].mxu0
        %v1316 = vadd.f32 %v1215, %v1315
        %v1317 = vpop.f32.mrb[0].mxu0
        %v1318 = vpop.f32.mrb[0].mxu0
        %v1319 = vadd.f32 %v1215, %v1318
        %v1320 = vpop.f32.mrb[0].mxu0
        %1321 = vmatprep.mubr.bf16.mxu0 0
        %1322 = vmatmul.mubr.bf16.gmra.mrb[0].mxu0 %v518
        %v1323 = vpop.f32.mrb[0].mxu0
        %v1324 = vadd.f32 %v1215, %v1323
        %v1325 = vpop.f32.mrb[0].mxu0
        %v1326 = vpop.f32.mrb[0].mxu0
        %v1327 = vadd.f32 %v1215, %v1326
        %v1328 = vpop.f32.mrb[0].mxu0
        %1329 = vmatprep.mubr.bf16.mxu0 0
        %1330 = vmatmul.mubr.bf16.gmra.mrb[0].mxu0 %v519
        %v1331 = vpop.f32.mrb[0].mxu0
        %v1332 = vadd.f32 %v1215, %v1331
        %v1333 = vpop.f32.mrb[0].mxu0
        %v1334 = vpop.f32.mrb[0].mxu0
        %v1335 = vadd.f32 %v1215, %v1334
        %v1336 = vpop.f32.mrb[0].mxu0
        %1337 = vmatprep.mubr.bf16.mxu0 0
        %1338 = vmatmul.mubr.bf16.gmra.mrb[0].mxu0 %v520
        %v1339 = vpop.f32.mrb[0].mxu0
        %v1340 = vadd.f32 %v1215, %v1339
        %v1341 = vpop.f32.mrb[0].mxu0
        %v1342 = vpop.f32.mrb[0].mxu0
        %v1343 = vadd.f32 %v1215, %v1342
        %v1344 = vpop.f32.mrb[0].mxu0
        %1345 = vmatprep.mubr.bf16.mxu0 0
        %1346 = vmatmul.mubr.bf16.gmra.mrb[0].mxu0 %v521
        %v1347 = vpop.f32.mrb[0].mxu0
        %v1348 = vadd.f32 %v1215, %v1347
        %v1349 = vpop.f32.mrb[0].mxu0
        %v1350 = vpop.f32.mrb[0].mxu0
        %v1351 = vadd.f32 %v1215, %v1350
        %v1352 = vpop.f32.mrb[0].mxu0
        %1353 = vmatprep.mubr.bf16.mxu0 0
        %1354 = vmatmul.mubr.bf16.gmra.mrb[0].mxu0 %v522
        %v1355 = vpop.f32.mrb[0].mxu0
        %v1356 = vadd.f32 %v1215, %v1355
        %v1357 = vpop.f32.mrb[0].mxu0
        %v1358 = vpop.f32.mrb[0].mxu0
        %v1359 = vadd.f32 %v1215, %v1358
        %v1360 = vpop.f32.mrb[0].mxu0
        %1361 = vdwg.mxu0
        %1362 = vst [vmem:[#allocation2 + $0x8] sm:$0xff] %v1300
        %1363 = vst [vmem:[#allocation2 + $0x10] sm:$0xff] %v1303
        %1364 = vst [vmem:[#allocation2 + $0x20] sm:$0xff] %v1308
        %1365 = vst [vmem:[#allocation2 + $0x28] sm:$0xff] %v1311
        %1366 = vst [vmem:[#allocation2 + $0x38] sm:$0xff] %v1316
        %1367 = vst [vmem:[#allocation2 + $0x40] sm:$0xff] %v1319
        %1368 = vst [vmem:[#allocation2 + $0x50] sm:$0xff] %v1324
        %1369 = vst [vmem:[#allocation2 + $0x58] sm:$0xff] %v1327
        %1370 = vst [vmem:[#allocation2 + $0x68] sm:$0xff] %v1332
        %1371 = vst [vmem:[#allocation2 + $0x70] sm:$0xff] %v1335
        %1372 = vst [vmem:[#allocation2 + $0x80] sm:$0xff] %v1340
        %1373 = vst [vmem:[#allocation2 + $0x88] sm:$0xff] %v1343
        %1374 = vst [vmem:[#allocation2 + $0x98] sm:$0xff] %v1348
        %1375 = vst [vmem:[#allocation2 + $0xa0] sm:$0xff] %v1351
        %1376 = vst [vmem:[#allocation2 + $0xb0] sm:$0xff] %v1356
        %1377 = vst [vmem:[#allocation2 + $0xb8] sm:$0xff] %v1359
        %s1378 = scalar_lea.vmem [#allocation12], 8
        %v1379 = vld [vmem:[%s1378] sm:$0x7]
        %v1380 = vld [vmem:[#allocation2 + $0x6] sm:$0xff]
        %v1381 = vld [vmem:[#allocation2 + $0xe] sm:$0xff]
        %v1382 = vld [vmem:[#allocation2 + $0x1e] sm:$0xff]
        %v1383 = vld [vmem:[#allocation2 + $0x26] sm:$0xff]
        %v1384 = vld [vmem:[#allocation2 + $0x36] sm:$0xff]
        %v1385 = vld [vmem:[#allocation2 + $0x3e] sm:$0xff]
        %v1386 = vld [vmem:[#allocation2 + $0x4e] sm:$0xff]
        %v1387 = vld [vmem:[#allocation2 + $0x56] sm:$0xff]
        %v1388 = vld [vmem:[#allocation2 + $0x66] sm:$0xff]
        %v1389 = vld [vmem:[#allocation2 + $0x6e] sm:$0xff]
        %v1390 = vld [vmem:[#allocation2 + $0x7e] sm:$0xff]
        %v1391 = vld [vmem:[#allocation2 + $0x86] sm:$0xff]
        %v1392 = vld [vmem:[#allocation2 + $0x96] sm:$0xff]
        %v1393 = vld [vmem:[#allocation2 + $0x9e] sm:$0xff]
        %v1394 = vld [vmem:[#allocation2 + $0xae] sm:$0xff]
        %v1395 = vld [vmem:[#allocation2 + $0xb6] sm:$0xff]
        %v1396 = vld [vmem:[#allocation2 + $0x7] sm:$0xff]
        %v1397 = vld [vmem:[#allocation2 + $0xf] sm:$0xff]
        %v1398 = vld [vmem:[#allocation2 + $0x1f] sm:$0xff]
        %v1399 = vld [vmem:[#allocation2 + $0x27] sm:$0xff]
        %v1400 = vld [vmem:[#allocation2 + $0x37] sm:$0xff]
        %v1401 = vld [vmem:[#allocation2 + $0x3f] sm:$0xff]
        %v1402 = vld [vmem:[#allocation2 + $0x4f] sm:$0xff]
        %v1403 = vld [vmem:[#allocation2 + $0x57] sm:$0xff]
        %v1404 = vld [vmem:[#allocation2 + $0x67] sm:$0xff]
        %v1405 = vld [vmem:[#allocation2 + $0x6f] sm:$0xff]
        %v1406 = vld [vmem:[#allocation2 + $0x7f] sm:$0xff]
        %v1407 = vld [vmem:[#allocation2 + $0x87] sm:$0xff]
        %v1408 = vld [vmem:[#allocation2 + $0x97] sm:$0xff]
        %v1409 = vld [vmem:[#allocation2 + $0x9f] sm:$0xff]
        %v1410 = vld [vmem:[#allocation2 + $0xaf] sm:$0xff]
        %v1411 = vld [vmem:[#allocation2 + $0xb7] sm:$0xff]
        %v1412 = vlaneseq
        %v1413 = vshrl.u32 %v1412, 7
        %v1414 = vsub.s32 0, %v1413
        %v1415 = vrot.slane %v1379, %v1414
        %v1416 = vmul.f32 %v1415, %v1380
        %v1417 = vmul.f32 %v1415, %v1381
        %v1418 = vmul.f32 %v1415, %v1382
        %v1419 = vmul.f32 %v1415, %v1383
        %v1420 = vmul.f32 %v1415, %v1384
        %v1421 = vmul.f32 %v1415, %v1385
        %v1422 = vmul.f32 %v1415, %v1386
        %v1423 = vmul.f32 %v1415, %v1387
        %v1424 = vmul.f32 %v1415, %v1388
        %v1425 = vmul.f32 %v1415, %v1389
        %v1426 = vmul.f32 %v1415, %v1390
        %v1427 = vmul.f32 %v1415, %v1391
        %v1428 = vmul.f32 %v1415, %v1392
        %v1429 = vmul.f32 %v1415, %v1393
        %v1430 = vmul.f32 %v1415, %v1394
        %v1431 = vmul.f32 %v1415, %v1395
        %v1432 = vlaneseq
        %v1433 = vshrl.u32 %v1432, 7
        %v1434 = vsub.s32 1, %v1433
        %v1435 = vrot.slane %v1379, %v1434
        %v1436 = vmul.f32 %v1435, %v1396
        %v1437 = vmul.f32 %v1435, %v1397
        %v1438 = vmul.f32 %v1435, %v1398
        %v1439 = vmul.f32 %v1435, %v1399
        %v1440 = vmul.f32 %v1435, %v1400
        %v1441 = vmul.f32 %v1435, %v1401
        %v1442 = vmul.f32 %v1435, %v1402
        %v1443 = vmul.f32 %v1435, %v1403
        %v1444 = vmul.f32 %v1435, %v1404
        %v1445 = vmul.f32 %v1435, %v1405
        %v1446 = vmul.f32 %v1435, %v1406
        %v1447 = vmul.f32 %v1435, %v1407
        %v1448 = vmul.f32 %v1435, %v1408
        %v1449 = vmul.f32 %v1435, %v1409
        %v1450 = vmul.f32 %v1435, %v1410
        %v1451 = vmul.f32 %v1435, %v1411
        %v1452 = vadd.f32 %v1416, %v1436
        %v1453 = vadd.f32 %v1417, %v1437
        %v1454 = vadd.f32 %v1418, %v1438
        %v1455 = vadd.f32 %v1419, %v1439
        %v1456 = vadd.f32 %v1420, %v1440
        %v1457 = vadd.f32 %v1421, %v1441
        %v1458 = vadd.f32 %v1422, %v1442
        %v1459 = vadd.f32 %v1423, %v1443
        %v1460 = vadd.f32 %v1424, %v1444
        %v1461 = vadd.f32 %v1425, %v1445
        %v1462 = vadd.f32 %v1426, %v1446
        %v1463 = vadd.f32 %v1427, %v1447
        %v1464 = vadd.f32 %v1428, %v1448
        %v1465 = vadd.f32 %v1429, %v1449
        %v1466 = vadd.f32 %v1430, %v1450
        %v1467 = vadd.f32 %v1431, %v1451
        %v1468 = vlaneseq
        %v1469 = vshrl.u32 %v1468, 7
        %v1470 = vsub.s32 2, %v1469
        %v1471 = vrot.slane %v1379, %v1470
        %v1472 = vmul.f32 %v1471, %v1300
        %v1473 = vmul.f32 %v1471, %v1303
        %v1474 = vmul.f32 %v1471, %v1308
        %v1475 = vmul.f32 %v1471, %v1311
        %v1476 = vmul.f32 %v1471, %v1316
        %v1477 = vmul.f32 %v1471, %v1319
        %v1478 = vmul.f32 %v1471, %v1324
        %v1479 = vmul.f32 %v1471, %v1327
        %v1480 = vmul.f32 %v1471, %v1332
        %v1481 = vmul.f32 %v1471, %v1335
        %v1482 = vmul.f32 %v1471, %v1340
        %v1483 = vmul.f32 %v1471, %v1343
        %v1484 = vmul.f32 %v1471, %v1348
        %v1485 = vmul.f32 %v1471, %v1351
        %v1486 = vmul.f32 %v1471, %v1356
        %v1487 = vmul.f32 %v1471, %v1359
        %v1488 = vadd.f32 %v1452, %v1472
        %v1489 = vadd.f32 %v1453, %v1473
        %v1490 = vadd.f32 %v1454, %v1474
        %v1491 = vadd.f32 %v1455, %v1475
        %v1492 = vadd.f32 %v1456, %v1476
        %v1493 = vadd.f32 %v1457, %v1477
        %v1494 = vadd.f32 %v1458, %v1478
        %v1495 = vadd.f32 %v1459, %v1479
        %v1496 = vadd.f32 %v1460, %v1480
        %v1497 = vadd.f32 %v1461, %v1481
        %v1498 = vadd.f32 %v1462, %v1482
        %v1499 = vadd.f32 %v1463, %v1483
        %v1500 = vadd.f32 %v1464, %v1484
        %v1501 = vadd.f32 %v1465, %v1485
        %v1502 = vadd.f32 %v1466, %v1486
        %v1503 = vadd.f32 %v1467, %v1487
        %s1504 = scalar_lea.vmem [#allocation14], 2
        %v1505 = vld [vmem:[%s1504] sm:$0x1]
        %v1507 = vlaneseq
        %v1508 = vshrl.u32 %v1507, 7
        %v1509 = vsub.s32 0, %v1508
        %v1510 = vrot.slane %v1505, %v1509
        %v1512 = vadd.f32 %v1488, %v1510
        %v1513 = vadd.f32 %v1489, %v1510
        %v1514 = vadd.f32 %v1490, %v1510
        %v1515 = vadd.f32 %v1491, %v1510
        %v1516 = vadd.f32 %v1492, %v1510
        %v1517 = vadd.f32 %v1493, %v1510
        %v1518 = vadd.f32 %v1494, %v1510
        %v1519 = vadd.f32 %v1495, %v1510
        %v1520 = vadd.f32 %v1496, %v1510
        %v1521 = vadd.f32 %v1497, %v1510
        %v1522 = vadd.f32 %v1498, %v1510
        %v1523 = vadd.f32 %v1499, %v1510
        %v1524 = vadd.f32 %v1500, %v1510
        %v1525 = vadd.f32 %v1501, %v1510
        %v1526 = vadd.f32 %v1502, %v1510
        %v1527 = vadd.f32 %v1503, %v1510
        %v1528 = vmul.f32 %v1512, %v1176
        %v1529 = vmul.f32 %v1513, %v1177
        %v1530 = vmul.f32 %v1514, %v1178
        %v1531 = vmul.f32 %v1515, %v1179
        %v1532 = vmul.f32 %v1516, %v1180
        %v1533 = vmul.f32 %v1517, %v1181
        %v1534 = vmul.f32 %v1518, %v1182
        %v1535 = vmul.f32 %v1519, %v1183
        %v1536 = vmul.f32 %v1520, %v1184
        %v1537 = vmul.f32 %v1521, %v1185
        %v1538 = vmul.f32 %v1522, %v1186
        %v1539 = vmul.f32 %v1523, %v1187
        %v1540 = vmul.f32 %v1524, %v1188
        %v1541 = vmul.f32 %v1525, %v1189
        %v1542 = vmul.f32 %v1526, %v1190
        %v1543 = vmul.f32 %v1527, %v1191
        %1544 = vst [vmem:[#allocation3 + $0x8] sm:$0xff] %v1528
        %1545 = vst [vmem:[#allocation3 + $0x10] sm:$0xff] %v1529
        %1546 = vst [vmem:[#allocation3 + $0x20] sm:$0xff] %v1530
        %1547 = vst [vmem:[#allocation3 + $0x28] sm:$0xff] %v1531
        %1548 = vst [vmem:[#allocation3 + $0x38] sm:$0xff] %v1532
        %1549 = vst [vmem:[#allocation3 + $0x40] sm:$0xff] %v1533
        %1550 = vst [vmem:[#allocation3 + $0x50] sm:$0xff] %v1534
        %1551 = vst [vmem:[#allocation3 + $0x58] sm:$0xff] %v1535
        %1552 = vst [vmem:[#allocation3 + $0x68] sm:$0xff] %v1536
        %1553 = vst [vmem:[#allocation3 + $0x70] sm:$0xff] %v1537
        %1554 = vst [vmem:[#allocation3 + $0x80] sm:$0xff] %v1538
        %1555 = vst [vmem:[#allocation3 + $0x88] sm:$0xff] %v1539
        %1556 = vst [vmem:[#allocation3 + $0x98] sm:$0xff] %v1540
        %1557 = vst [vmem:[#allocation3 + $0xa0] sm:$0xff] %v1541
        %1558 = vst [vmem:[#allocation3 + $0xb0] sm:$0xff] %v1542
        %1559 = vst [vmem:[#allocation3 + $0xb8] sm:$0xff] %v1543
        %v1560 = vld [vmem:[%s6] sm:$0x1]
        %v1561 = vld [vmem:[%s5] sm:$0xff]
        %s1562 = ssub.s32 8, 0
        %s1563 = scalar_lea.vmem [#allocation3], %s1562
        %v1564 = vld [vmem:[%s1563] sm:$0xff]
        %v1565 = vld [vmem:[%s1563 + $0x18] sm:$0xff]
        %v1566 = vld [vmem:[%s1563 + $0x30] sm:$0xff]
        %v1567 = vld [vmem:[%s1563 + $0x48] sm:$0xff]
        %v1568 = vld [vmem:[%s1563 + $0x60] sm:$0xff]
        %v1569 = vld [vmem:[%s1563 + $0x78] sm:$0xff]
        %v1570 = vld [vmem:[%s1563 + $0x90] sm:$0xff]
        %v1571 = vld [vmem:[%s1563 + $0xa8] sm:$0xff]
        %v1572 = vlaneseq
        %v1573 = vshrl.u32 %v1572, 7
        %v1574 = vsub.s32 0, %v1573
        %v1575 = vrot.slane %v1561, %v1574
        %v1576 = vmul.f32 %v1575, %v1564
        %v1577 = vmul.f32 %v1575, %v1565
        %v1578 = vmul.f32 %v1575, %v1566
        %v1579 = vmul.f32 %v1575, %v1567
        %v1580 = vmul.f32 %v1575, %v1568
        %v1581 = vmul.f32 %v1575, %v1569
        %v1582 = vmul.f32 %v1575, %v1570
        %v1583 = vmul.f32 %v1575, %v1571
        %v1584 = vadd.f32 %v1576, 0.0
        %v1585 = vadd.f32 %v1577, 0.0
        %v1586 = vadd.f32 %v1578, 0.0
        %v1587 = vadd.f32 %v1579, 0.0
        %v1588 = vadd.f32 %v1580, 0.0
        %v1589 = vadd.f32 %v1581, 0.0
        %v1590 = vadd.f32 %v1582, 0.0
        %v1591 = vadd.f32 %v1583, 0.0
        %s1592 = ssub.s32 7, 0
        %s1593 = scalar_lea.vmem [#allocation3], %s1592
        %v1594 = vld [vmem:[%s1593] sm:$0xff]
        %v1595 = vld [vmem:[%s1593 + $0x18] sm:$0xff]
        %v1596 = vld [vmem:[%s1593 + $0x30] sm:$0xff]
        %v1597 = vld [vmem:[%s1593 + $0x48] sm:$0xff]
        %v1598 = vld [vmem:[%s1593 + $0x60] sm:$0xff]
        %v1599 = vld [vmem:[%s1593 + $0x78] sm:$0xff]
        %v1600 = vld [vmem:[%s1593 + $0x90] sm:$0xff]
        %v1601 = vld [vmem:[%s1593 + $0xa8] sm:$0xff]
        %v1602 = vlaneseq
        %v1603 = vshrl.u32 %v1602, 7
        %v1604 = vsub.s32 1, %v1603
        %v1605 = vrot.slane %v1561, %v1604
        %v1606 = vmul.f32 %v1605, %v1594
        %v1607 = vmul.f32 %v1605, %v1595
        %v1608 = vmul.f32 %v1605, %v1596
        %v1609 = vmul.f32 %v1605, %v1597
        %v1610 = vmul.f32 %v1605, %v1598
        %v1611 = vmul.f32 %v1605, %v1599
        %v1612 = vmul.f32 %v1605, %v1600
        %v1613 = vmul.f32 %v1605, %v1601
        %v1614 = vadd.f32 %v1584, %v1606
        %v1615 = vadd.f32 %v1585, %v1607
        %v1616 = vadd.f32 %v1586, %v1608
        %v1617 = vadd.f32 %v1587, %v1609
        %v1618 = vadd.f32 %v1588, %v1610
        %v1619 = vadd.f32 %v1589, %v1611
        %v1620 = vadd.f32 %v1590, %v1612
        %v1621 = vadd.f32 %v1591, %v1613
        %s1622 = ssub.s32 6, 0
        %s1623 = scalar_lea.vmem [#allocation3], %s1622
        %v1624 = vld [vmem:[%s1623] sm:$0xff]
        %v1625 = vld [vmem:[%s1623 + $0x18] sm:$0xff]
        %v1626 = vld [vmem:[%s1623 + $0x30] sm:$0xff]
        %v1627 = vld [vmem:[%s1623 + $0x48] sm:$0xff]
        %v1628 = vld [vmem:[%s1623 + $0x60] sm:$0xff]
        %v1629 = vld [vmem:[%s1623 + $0x78] sm:$0xff]
        %v1630 = vld [vmem:[%s1623 + $0x90] sm:$0xff]
        %v1631 = vld [vmem:[%s1623 + $0xa8] sm:$0xff]
        %v1632 = vlaneseq
        %v1633 = vshrl.u32 %v1632, 7
        %v1634 = vsub.s32 2, %v1633
        %v1635 = vrot.slane %v1561, %v1634
        %v1636 = vmul.f32 %v1635, %v1624
        %v1637 = vmul.f32 %v1635, %v1625
        %v1638 = vmul.f32 %v1635, %v1626
        %v1639 = vmul.f32 %v1635, %v1627
        %v1640 = vmul.f32 %v1635, %v1628
        %v1641 = vmul.f32 %v1635, %v1629
        %v1642 = vmul.f32 %v1635, %v1630
        %v1643 = vmul.f32 %v1635, %v1631
        %v1644 = vadd.f32 %v1614, %v1636
        %v1645 = vadd.f32 %v1615, %v1637
        %v1646 = vadd.f32 %v1616, %v1638
        %v1647 = vadd.f32 %v1617, %v1639
        %v1648 = vadd.f32 %v1618, %v1640
        %v1649 = vadd.f32 %v1619, %v1641
        %v1650 = vadd.f32 %v1620, %v1642
        %v1651 = vadd.f32 %v1621, %v1643
        %s1652 = ssub.s32 5, 0
        %s1653 = scalar_lea.vmem [#allocation3], %s1652
        %v1654 = vld [vmem:[%s1653] sm:$0xff]
        %v1655 = vld [vmem:[%s1653 + $0x18] sm:$0xff]
        %v1656 = vld [vmem:[%s1653 + $0x30] sm:$0xff]
        %v1657 = vld [vmem:[%s1653 + $0x48] sm:$0xff]
        %v1658 = vld [vmem:[%s1653 + $0x60] sm:$0xff]
        %v1659 = vld [vmem:[%s1653 + $0x78] sm:$0xff]
        %v1660 = vld [vmem:[%s1653 + $0x90] sm:$0xff]
        %v1661 = vld [vmem:[%s1653 + $0xa8] sm:$0xff]
        %v1662 = vlaneseq
        %v1663 = vshrl.u32 %v1662, 7
        %v1664 = vsub.s32 3, %v1663
        %v1665 = vrot.slane %v1561, %v1664
        %v1666 = vmul.f32 %v1665, %v1654
        %v1667 = vmul.f32 %v1665, %v1655
        %v1668 = vmul.f32 %v1665, %v1656
        %v1669 = vmul.f32 %v1665, %v1657
        %v1670 = vmul.f32 %v1665, %v1658
        %v1671 = vmul.f32 %v1665, %v1659
        %v1672 = vmul.f32 %v1665, %v1660
        %v1673 = vmul.f32 %v1665, %v1661
        %v1674 = vadd.f32 %v1644, %v1666
        %v1675 = vadd.f32 %v1645, %v1667
        %v1676 = vadd.f32 %v1646, %v1668
        %v1677 = vadd.f32 %v1647, %v1669
        %v1678 = vadd.f32 %v1648, %v1670
        %v1679 = vadd.f32 %v1649, %v1671
        %v1680 = vadd.f32 %v1650, %v1672
        %v1681 = vadd.f32 %v1651, %v1673
        %s1682 = ssub.s32 4, 0
        %s1683 = scalar_lea.vmem [#allocation3], %s1682
        %v1684 = vld [vmem:[%s1683] sm:$0xff]
        %v1685 = vld [vmem:[%s1683 + $0x18] sm:$0xff]
        %v1686 = vld [vmem:[%s1683 + $0x30] sm:$0xff]
        %v1687 = vld [vmem:[%s1683 + $0x48] sm:$0xff]
        %v1688 = vld [vmem:[%s1683 + $0x60] sm:$0xff]
        %v1689 = vld [vmem:[%s1683 + $0x78] sm:$0xff]
        %v1690 = vld [vmem:[%s1683 + $0x90] sm:$0xff]
        %v1691 = vld [vmem:[%s1683 + $0xa8] sm:$0xff]
        %v1692 = vlaneseq
        %v1693 = vshrl.u32 %v1692, 7
        %v1694 = vsub.s32 4, %v1693
        %v1695 = vrot.slane %v1561, %v1694
        %v1696 = vmul.f32 %v1695, %v1684
        %v1697 = vmul.f32 %v1695, %v1685
        %v1698 = vmul.f32 %v1695, %v1686
        %v1699 = vmul.f32 %v1695, %v1687
        %v1700 = vmul.f32 %v1695, %v1688
        %v1701 = vmul.f32 %v1695, %v1689
        %v1702 = vmul.f32 %v1695, %v1690
        %v1703 = vmul.f32 %v1695, %v1691
        %v1704 = vadd.f32 %v1674, %v1696
        %v1705 = vadd.f32 %v1675, %v1697
        %v1706 = vadd.f32 %v1676, %v1698
        %v1707 = vadd.f32 %v1677, %v1699
        %v1708 = vadd.f32 %v1678, %v1700
        %v1709 = vadd.f32 %v1679, %v1701
        %v1710 = vadd.f32 %v1680, %v1702
        %v1711 = vadd.f32 %v1681, %v1703
        %s1712 = ssub.s32 3, 0
        %s1713 = scalar_lea.vmem [#allocation3], %s1712
        %v1714 = vld [vmem:[%s1713] sm:$0xff]
        %v1715 = vld [vmem:[%s1713 + $0x18] sm:$0xff]
        %v1716 = vld [vmem:[%s1713 + $0x30] sm:$0xff]
        %v1717 = vld [vmem:[%s1713 + $0x48] sm:$0xff]
        %v1718 = vld [vmem:[%s1713 + $0x60] sm:$0xff]
        %v1719 = vld [vmem:[%s1713 + $0x78] sm:$0xff]
        %v1720 = vld [vmem:[%s1713 + $0x90] sm:$0xff]
        %v1721 = vld [vmem:[%s1713 + $0xa8] sm:$0xff]
        %v1722 = vlaneseq
        %v1723 = vshrl.u32 %v1722, 7
        %v1724 = vsub.s32 5, %v1723
        %v1725 = vrot.slane %v1561, %v1724
        %v1726 = vmul.f32 %v1725, %v1714
        %v1727 = vmul.f32 %v1725, %v1715
        %v1728 = vmul.f32 %v1725, %v1716
        %v1729 = vmul.f32 %v1725, %v1717
        %v1730 = vmul.f32 %v1725, %v1718
        %v1731 = vmul.f32 %v1725, %v1719
        %v1732 = vmul.f32 %v1725, %v1720
        %v1733 = vmul.f32 %v1725, %v1721
        %v1734 = vadd.f32 %v1704, %v1726
        %v1735 = vadd.f32 %v1705, %v1727
        %v1736 = vadd.f32 %v1706, %v1728
        %v1737 = vadd.f32 %v1707, %v1729
        %v1738 = vadd.f32 %v1708, %v1730
        %v1739 = vadd.f32 %v1709, %v1731
        %v1740 = vadd.f32 %v1710, %v1732
        %v1741 = vadd.f32 %v1711, %v1733
        %s1742 = ssub.s32 2, 0
        %s1743 = scalar_lea.vmem [#allocation3], %s1742
        %v1744 = vld [vmem:[%s1743] sm:$0xff]
        %v1745 = vld [vmem:[%s1743 + $0x18] sm:$0xff]
        %v1746 = vld [vmem:[%s1743 + $0x30] sm:$0xff]
        %v1747 = vld [vmem:[%s1743 + $0x48] sm:$0xff]
        %v1748 = vld [vmem:[%s1743 + $0x60] sm:$0xff]
        %v1749 = vld [vmem:[%s1743 + $0x78] sm:$0xff]
        %v1750 = vld [vmem:[%s1743 + $0x90] sm:$0xff]
        %v1751 = vld [vmem:[%s1743 + $0xa8] sm:$0xff]
        %v1752 = vlaneseq
        %v1753 = vshrl.u32 %v1752, 7
        %v1754 = vsub.s32 6, %v1753
        %v1755 = vrot.slane %v1561, %v1754
        %v1756 = vmul.f32 %v1755, %v1744
        %v1757 = vmul.f32 %v1755, %v1745
        %v1758 = vmul.f32 %v1755, %v1746
        %v1759 = vmul.f32 %v1755, %v1747
        %v1760 = vmul.f32 %v1755, %v1748
        %v1761 = vmul.f32 %v1755, %v1749
        %v1762 = vmul.f32 %v1755, %v1750
        %v1763 = vmul.f32 %v1755, %v1751
        %v1764 = vadd.f32 %v1734, %v1756
        %v1765 = vadd.f32 %v1735, %v1757
        %v1766 = vadd.f32 %v1736, %v1758
        %v1767 = vadd.f32 %v1737, %v1759
        %v1768 = vadd.f32 %v1738, %v1760
        %v1769 = vadd.f32 %v1739, %v1761
        %v1770 = vadd.f32 %v1740, %v1762
        %v1771 = vadd.f32 %v1741, %v1763
        %s1772 = ssub.s32 1, 0
        %s1773 = scalar_lea.vmem [#allocation3], %s1772
        %v1774 = vld [vmem:[%s1773] sm:$0xff]
        %v1775 = vld [vmem:[%s1773 + $0x18] sm:$0xff]
        %v1776 = vld [vmem:[%s1773 + $0x30] sm:$0xff]
        %v1777 = vld [vmem:[%s1773 + $0x48] sm:$0xff]
        %v1778 = vld [vmem:[%s1773 + $0x60] sm:$0xff]
        %v1779 = vld [vmem:[%s1773 + $0x78] sm:$0xff]
        %v1780 = vld [vmem:[%s1773 + $0x90] sm:$0xff]
        %v1781 = vld [vmem:[%s1773 + $0xa8] sm:$0xff]
        %v1782 = vlaneseq
        %v1783 = vshrl.u32 %v1782, 7
        %v1784 = vsub.s32 7, %v1783
        %v1785 = vrot.slane %v1561, %v1784
        %v1786 = vmul.f32 %v1785, %v1774
        %v1787 = vmul.f32 %v1785, %v1775
        %v1788 = vmul.f32 %v1785, %v1776
        %v1789 = vmul.f32 %v1785, %v1777
        %v1790 = vmul.f32 %v1785, %v1778
        %v1791 = vmul.f32 %v1785, %v1779
        %v1792 = vmul.f32 %v1785, %v1780
        %v1793 = vmul.f32 %v1785, %v1781
        %v1794 = vadd.f32 %v1764, %v1786
        %v1795 = vadd.f32 %v1765, %v1787
        %v1796 = vadd.f32 %v1766, %v1788
        %v1797 = vadd.f32 %v1767, %v1789
        %v1798 = vadd.f32 %v1768, %v1790
        %v1799 = vadd.f32 %v1769, %v1791
        %v1800 = vadd.f32 %v1770, %v1792
        %v1801 = vadd.f32 %v1771, %v1793
        %v1802 = vld [vmem:[#allocation3 + $0x8] sm:$0xff]
        %v1803 = vld [vmem:[#allocation3 + $0x20] sm:$0xff]
        %v1804 = vld [vmem:[#allocation3 + $0x38] sm:$0xff]
        %v1805 = vld [vmem:[#allocation3 + $0x50] sm:$0xff]
        %v1806 = vld [vmem:[#allocation3 + $0x68] sm:$0xff]
        %v1807 = vld [vmem:[#allocation3 + $0x80] sm:$0xff]
        %v1808 = vld [vmem:[#allocation3 + $0x98] sm:$0xff]
        %v1809 = vld [vmem:[#allocation3 + $0xb0] sm:$0xff]
        %v1810 = vld [vmem:[#allocation4] sm:$0xff]
        %v1811 = vld [vmem:[#allocation4 + $0x10] sm:$0xff]
        %v1812 = vld [vmem:[#allocation4 + $0x20] sm:$0xff]
        %v1813 = vld [vmem:[#allocation4 + $0x30] sm:$0xff]
        %v1814 = vld [vmem:[#allocation4 + $0x40] sm:$0xff]
        %v1815 = vld [vmem:[#allocation4 + $0x50] sm:$0xff]
        %v1816 = vld [vmem:[#allocation4 + $0x60] sm:$0xff]
        %v1817 = vld [vmem:[#allocation4 + $0x70] sm:$0xff]
        %v1819 = vlaneseq
        %v1820 = vshrl.u32 %v1819, 7
        %v1821 = vsub.s32 0, %v1820
        %v1822 = vrot.slane %v1560, %v1821
        %v1824 = vmul.f32 %v1802, %v1822
        %v1825 = vmul.f32 %v1803, %v1822
        %v1826 = vmul.f32 %v1804, %v1822
        %v1827 = vmul.f32 %v1805, %v1822
        %v1828 = vmul.f32 %v1806, %v1822
        %v1829 = vmul.f32 %v1807, %v1822
        %v1830 = vmul.f32 %v1808, %v1822
        %v1831 = vmul.f32 %v1809, %v1822
        %v1832 = vadd.f32 %v1794, %v1824
        %v1833 = vadd.f32 %v1795, %v1825
        %v1834 = vadd.f32 %v1796, %v1826
        %v1835 = vadd.f32 %v1797, %v1827
        %v1836 = vadd.f32 %v1798, %v1828
        %v1837 = vadd.f32 %v1799, %v1829
        %v1838 = vadd.f32 %v1800, %v1830
        %v1839 = vadd.f32 %v1801, %v1831
        %v1840 = vmul.f32 %v1832, %v1810
        %v1841 = vmul.f32 %v1833, %v1811
        %v1842 = vmul.f32 %v1834, %v1812
        %v1843 = vmul.f32 %v1835, %v1813
        %v1844 = vmul.f32 %v1836, %v1814
        %v1845 = vmul.f32 %v1837, %v1815
        %v1846 = vmul.f32 %v1838, %v1816
        %v1847 = vmul.f32 %v1839, %v1817
        %v1848 = vpack.c.bf16 %v1840, %v1840
        %v1849 = vpack.c.bf16 %v1841, %v1841
        %v1850 = vpack.c.bf16 %v1842, %v1842
        %v1851 = vpack.c.bf16 %v1843, %v1843
        %v1852 = vpack.c.bf16 %v1844, %v1844
        %v1853 = vpack.c.bf16 %v1845, %v1845
        %v1854 = vpack.c.bf16 %v1846, %v1846
        %v1855 = vpack.c.bf16 %v1847, %v1847
        %1856 = vst [vmem:[#allocation5] sm:$0xf] %v1848
        %1857 = vst [vmem:[#allocation5 + $0x8] sm:$0xf] %v1849
        %1858 = vst [vmem:[#allocation5 + $0x10] sm:$0xf] %v1850
        %1859 = vst [vmem:[#allocation5 + $0x18] sm:$0xf] %v1851
        %1860 = vst [vmem:[#allocation5 + $0x20] sm:$0xf] %v1852
        %1861 = vst [vmem:[#allocation5 + $0x28] sm:$0xf] %v1853
        %1862 = vst [vmem:[#allocation5 + $0x30] sm:$0xf] %v1854
        %1863 = vst [vmem:[#allocation5 + $0x38] sm:$0xf] %v1855
        loop: start=0, step=1, limit=2
        $region81: #{tpu_custom_call.1} parent=55 // loop_pre_header
          _
        $region82: #{tpu_custom_call.1} parent=55 // loop_header
          %s1865 = sphi 0, %s1869
          %p1866 = scmp.ge.s32.totalorder %s1865, 2
          %v1870 = vphi 0.0, %v2113
          %v1871 = vphi 0.0, %v2114
          %v1872 = vphi 0.0, %v2115
          %v1873 = vphi 0.0, %v2116
          %v1874 = vphi 0.0, %v2117
          %v1875 = vphi 0.0, %v2118
          %v1876 = vphi 0.0, %v2119
          %v1877 = vphi 0.0, %v2120
        $region83: #{tpu_custom_call.1} parent=55 // loop_header_branch
          %1868 = sbr.rel (%p1866) target = $region87
        $region84: #{tpu_custom_call.1} parent=55 // loop_body
          %s1878 = smul.u32 %s1865, 8
          %s1879 = scalar_lea.vmem %s5, %s1878
          %v1880 = vld [vmem:[%s1879] sm:$0xff]
          %s1881 = ssub.s32 16, %s1878
          %s1882 = scalar_lea.vmem [#allocation3], %s1881
          %v1883 = vld [vmem:[%s1882] sm:$0xff]
          %v1884 = vld [vmem:[%s1882 + $0x18] sm:$0xff]
          %v1885 = vld [vmem:[%s1882 + $0x30] sm:$0xff]
          %v1886 = vld [vmem:[%s1882 + $0x48] sm:$0xff]
          %v1887 = vld [vmem:[%s1882 + $0x60] sm:$0xff]
          %v1888 = vld [vmem:[%s1882 + $0x78] sm:$0xff]
          %v1889 = vld [vmem:[%s1882 + $0x90] sm:$0xff]
          %v1890 = vld [vmem:[%s1882 + $0xa8] sm:$0xff]
          %v1891 = vlaneseq
          %v1892 = vshrl.u32 %v1891, 7
          %v1893 = vsub.s32 0, %v1892
          %v1894 = vrot.slane %v1880, %v1893
          %v1895 = vmul.f32 %v1894, %v1883
          %v1896 = vmul.f32 %v1894, %v1884
          %v1897 = vmul.f32 %v1894, %v1885
          %v1898 = vmul.f32 %v1894, %v1886
          %v1899 = vmul.f32 %v1894, %v1887
          %v1900 = vmul.f32 %v1894, %v1888
          %v1901 = vmul.f32 %v1894, %v1889
          %v1902 = vmul.f32 %v1894, %v1890
          %v1903 = vadd.f32 %v1870, %v1895
          %v1904 = vadd.f32 %v1871, %v1896
          %v1905 = vadd.f32 %v1872, %v1897
          %v1906 = vadd.f32 %v1873, %v1898
          %v1907 = vadd.f32 %v1874, %v1899
          %v1908 = vadd.f32 %v1875, %v1900
          %v1909 = vadd.f32 %v1876, %v1901
          %v1910 = vadd.f32 %v1877, %v1902
          %s1911 = ssub.s32 15, %s1878
          %s1912 = scalar_lea.vmem [#allocation3], %s1911
          %v1913 = vld [vmem:[%s1912] sm:$0xff]
          %v1914 = vld [vmem:[%s1912 + $0x18] sm:$0xff]
          %v1915 = vld [vmem:[%s1912 + $0x30] sm:$0xff]
          %v1916 = vld [vmem:[%s1912 + $0x48] sm:$0xff]
          %v1917 = vld [vmem:[%s1912 + $0x60] sm:$0xff]
          %v1918 = vld [vmem:[%s1912 + $0x78] sm:$0xff]
          %v1919 = vld [vmem:[%s1912 + $0x90] sm:$0xff]
          %v1920 = vld [vmem:[%s1912 + $0xa8] sm:$0xff]
          %v1921 = vlaneseq
          %v1922 = vshrl.u32 %v1921, 7
          %v1923 = vsub.s32 1, %v1922
          %v1924 = vrot.slane %v1880, %v1923
          %v1925 = vmul.f32 %v1924, %v1913
          %v1926 = vmul.f32 %v1924, %v1914
          %v1927 = vmul.f32 %v1924, %v1915
          %v1928 = vmul.f32 %v1924, %v1916
          %v1929 = vmul.f32 %v1924, %v1917
          %v1930 = vmul.f32 %v1924, %v1918
          %v1931 = vmul.f32 %v1924, %v1919
          %v1932 = vmul.f32 %v1924, %v1920
          %v1933 = vadd.f32 %v1903, %v1925
          %v1934 = vadd.f32 %v1904, %v1926
          %v1935 = vadd.f32 %v1905, %v1927
          %v1936 = vadd.f32 %v1906, %v1928
          %v1937 = vadd.f32 %v1907, %v1929
          %v1938 = vadd.f32 %v1908, %v1930
          %v1939 = vadd.f32 %v1909, %v1931
          %v1940 = vadd.f32 %v1910, %v1932
          %s1941 = ssub.s32 14, %s1878
          %s1942 = scalar_lea.vmem [#allocation3], %s1941
          %v1943 = vld [vmem:[%s1942] sm:$0xff]
          %v1944 = vld [vmem:[%s1942 + $0x18] sm:$0xff]
          %v1945 = vld [vmem:[%s1942 + $0x30] sm:$0xff]
          %v1946 = vld [vmem:[%s1942 + $0x48] sm:$0xff]
          %v1947 = vld [vmem:[%s1942 + $0x60] sm:$0xff]
          %v1948 = vld [vmem:[%s1942 + $0x78] sm:$0xff]
          %v1949 = vld [vmem:[%s1942 + $0x90] sm:$0xff]
          %v1950 = vld [vmem:[%s1942 + $0xa8] sm:$0xff]
          %v1951 = vlaneseq
          %v1952 = vshrl.u32 %v1951, 7
          %v1953 = vsub.s32 2, %v1952
          %v1954 = vrot.slane %v1880, %v1953
          %v1955 = vmul.f32 %v1954, %v1943
          %v1956 = vmul.f32 %v1954, %v1944
          %v1957 = vmul.f32 %v1954, %v1945
          %v1958 = vmul.f32 %v1954, %v1946
          %v1959 = vmul.f32 %v1954, %v1947
          %v1960 = vmul.f32 %v1954, %v1948
          %v1961 = vmul.f32 %v1954, %v1949
          %v1962 = vmul.f32 %v1954, %v1950
          %v1963 = vadd.f32 %v1933, %v1955
          %v1964 = vadd.f32 %v1934, %v1956
          %v1965 = vadd.f32 %v1935, %v1957
          %v1966 = vadd.f32 %v1936, %v1958
          %v1967 = vadd.f32 %v1937, %v1959
          %v1968 = vadd.f32 %v1938, %v1960
          %v1969 = vadd.f32 %v1939, %v1961
          %v1970 = vadd.f32 %v1940, %v1962
          %s1971 = ssub.s32 13, %s1878
          %s1972 = scalar_lea.vmem [#allocation3], %s1971
          %v1973 = vld [vmem:[%s1972] sm:$0xff]
          %v1974 = vld [vmem:[%s1972 + $0x18] sm:$0xff]
          %v1975 = vld [vmem:[%s1972 + $0x30] sm:$0xff]
          %v1976 = vld [vmem:[%s1972 + $0x48] sm:$0xff]
          %v1977 = vld [vmem:[%s1972 + $0x60] sm:$0xff]
          %v1978 = vld [vmem:[%s1972 + $0x78] sm:$0xff]
          %v1979 = vld [vmem:[%s1972 + $0x90] sm:$0xff]
          %v1980 = vld [vmem:[%s1972 + $0xa8] sm:$0xff]
          %v1981 = vlaneseq
          %v1982 = vshrl.u32 %v1981, 7
          %v1983 = vsub.s32 3, %v1982
          %v1984 = vrot.slane %v1880, %v1983
          %v1985 = vmul.f32 %v1984, %v1973
          %v1986 = vmul.f32 %v1984, %v1974
          %v1987 = vmul.f32 %v1984, %v1975
          %v1988 = vmul.f32 %v1984, %v1976
          %v1989 = vmul.f32 %v1984, %v1977
          %v1990 = vmul.f32 %v1984, %v1978
          %v1991 = vmul.f32 %v1984, %v1979
          %v1992 = vmul.f32 %v1984, %v1980
          %v1993 = vadd.f32 %v1963, %v1985
          %v1994 = vadd.f32 %v1964, %v1986
          %v1995 = vadd.f32 %v1965, %v1987
          %v1996 = vadd.f32 %v1966, %v1988
          %v1997 = vadd.f32 %v1967, %v1989
          %v1998 = vadd.f32 %v1968, %v1990
          %v1999 = vadd.f32 %v1969, %v1991
          %v2000 = vadd.f32 %v1970, %v1992
          %s2001 = ssub.s32 12, %s1878
          %s2002 = scalar_lea.vmem [#allocation3], %s2001
          %v2003 = vld [vmem:[%s2002] sm:$0xff]
          %v2004 = vld [vmem:[%s2002 + $0x18] sm:$0xff]
          %v2005 = vld [vmem:[%s2002 + $0x30] sm:$0xff]
          %v2006 = vld [vmem:[%s2002 + $0x48] sm:$0xff]
          %v2007 = vld [vmem:[%s2002 + $0x60] sm:$0xff]
          %v2008 = vld [vmem:[%s2002 + $0x78] sm:$0xff]
          %v2009 = vld [vmem:[%s2002 + $0x90] sm:$0xff]
          %v2010 = vld [vmem:[%s2002 + $0xa8] sm:$0xff]
          %v2011 = vlaneseq
          %v2012 = vshrl.u32 %v2011, 7
          %v2013 = vsub.s32 4, %v2012
          %v2014 = vrot.slane %v1880, %v2013
          %v2015 = vmul.f32 %v2014, %v2003
          %v2016 = vmul.f32 %v2014, %v2004
          %v2017 = vmul.f32 %v2014, %v2005
          %v2018 = vmul.f32 %v2014, %v2006
          %v2019 = vmul.f32 %v2014, %v2007
          %v2020 = vmul.f32 %v2014, %v2008
          %v2021 = vmul.f32 %v2014, %v2009
          %v2022 = vmul.f32 %v2014, %v2010
          %v2023 = vadd.f32 %v1993, %v2015
          %v2024 = vadd.f32 %v1994, %v2016
          %v2025 = vadd.f32 %v1995, %v2017
          %v2026 = vadd.f32 %v1996, %v2018
          %v2027 = vadd.f32 %v1997, %v2019
          %v2028 = vadd.f32 %v1998, %v2020
          %v2029 = vadd.f32 %v1999, %v2021
          %v2030 = vadd.f32 %v2000, %v2022
          %s2031 = ssub.s32 11, %s1878
          %s2032 = scalar_lea.vmem [#allocation3], %s2031
          %v2033 = vld [vmem:[%s2032] sm:$0xff]
          %v2034 = vld [vmem:[%s2032 + $0x18] sm:$0xff]
          %v2035 = vld [vmem:[%s2032 + $0x30] sm:$0xff]
          %v2036 = vld [vmem:[%s2032 + $0x48] sm:$0xff]
          %v2037 = vld [vmem:[%s2032 + $0x60] sm:$0xff]
          %v2038 = vld [vmem:[%s2032 + $0x78] sm:$0xff]
          %v2039 = vld [vmem:[%s2032 + $0x90] sm:$0xff]
          %v2040 = vld [vmem:[%s2032 + $0xa8] sm:$0xff]
          %v2041 = vlaneseq
          %v2042 = vshrl.u32 %v2041, 7
          %v2043 = vsub.s32 5, %v2042
          %v2044 = vrot.slane %v1880, %v2043
          %v2045 = vmul.f32 %v2044, %v2033
          %v2046 = vmul.f32 %v2044, %v2034
          %v2047 = vmul.f32 %v2044, %v2035
          %v2048 = vmul.f32 %v2044, %v2036
          %v2049 = vmul.f32 %v2044, %v2037
          %v2050 = vmul.f32 %v2044, %v2038
          %v2051 = vmul.f32 %v2044, %v2039
          %v2052 = vmul.f32 %v2044, %v2040
          %v2053 = vadd.f32 %v2023, %v2045
          %v2054 = vadd.f32 %v2024, %v2046
          %v2055 = vadd.f32 %v2025, %v2047
          %v2056 = vadd.f32 %v2026, %v2048
          %v2057 = vadd.f32 %v2027, %v2049
          %v2058 = vadd.f32 %v2028, %v2050
          %v2059 = vadd.f32 %v2029, %v2051
          %v2060 = vadd.f32 %v2030, %v2052
          %s2061 = ssub.s32 10, %s1878
          %s2062 = scalar_lea.vmem [#allocation3], %s2061
          %v2063 = vld [vmem:[%s2062] sm:$0xff]
          %v2064 = vld [vmem:[%s2062 + $0x18] sm:$0xff]
          %v2065 = vld [vmem:[%s2062 + $0x30] sm:$0xff]
          %v2066 = vld [vmem:[%s2062 + $0x48] sm:$0xff]
          %v2067 = vld [vmem:[%s2062 + $0x60] sm:$0xff]
          %v2068 = vld [vmem:[%s2062 + $0x78] sm:$0xff]
          %v2069 = vld [vmem:[%s2062 + $0x90] sm:$0xff]
          %v2070 = vld [vmem:[%s2062 + $0xa8] sm:$0xff]
          %v2071 = vlaneseq
          %v2072 = vshrl.u32 %v2071, 7
          %v2073 = vsub.s32 6, %v2072
          %v2074 = vrot.slane %v1880, %v2073
          %v2075 = vmul.f32 %v2074, %v2063
          %v2076 = vmul.f32 %v2074, %v2064
          %v2077 = vmul.f32 %v2074, %v2065
          %v2078 = vmul.f32 %v2074, %v2066
          %v2079 = vmul.f32 %v2074, %v2067
          %v2080 = vmul.f32 %v2074, %v2068
          %v2081 = vmul.f32 %v2074, %v2069
          %v2082 = vmul.f32 %v2074, %v2070
          %v2083 = vadd.f32 %v2053, %v2075
          %v2084 = vadd.f32 %v2054, %v2076
          %v2085 = vadd.f32 %v2055, %v2077
          %v2086 = vadd.f32 %v2056, %v2078
          %v2087 = vadd.f32 %v2057, %v2079
          %v2088 = vadd.f32 %v2058, %v2080
          %v2089 = vadd.f32 %v2059, %v2081
          %v2090 = vadd.f32 %v2060, %v2082
          %s2091 = ssub.s32 9, %s1878
          %s2092 = scalar_lea.vmem [#allocation3], %s2091
          %v2093 = vld [vmem:[%s2092] sm:$0xff]
          %v2094 = vld [vmem:[%s2092 + $0x18] sm:$0xff]
          %v2095 = vld [vmem:[%s2092 + $0x30] sm:$0xff]
          %v2096 = vld [vmem:[%s2092 + $0x48] sm:$0xff]
          %v2097 = vld [vmem:[%s2092 + $0x60] sm:$0xff]
          %v2098 = vld [vmem:[%s2092 + $0x78] sm:$0xff]
          %v2099 = vld [vmem:[%s2092 + $0x90] sm:$0xff]
          %v2100 = vld [vmem:[%s2092 + $0xa8] sm:$0xff]
          %v2101 = vlaneseq
          %v2102 = vshrl.u32 %v2101, 7
          %v2103 = vsub.s32 7, %v2102
          %v2104 = vrot.slane %v1880, %v2103
          %v2105 = vmul.f32 %v2104, %v2093
          %v2106 = vmul.f32 %v2104, %v2094
          %v2107 = vmul.f32 %v2104, %v2095
          %v2108 = vmul.f32 %v2104, %v2096
          %v2109 = vmul.f32 %v2104, %v2097
          %v2110 = vmul.f32 %v2104, %v2098
          %v2111 = vmul.f32 %v2104, %v2099
          %v2112 = vmul.f32 %v2104, %v2100
          %v2113 = vadd.f32 %v2083, %v2105
          %v2114 = vadd.f32 %v2084, %v2106
          %v2115 = vadd.f32 %v2085, %v2107
          %v2116 = vadd.f32 %v2086, %v2108
          %v2117 = vadd.f32 %v2087, %v2109
          %v2118 = vadd.f32 %v2088, %v2110
          %v2119 = vadd.f32 %v2089, %v2111
          %v2120 = vadd.f32 %v2090, %v2112
        $region85: #{tpu_custom_call.1} parent=55 // loop_footer
          %s1869 = sadd.s32 1, %s1865
        $region86: #{tpu_custom_call.1} parent=55 // loop_footer_branch
          %1864 = sbr.rel target = $region82
        $region87: #{tpu_custom_call.1} parent=55 // loop_exit
          _
        %v2121 = vld [vmem:[#allocation3 + $0x10] sm:$0xff]
        %v2122 = vld [vmem:[#allocation3 + $0x28] sm:$0xff]
        %v2123 = vld [vmem:[#allocation3 + $0x40] sm:$0xff]
        %v2124 = vld [vmem:[#allocation3 + $0x58] sm:$0xff]
        %v2125 = vld [vmem:[#allocation3 + $0x70] sm:$0xff]
        %v2126 = vld [vmem:[#allocation3 + $0x88] sm:$0xff]
        %v2127 = vld [vmem:[#allocation3 + $0xa0] sm:$0xff]
        %v2128 = vld [vmem:[#allocation3 + $0xb8] sm:$0xff]
        %v2129 = vld [vmem:[#allocation4 + $0x8] sm:$0xff]
        %v2130 = vld [vmem:[#allocation4 + $0x18] sm:$0xff]
        %v2131 = vld [vmem:[#allocation4 + $0x28] sm:$0xff]
        %v2132 = vld [vmem:[#allocation4 + $0x38] sm:$0xff]
        %v2133 = vld [vmem:[#allocation4 + $0x48] sm:$0xff]
        %v2134 = vld [vmem:[#allocation4 + $0x58] sm:$0xff]
        %v2135 = vld [vmem:[#allocation4 + $0x68] sm:$0xff]
        %v2136 = vld [vmem:[#allocation4 + $0x78] sm:$0xff]
        %v2137 = vmul.f32 %v2121, %v1822
        %v2138 = vmul.f32 %v2122, %v1822
        %v2139 = vmul.f32 %v2123, %v1822
        %v2140 = vmul.f32 %v2124, %v1822
        %v2141 = vmul.f32 %v2125, %v1822
        %v2142 = vmul.f32 %v2126, %v1822
        %v2143 = vmul.f32 %v2127, %v1822
        %v2144 = vmul.f32 %v2128, %v1822
        %v2145 = vadd.f32 %v1870, %v2137
        %v2146 = vadd.f32 %v1871, %v2138
        %v2147 = vadd.f32 %v1872, %v2139
        %v2148 = vadd.f32 %v1873, %v2140
        %v2149 = vadd.f32 %v1874, %v2141
        %v2150 = vadd.f32 %v1875, %v2142
        %v2151 = vadd.f32 %v1876, %v2143
        %v2152 = vadd.f32 %v1877, %v2144
        %v2153 = vmul.f32 %v2145, %v2129
        %v2154 = vmul.f32 %v2146, %v2130
        %v2155 = vmul.f32 %v2147, %v2131
        %v2156 = vmul.f32 %v2148, %v2132
        %v2157 = vmul.f32 %v2149, %v2133
        %v2158 = vmul.f32 %v2150, %v2134
        %v2159 = vmul.f32 %v2151, %v2135
        %v2160 = vmul.f32 %v2152, %v2136
        %v2161 = vpack.c.bf16 %v2153, %v2153
        %v2162 = vpack.c.bf16 %v2154, %v2154
        %v2163 = vpack.c.bf16 %v2155, %v2155
        %v2164 = vpack.c.bf16 %v2156, %v2156
        %v2165 = vpack.c.bf16 %v2157, %v2157
        %v2166 = vpack.c.bf16 %v2158, %v2158
        %v2167 = vpack.c.bf16 %v2159, %v2159
        %v2168 = vpack.c.bf16 %v2160, %v2160
        %v2177 = vrot.slane %v2161, 4
        %v2178 = vrot.slane %v2162, 4
        %v2179 = vrot.slane %v2163, 4
        %v2180 = vrot.slane %v2164, 4
        %v2181 = vrot.slane %v2165, 4
        %v2182 = vrot.slane %v2166, 4
        %v2183 = vrot.slane %v2167, 4
        %v2184 = vrot.slane %v2168, 4
        %2193 = vst [vmem:[#allocation5] sm:$0xf0] %v2177
        %2194 = vst [vmem:[#allocation5 + $0x8] sm:$0xf0] %v2178
        %2195 = vst [vmem:[#allocation5 + $0x10] sm:$0xf0] %v2179
        %2196 = vst [vmem:[#allocation5 + $0x18] sm:$0xf0] %v2180
        %2197 = vst [vmem:[#allocation5 + $0x20] sm:$0xf0] %v2181
        %2198 = vst [vmem:[#allocation5 + $0x28] sm:$0xf0] %v2182
        %2199 = vst [vmem:[#allocation5 + $0x30] sm:$0xf0] %v2183
        %2200 = vst [vmem:[#allocation5 + $0x38] sm:$0xf0] %v2184
        %v2201 = vld [vmem:[#allocation5] sm:$0xff]
        %v2202 = vld [vmem:[#allocation5 + $0x8] sm:$0xff]
        %v2203 = vld [vmem:[#allocation5 + $0x10] sm:$0xff]
        %v2204 = vld [vmem:[#allocation5 + $0x18] sm:$0xff]
        %v2205 = vld [vmem:[#allocation5 + $0x20] sm:$0xff]
        %v2206 = vld [vmem:[#allocation5 + $0x28] sm:$0xff]
        %v2207 = vld [vmem:[#allocation5 + $0x30] sm:$0xff]
        %v2208 = vld [vmem:[#allocation5 + $0x38] sm:$0xff]
        %v2209 = vld [vmem:[#allocation15] sm:$0xf]
        %v2210 = vld [vmem:[#allocation15 + $0x4] sm:$0xf]
        %v2211 = vld [vmem:[#allocation15 + $0x8] sm:$0xf]
        %v2212 = vld [vmem:[#allocation15 + $0xc] sm:$0xf]
        %v2213 = vld [vmem:[#allocation15 + $0x10] sm:$0xf]
        %v2214 = vld [vmem:[#allocation15 + $0x14] sm:$0xf]
        %v2215 = vld [vmem:[#allocation15 + $0x18] sm:$0xf]
        %v2216 = vld [vmem:[#allocation15 + $0x1c] sm:$0xf]
        %v2217 = vld [vmem:[#allocation15 + $0x20] sm:$0xf]
        %v2218 = vld [vmem:[#allocation15 + $0x24] sm:$0xf]
        %v2219 = vld [vmem:[#allocation15 + $0x28] sm:$0xf]
        %v2220 = vld [vmem:[#allocation15 + $0x2c] sm:$0xf]
        %v2221 = vld [vmem:[#allocation15 + $0x30] sm:$0xf]
        %v2222 = vld [vmem:[#allocation15 + $0x34] sm:$0xf]
        %v2223 = vld [vmem:[#allocation15 + $0x38] sm:$0xf]
        %v2224 = vld [vmem:[#allocation15 + $0x3c] sm:$0xf]
        %v2225 = vld [vmem:[%s8] sm:$0x1]
        %v2227 = vlaneseq
        %v2228 = vshrl.u32 %v2227, 7
        %v2229 = vsub.s32 0, %v2228
        %v2230 = vrot.slane %v2225, %v2229
        %v2248 = vunpack.c.l.b16 %v2209
        %v2249 = vunpack.c.l.b16 %v2210
        %v2250 = vunpack.c.l.b16 %v2211
        %v2251 = vunpack.c.l.b16 %v2212
        %v2252 = vunpack.c.l.b16 %v2213
        %v2253 = vunpack.c.l.b16 %v2214
        %v2254 = vunpack.c.l.b16 %v2215
        %v2255 = vunpack.c.l.b16 %v2216
        %v2256 = vunpack.c.l.b16 %v2217
        %v2257 = vunpack.c.l.b16 %v2218
        %v2258 = vunpack.c.l.b16 %v2219
        %v2259 = vunpack.c.l.b16 %v2220
        %v2260 = vunpack.c.l.b16 %v2221
        %v2261 = vunpack.c.l.b16 %v2222
        %v2262 = vunpack.c.l.b16 %v2223
        %v2263 = vunpack.c.l.b16 %v2224
        %v2264 = vpack.c.b16 %v2249, %v2248
        %v2265 = vpack.c.b16 %v2251, %v2250
        %v2266 = vpack.c.b16 %v2253, %v2252
        %v2267 = vpack.c.b16 %v2255, %v2254
        %v2268 = vpack.c.b16 %v2257, %v2256
        %v2269 = vpack.c.b16 %v2259, %v2258
        %v2270 = vpack.c.b16 %v2261, %v2260
        %v2271 = vpack.c.b16 %v2263, %v2262
        %2280 = vmatprep.subr.bf16.mxu0 0
        %2281 = vmatpush1.bf16.msra.mxu0 %v2264
        %2282 = vmatprep.subr.bf16.mxu0 0
        %2283 = vmatpush1.bf16.msra.mxu0 %v2265
        %2284 = vmatprep.subr.bf16.mxu0 0
        %2285 = vmatpush1.bf16.msra.mxu0 %v2266
        %2286 = vmatprep.subr.bf16.mxu0 0
        %2287 = vmatpush1.bf16.msra.mxu0 %v2267
        %2288 = vmatprep.subr.bf16.mxu0 0
        %2289 = vmatpush1.bf16.msra.mxu0 %v2268
        %2290 = vmatprep.subr.bf16.mxu0 0
        %2291 = vmatpush1.bf16.msra.mxu0 %v2269
        %2292 = vmatprep.subr.bf16.mxu0 0
        %2293 = vmatpush1.bf16.msra.mxu0 %v2270
        %2294 = vmatprep.subr.bf16.mxu0 0
        %2295 = vmatpush1.bf16.msra.mxu0 %v2271
        %2296 = vmatprep.subr.bf16.mxu0 0
        %2297 = vmatpush1.bf16.msra.mxu0 0
        %2298 = vmatprep.subr.bf16.mxu0 0
        %2299 = vmatpush1.bf16.msra.mxu0 0
        %2300 = vmatprep.subr.bf16.mxu0 0
        %2301 = vmatpush1.bf16.msra.mxu0 0
        %2302 = vmatprep.subr.bf16.mxu0 0
        %2303 = vmatpush1.bf16.msra.mxu0 0
        %2304 = vmatprep.subr.bf16.mxu0 0
        %2305 = vmatpush1.bf16.msra.mxu0 0
        %2306 = vmatprep.subr.bf16.mxu0 0
        %2307 = vmatpush1.bf16.msra.mxu0 0
        %2308 = vmatprep.subr.bf16.mxu0 0
        %2309 = vmatpush1.bf16.msra.mxu0 0
        %2310 = vmatprep.subr.bf16.mxu0 0
        %2311 = vmatpush1.bf16.msra.mxu0 0
        %2312 = vmatprep.mubr.bf16.mxu0 0
        %2313 = vmatmul.mubr.bf16.gmra.mrb[0].mxu0 %v2201
        %v2314 = vpop.f32.mrb[0].mxu0
        %v2315 = vadd.f32 %v2230, %v2314
        %v2316 = vpop.f32.mrb[0].mxu0
        %v2317 = vpop.f32.mrb[0].mxu0
        %v2318 = vadd.f32 %v2230, %v2317
        %v2319 = vpop.f32.mrb[0].mxu0
        %2320 = vmatprep.mubr.bf16.mxu0 0
        %2321 = vmatmul.mubr.bf16.gmra.mrb[0].mxu0 %v2202
        %v2322 = vpop.f32.mrb[0].mxu0
        %v2323 = vadd.f32 %v2230, %v2322
        %v2324 = vpop.f32.mrb[0].mxu0
        %v2325 = vpop.f32.mrb[0].mxu0
        %v2326 = vadd.f32 %v2230, %v2325
        %v2327 = vpop.f32.mrb[0].mxu0
        %2328 = vmatprep.mubr.bf16.mxu0 0
        %2329 = vmatmul.mubr.bf16.gmra.mrb[0].mxu0 %v2203
        %v2330 = vpop.f32.mrb[0].mxu0
        %v2331 = vadd.f32 %v2230, %v2330
        %v2332 = vpop.f32.mrb[0].mxu0
        %v2333 = vpop.f32.mrb[0].mxu0
        %v2334 = vadd.f32 %v2230, %v2333
        %v2335 = vpop.f32.mrb[0].mxu0
        %2336 = vmatprep.mubr.bf16.mxu0 0
        %2337 = vmatmul.mubr.bf16.gmra.mrb[0].mxu0 %v2204
        %v2338 = vpop.f32.mrb[0].mxu0
        %v2339 = vadd.f32 %v2230, %v2338
        %v2340 = vpop.f32.mrb[0].mxu0
        %v2341 = vpop.f32.mrb[0].mxu0
        %v2342 = vadd.f32 %v2230, %v2341
        %v2343 = vpop.f32.mrb[0].mxu0
        %2344 = vmatprep.mubr.bf16.mxu0 0
        %2345 = vmatmul.mubr.bf16.gmra.mrb[0].mxu0 %v2205
        %v2346 = vpop.f32.mrb[0].mxu0
        %v2347 = vadd.f32 %v2230, %v2346
        %v2348 = vpop.f32.mrb[0].mxu0
        %v2349 = vpop.f32.mrb[0].mxu0
        %v2350 = vadd.f32 %v2230, %v2349
        %v2351 = vpop.f32.mrb[0].mxu0
        %2352 = vmatprep.mubr.bf16.mxu0 0
        %2353 = vmatmul.mubr.bf16.gmra.mrb[0].mxu0 %v2206
        %v2354 = vpop.f32.mrb[0].mxu0
        %v2355 = vadd.f32 %v2230, %v2354
        %v2356 = vpop.f32.mrb[0].mxu0
        %v2357 = vpop.f32.mrb[0].mxu0
        %v2358 = vadd.f32 %v2230, %v2357
        %v2359 = vpop.f32.mrb[0].mxu0
        %2360 = vmatprep.mubr.bf16.mxu0 0
        %2361 = vmatmul.mubr.bf16.gmra.mrb[0].mxu0 %v2207
        %v2362 = vpop.f32.mrb[0].mxu0
        %v2363 = vadd.f32 %v2230, %v2362
        %v2364 = vpop.f32.mrb[0].mxu0
        %v2365 = vpop.f32.mrb[0].mxu0
        %v2366 = vadd.f32 %v2230, %v2365
        %v2367 = vpop.f32.mrb[0].mxu0
        %2368 = vmatprep.mubr.bf16.mxu0 0
        %2369 = vmatmul.mubr.bf16.gmra.mrb[0].mxu0 %v2208
        %v2370 = vpop.f32.mrb[0].mxu0
        %v2371 = vadd.f32 %v2230, %v2370
        %v2372 = vpop.f32.mrb[0].mxu0
        %v2373 = vpop.f32.mrb[0].mxu0
        %v2374 = vadd.f32 %v2230, %v2373
        %v2375 = vpop.f32.mrb[0].mxu0
        %2376 = vdwg.mxu0
        %2377 = vst [vmem:[%s424] sm:$0xff] %v2315
        %2378 = vst [vmem:[%s424 + $0x8] sm:$0xff] %v2318
        %2379 = vst [vmem:[%s424 + $0x10] sm:$0xff] %v2323
        %2380 = vst [vmem:[%s424 + $0x18] sm:$0xff] %v2326
        %2381 = vst [vmem:[%s424 + $0x20] sm:$0xff] %v2331
        %2382 = vst [vmem:[%s424 + $0x28] sm:$0xff] %v2334
        %2383 = vst [vmem:[%s424 + $0x30] sm:$0xff] %v2339
        %2384 = vst [vmem:[%s424 + $0x38] sm:$0xff] %v2342
        %2385 = vst [vmem:[%s424 + $0x40] sm:$0xff] %v2347
        %2386 = vst [vmem:[%s424 + $0x48] sm:$0xff] %v2350
        %2387 = vst [vmem:[%s424 + $0x50] sm:$0xff] %v2355
        %2388 = vst [vmem:[%s424 + $0x58] sm:$0xff] %v2358
        %2389 = vst [vmem:[%s424 + $0x60] sm:$0xff] %v2363
        %2390 = vst [vmem:[%s424 + $0x68] sm:$0xff] %v2366
        %2391 = vst [vmem:[%s424 + $0x70] sm:$0xff] %v2371
        %2392 = vst [vmem:[%s424 + $0x78] sm:$0xff] %v2374
        %s2393 = sand.u32 %s231, 1
        %s2394 = scalar_lea.sflag [#allocation8], %s2393
        %s2395 = sand.u32 %s231, 1
        %s2396 = smul.addr %s2395, 128
        %s2397 = scalar_lea.vmem [#allocation17], %s2396
        // Predicated region
        $region88: #{tpu_custom_call.1} parent=55 // pred_check
          %p2398 = pneg %p241
        $region89: #{tpu_custom_call.1} parent=55 // pred_check_branch
          %2400 = sbr.rel (%p2398) target = $region91
        $region90: #{tpu_custom_call.1} parent=55 // pred_region
          %s2401 = smul.u32 8, %s29
          %s2403 = ssub.s32 2048, 2048
          %2404 = vsyncadd %s2394, %s2403
          %s2405 = smul.addr %s2401, 2
          %s2406 = smul.addr %s2405, 128
          %s2407 = scalar_lea.hbm %s9, %s2406
          %s2408 = sshll.u32 %s2397, 4
          %s2409 = int_to_ptr.vmem [resolvable:$true] %s2408
          %2414 = dma.vmem_to_hbm [thread:$0]  %s2409, 2048, %s2407, %s2394, 128, 128, 8
        $region91: #{tpu_custom_call.1} parent=55 // pred_fallthru
          _
      $region56: #{tpu_custom_call.1} parent=5 // pred_fallthru
        _
      %p2415 = scmp.le.s32.totalorder 2, %s24
      // Predicated region
      $region92: #{tpu_custom_call.1} parent=5 // pred_check
        %p2416 = pneg %p2415
      $region93: #{tpu_custom_call.1} parent=5 // pred_check_branch
        %2418 = sbr.rel (%p2416) target = $region95
      $region94: #{tpu_custom_call.1} parent=5 // pred_region
        %s2419 = ssub.s32 %s24, 2
        // Predicated region
        $region96: #{tpu_custom_call.1} parent=94 // pred_check
          %p2420 = pneg %p247
        $region97: #{tpu_custom_call.1} parent=94 // pred_check_branch
          %2422 = sbr.rel (%p2420) target = $region99
        $region98: #{tpu_custom_call.1} parent=94 // pred_region
          %s2423 = sand.u32 %s232, 1
          %s2424 = scalar_lea.sflag [#allocation8], %s2423
          %s2425 = sand.u32 %s232, 1
          %s2426 = smul.addr %s2425, 128
          %s2427 = scalar_lea.vmem [#allocation17], %s2426
          %2428 = dma.done %s2424, 2048
        $region99: #{tpu_custom_call.1} parent=94 // pred_fallthru
          _
      $region95: #{tpu_custom_call.1} parent=5 // pred_fallthru
        _
    $region6: #{tpu_custom_call.1} parent=1 // loop_footer
      %s28 = sadd.s32 1, %s24
    $region7: #{tpu_custom_call.1} parent=1 // loop_footer_branch
      %23 = sbr.rel target = $region3
    $region8: #{tpu_custom_call.1} parent=1 // loop_exit
      _
    %2429 = vsyncpa [#allocation7], 1
    %s2430 = scalar_lea.sflag [#allocation7], 1
    %2431 = vsyncpa %s2430, 1
    %2432 = vsyncpa [#allocation10], 1
    %2433 = vsyncpa [#allocation13], 1
    %2434 = vsyncpa [#allocation16], 1
    %2435 = vsyncpa [#allocation8], 1
    %s2436 = scalar_lea.sflag [#allocation8], 1
    %2437 = vsyncpa %s2436, 1

</llo_original>
